<compile_context>
chip_gen: v7x
topology: tpu7x:2x2x1
jax: 0.10.0
libtpu: 0.0.40
codegen_flags: <defaults>
</compile_context>

<pallas_src>
import numpy as np
import jax
import jax.numpy as jnp
from jax import lax
from jax.experimental import pallas as pl
from jax.experimental.pallas import tpu as pltpu

# ----------------------------------------------------------------------------
# Scaled-down but structurally faithful cfg.RPN constants
# ----------------------------------------------------------------------------
FP_FEAT = 32                 # cfg.RPN.FP_MLPS[0][-1]  (backbone feature channels C)
CLS_FC = [32]                # cfg.RPN.CLS_FC
REG_FC = [32]                # cfg.RPN.REG_FC
LOC_SCOPE = 3.0              # cfg.RPN.LOC_SCOPE
LOC_BIN_SIZE = 0.5           # cfg.RPN.LOC_BIN_SIZE
NUM_HEAD_BIN = 12            # cfg.RPN.NUM_HEAD_BIN
LOC_XZ_FINE = True           # cfg.RPN.LOC_XZ_FINE
BN_EPS = 1e-5

per_loc_bin_num = int(LOC_SCOPE / LOC_BIN_SIZE) * 2            # 12
if LOC_XZ_FINE:
    REG_CH = per_loc_bin_num * 4 + NUM_HEAD_BIN * 2 + 3        # 75
else:
    REG_CH = per_loc_bin_num * 2 + NUM_HEAD_BIN * 2 + 3
REG_CH += 1                                                    # 76

CIN = FP_FEAT + 3            # xyz (3) concatenated with backbone features
H = CLS_FC[0]                # hidden width of both heads (== REG_FC[0])
H2 = 2 * H                   # fused cls+reg first-layer output width

# dot_general dimension numbers: contract lhs dim 0 with rhs dim 0
# (same "NT" pattern used by the production flash-attention backward kernel),
# so the channel-major feature tile never needs an explicit transpose copy.
_NT = (((0,), (0,)), ((), ()))


# ----------------------------------------------------------------------------
# Pallas kernel: both RPN heads (cls + reg) for one (batch, point-tile) block.
# Activations are point-major (tile_n, C): points on sublanes, channels on
# lanes, so outputs are stored directly in the module's (B, N, C) layout.
# ----------------------------------------------------------------------------
def rpn_head_kernel(xyz_ref,                      # (1, TN, 3)
                    feat_ref,                     # (1, C,  TN)  native NCW
                    w1x_ref, w1f_ref, b1_ref,     # (3,2H) (C,2H) (1,2H)
                    w2c_ref, b2c_ref,             # (2H,1)  (1,1)
                    w2r_ref, b2r_ref,             # (2H,H)  (1,H)
                    w3r_ref, b3r_ref,             # (H,REG_CH) (1,REG_CH)
                    cls_ref,                      # (1, TN, 1)
                    reg_ref):                     # (1, TN, REG_CH)
    cdt = w1f_ref.dtype                           # compute dtype (f32 or bf16)
    xyz = xyz_ref[0].astype(cdt)                  # (TN, 3)  point-major
    feat = feat_ref[0].astype(cdt)                # (C,  TN) channel-major

    # Fused first layer of both heads (cls cols 0:H, reg cols H:2H).  The
    # feature part contracts the channel-major tile's leading dim directly;
    # the xyz part is a tiny K=3 matmul.  Biases / ReLU stay in f32.
    h = lax.dot_general(feat, w1f_ref[...], _NT,
                        preferred_element_type=jnp.float32)          # (TN, 2H)
    h = h + jnp.dot(xyz, w1x_ref[...], preferred_element_type=jnp.float32)
    h = jnp.maximum(h + b1_ref[...], 0.0).astype(cdt)                # (TN, 2H)

    # --- classification head: Conv1d(H,1) (w2c zero-padded over the reg half)
    cls = jnp.dot(h, w2c_ref[...], preferred_element_type=jnp.float32)
    cls_ref[0] = (cls + b2c_ref[...]).astype(cls_ref.dtype)          # (TN, 1)

    # --- regression head: Conv1d(H,H,bn)+ReLU -> Conv1d(H,REG_CH) ------------
    r = jnp.dot(h, w2r_ref[...], preferred_element_type=jnp.float32)
    r = jnp.maximum(r + b2r_ref[...], 0.0).astype(cdt)               # (TN, H)
    reg = jnp.dot(r, w3r_ref[...], preferred_element_type=jnp.float32)
    reg_ref[0] = (reg + b3r_ref[...]).astype(reg_ref.dtype)          # (TN, REG_CH)


def _pick_tile_n(n, b):
    """Largest power-of-two divisor of n (<=8192) that still leaves >=2 grid
    steps (so v7x's two TensorCores both get work via 'parallel' semantics)."""
    if n % 128 != 0:
        raise ValueError("N must be a multiple of 128")
    for t in (8192, 4096, 2048, 1024, 512, 256, 128):
        if t <= n and n % t == 0 and (b * (n // t) >= 2 or t == 128):
            return t
    return 128


def _prep_kernel_params(p, cdt):
    """Pack module-style (Cout, Cin) conv weights into kernel (Cin, Cout) form;
    the layer-2 weights are zero-padded to (2H, .) so the fused layer-1 output
    needs no lane slicing.  All tensors here are tiny (a few KB)."""
    f32 = jnp.float32
    w1 = jnp.concatenate([p['w_c1'], p['w_r1']], axis=0)              # (2H, CIN)
    w1x = jnp.transpose(w1[:, :3]).astype(cdt)                        # (3,  2H)
    w1f = jnp.transpose(w1[:, 3:]).astype(cdt)                        # (C,  2H)
    b1 = jnp.concatenate([p['b_c1'], p['b_r1']])[None, :].astype(f32)  # (1, 2H)

    w2c = jnp.concatenate([jnp.transpose(p['w_c2']),
                           jnp.zeros((H, 1), f32)], axis=0).astype(cdt)   # (2H, 1)
    b2c = p['b_c2'].reshape(1, 1).astype(f32)
    w2r = jnp.concatenate([jnp.zeros((H, H), f32),
                           jnp.transpose(p['w_r2'])], axis=0).astype(cdt)  # (2H, H)
    b2r = p['b_r2'][None, :].astype(f32)
    w3r = jnp.transpose(p['w_r3']).astype(cdt)                        # (H, REG_CH)
    b3r = p['b_r3'][None, :].astype(f32)
    return (w1x, w1f, b1, w2c, b2c, w2r, b2r, w3r, b3r)


# ----------------------------------------------------------------------------
# Wrapper: the whole head is one pallas_call, no layout passes around it.
# ----------------------------------------------------------------------------
def rpn_forward(backbone_xyz, backbone_features, params, *, tile_n=None,
                use_bf16=False, out_dtype=jnp.float32):
    """backbone_xyz: (B, N, 3); backbone_features: (B, C, N)  [PyTorch NCW]."""
    B, N, three = backbone_xyz.shape
    Bf, C, Nf = backbone_features.shape
    assert three == 3 and (Bf, Nf, C) == (B, N, FP_FEAT)
    if tile_n is None:
        tile_n = _pick_tile_n(N, B)
    assert N % tile_n == 0 and tile_n % 128 == 0

    # Compute dtype: weights are cast host-side (tiny); the big activations
    # stay f32 in HBM and are cast inside the kernel (no extra wrapper pass).
    cdt = jnp.bfloat16 if use_bf16 else jnp.float32
    wk = _prep_kernel_params(params, cdt)

    cspec = lambda a: pl.BlockSpec(a.shape, lambda bi, ni: (0,) * a.ndim)

    flops = 2 * B * N * (CIN * H2 + H2 * 1 + H2 * H + H * REG_CH)
    io_bytes = (backbone_xyz.size * backbone_xyz.dtype.itemsize
                + backbone_features.size * backbone_features.dtype.itemsize
                + B * N * (1 + REG_CH) * np.dtype(out_dtype).itemsize
                + sum(int(a.size) * a.dtype.itemsize for a in wk))

    cls, reg = pl.pallas_call(
        rpn_head_kernel,
        out_shape=(jax.ShapeDtypeStruct((B, N, 1), out_dtype),
                   jax.ShapeDtypeStruct((B, N, REG_CH), out_dtype)),
        grid_spec=pltpu.PrefetchScalarGridSpec(
            num_scalar_prefetch=0,
            grid=(B, N // tile_n),
            in_specs=[
                pl.BlockSpec((1, tile_n, 3), lambda bi, ni: (bi, ni, 0)),
                pl.BlockSpec((1, C, tile_n), lambda bi, ni: (bi, 0, ni)),
                *[cspec(a) for a in wk],
            ],
            out_specs=[
                pl.BlockSpec((1, tile_n, 1), lambda bi, ni: (bi, ni, 0)),
                pl.BlockSpec((1, tile_n, REG_CH), lambda bi, ni: (bi, ni, 0)),
            ],
        ),
        compiler_params=pltpu.CompilerParams(
            dimension_semantics=("parallel", "parallel"),
            vmem_limit_bytes=40 * 1024 * 1024),
        cost_estimate=pl.CostEstimate(
            flops=int(flops), transcendentals=0, bytes_accessed=int(io_bytes)),
    )(backbone_xyz, backbone_features, *wk)

    # Outputs are already (B, N, C) -- same semantics as the module's
    # `.transpose(1, 2).contiguous()`, with no extra HBM pass.
    return {'rpn_cls': cls,
            'rpn_reg': reg,
            'backbone_xyz': backbone_xyz,
            'backbone_features': backbone_features}


# ----------------------------------------------------------------------------
# Deterministic parameter init (conv-style (Cout, Cin) weights; inference BN
# folded into the preceding 1x1 conv; focal-loss bias / std=0.001 final init).
# ----------------------------------------------------------------------------
def init_params(key):
    ks = jax.random.split(key, 8)

    def conv_w(k, cout, cin, std=None):
        std = (1.0 / np.sqrt(cin)) if std is None else std
        return jax.random.normal(k, (cout, cin), jnp.float32) * std

    def bn_fold(w, k):
        # inference BN: y = (x - mean)/sqrt(var+eps)*gamma + beta, folded in
        kg, kb = jax.random.split(k)
        cout = w.shape[0]
        gamma = 1.0 + 0.1 * jax.random.normal(kg, (cout,), jnp.float32)
        beta = 0.1 * jax.random.normal(kb, (cout,), jnp.float32)
        mean = jnp.zeros((cout,), jnp.float32)
        var = jnp.ones((cout,), jnp.float32)
        scale = gamma / jnp.sqrt(var + BN_EPS)
        return w * scale[:, None], beta - mean * scale

    # cls head: Conv1d(CIN,H,bn)+ReLU -> [Dropout] -> Conv1d(H,1)
    w_c1, b_c1 = bn_fold(conv_w(ks[0], H, CIN), ks[1])
    w_c2 = conv_w(ks[2], 1, H)
    pi = 0.01
    b_c2 = jnp.full((1,), -np.log((1 - pi) / pi), jnp.float32)

    # reg head: Conv1d(CIN,H,bn)+ReLU -> [Dropout] -> Conv1d(H,H,bn)+ReLU
    #           -> Conv1d(H,REG_CH) with std=0.001 init
    w_r1, b_r1 = bn_fold(conv_w(ks[3], H, CIN), ks[4])
    w_r2, b_r2 = bn_fold(conv_w(ks[5], H, H), ks[6])
    w_r3 = jax.random.normal(ks[7], (REG_CH, H), jnp.float32) * 0.001
    b_r3 = jnp.zeros((REG_CH,), jnp.float32)

    return dict(w_c1=w_c1, b_c1=b_c1, w_c2=w_c2, b_c2=b_c2,
                w_r1=w_r1, b_r1=b_r1, w_r2=w_r2, b_r2=b_r2,
                w_r3=w_r3, b_r3=b_r3)


# ----------------------------------------------------------------------------
# Pure-JAX reference for correctness checking (point-major, like the module)
# ----------------------------------------------------------------------------
def rpn_ref(backbone_xyz, backbone_features, p):
    feat = jnp.concatenate(
        [backbone_xyz, jnp.transpose(backbone_features, (0, 2, 1))], axis=-1)  # (B,N,CIN)
    relu = lambda x: jnp.maximum(x, 0.0)
    hc = relu(jnp.einsum('bnc,oc->bno', feat, p['w_c1']) + p['b_c1'])
    cls = jnp.einsum('bnh,oh->bno', hc, p['w_c2']) + p['b_c2']
    hr = relu(jnp.einsum('bnc,oc->bno', feat, p['w_r1']) + p['b_r1'])
    r = relu(jnp.einsum('bnh,oh->bno', hr, p['w_r2']) + p['b_r2'])
    reg = jnp.einsum('bnh,oh->bno', r, p['w_r3']) + p['b_r3']
    return cls, reg


if __name__ == "__main__":
    B, N = 2, 1024
    key = jax.random.PRNGKey(0)
    k_xyz, k_feat, k_par = jax.random.split(key, 3)

    backbone_xyz = jax.random.normal(k_xyz, (B, N, 3), jnp.float32)
    backbone_features = jax.random.normal(k_feat, (B, FP_FEAT, N), jnp.float32)
    params = init_params(k_par)

    ref_cls, ref_reg = rpn_ref(backbone_xyz, backbone_features, params)

    # f32 path; tile_n=512 exercises multi-tile indexing.
    out = rpn_forward(backbone_xyz, backbone_features, params, tile_n=512)
    jax.block_until_ready(out)
    assert out['rpn_cls'].shape == (B, N, 1)
    assert out['rpn_reg'].shape == (B, N, REG_CH)
    np.testing.assert_allclose(np.asarray(out['rpn_cls']), np.asarray(ref_cls),
                               rtol=1e-5, atol=2e-5)
    np.testing.assert_allclose(np.asarray(out['rpn_reg']), np.asarray(ref_reg),
                               rtol=1e-5, atol=2e-5)

    # bf16 compute / bf16 output path with the default tile picker (smoke test,
    # loose tolerance -- bf16 precision noted as a concern for fine loc bins).
    out16 = rpn_forward(backbone_xyz, backbone_features, params,
                        use_bf16=True, out_dtype=jnp.bfloat16)
    jax.block_until_ready(out16)
    np.testing.assert_allclose(np.asarray(out16['rpn_cls'].astype(jnp.float32)),
                               np.asarray(ref_cls), rtol=0.1, atol=0.05)
    np.testing.assert_allclose(np.asarray(out16['rpn_reg'].astype(jnp.float32)),
                               np.asarray(ref_reg), rtol=0.1, atol=0.05)

    print("KERNEL_OK")
</pallas_src>

<mosaic_0001>
module attributes {stable_mosaic.version = 11 : i64} {
  func.func @rpn_head_kernel(%arg0: i32, %arg1: i32, %arg2: memref<1x512x3xf32, #tpu.memory_space<vmem>>, %arg3: memref<1x32x512xf32, #tpu.memory_space<vmem>>, %arg4: memref<3x64xf32, #tpu.memory_space<vmem>>, %arg5: memref<32x64xf32, #tpu.memory_space<vmem>>, %arg6: memref<1x64xf32, #tpu.memory_space<vmem>>, %arg7: memref<64x1xf32, #tpu.memory_space<vmem>>, %arg8: memref<1x1xf32, #tpu.memory_space<vmem>>, %arg9: memref<64x32xf32, #tpu.memory_space<vmem>>, %arg10: memref<1x32xf32, #tpu.memory_space<vmem>>, %arg11: memref<32x76xf32, #tpu.memory_space<vmem>>, %arg12: memref<1x76xf32, #tpu.memory_space<vmem>>, %arg13: memref<1x512x1xf32, #tpu.memory_space<vmem>>, %arg14: memref<1x512x76xf32, #tpu.memory_space<vmem>>) attributes {dimension_semantics = [#tpu.dimension_semantics<parallel>, #tpu.dimension_semantics<parallel>], iteration_bounds = array<i64: 2, 2>, scalar_prefetch = 0 : i64, scratch_operands = 0 : i64, tpu.core_type = #tpu.core_type<tc>, window_params = [{transform_indices = @transform_0, window_bounds = array<i64: 1, 512, 3>}, {transform_indices = @transform_1, window_bounds = array<i64: 1, 32, 512>}, {pipeline_mode = #tpu.pipeline_mode<synchronous>, transform_indices = @transform_2, window_bounds = array<i64: 3, 64>}, {pipeline_mode = #tpu.pipeline_mode<synchronous>, transform_indices = @transform_3, window_bounds = array<i64: 32, 64>}, {pipeline_mode = #tpu.pipeline_mode<synchronous>, transform_indices = @transform_4, window_bounds = array<i64: 1, 64>}, {pipeline_mode = #tpu.pipeline_mode<synchronous>, transform_indices = @transform_5, window_bounds = array<i64: 64, 1>}, {pipeline_mode = #tpu.pipeline_mode<synchronous>, transform_indices = @transform_6, window_bounds = array<i64: 1, 1>}, {pipeline_mode = #tpu.pipeline_mode<synchronous>, transform_indices = @transform_7, window_bounds = array<i64: 64, 32>}, {pipeline_mode = #tpu.pipeline_mode<synchronous>, transform_indices = @transform_8, window_bounds = array<i64: 1, 32>}, {pipeline_mode = #tpu.pipeline_mode<synchronous>, transform_indices = @transform_9, window_bounds = array<i64: 32, 76>}, {pipeline_mode = #tpu.pipeline_mode<synchronous>, transform_indices = @transform_10, window_bounds = array<i64: 1, 76>}, {transform_indices = @transform_11, window_bounds = array<i64: 1, 512, 1>}, {transform_indices = @transform_12, window_bounds = array<i64: 1, 512, 76>}]} {
    %c0 = arith.constant 0 : index
    %c0_0 = arith.constant 0 : index
    %c0_1 = arith.constant 0 : index
    %0 = vector.load %arg2[%c0, %c0_0, %c0_1] : memref<1x512x3xf32, #tpu.memory_space<vmem>>, vector<1x512x3xf32>
    %1 = vector.shape_cast %0 : vector<1x512x3xf32> to vector<512x3xf32>
    %c0_2 = arith.constant 0 : index
    %c0_3 = arith.constant 0 : index
    %c0_4 = arith.constant 0 : index
    %2 = vector.load %arg3[%c0_2, %c0_3, %c0_4] : memref<1x32x512xf32, #tpu.memory_space<vmem>>, vector<1x32x512xf32>
    %3 = vector.shape_cast %2 : vector<1x32x512xf32> to vector<32x512xf32>
    %c0_5 = arith.constant 0 : index
    %c0_6 = arith.constant 0 : index
    %4 = vector.load %arg5[%c0_5, %c0_6] : memref<32x64xf32, #tpu.memory_space<vmem>>, vector<32x64xf32>
    %cst = arith.constant dense<0.000000e+00> : vector<512x64xf32>
    %5 = tpu.matmul %3, %4, %cst {dimension_numbers = #tpu.dot_dimension_numbers<[0], [0], [1], [1], [0, 1, 1, 1], [], []>} : vector<32x512xf32>, vector<32x64xf32>, vector<512x64xf32> -> vector<512x64xf32>
    %c0_7 = arith.constant 0 : index
    %c0_8 = arith.constant 0 : index
    %6 = vector.load %arg4[%c0_7, %c0_8] : memref<3x64xf32, #tpu.memory_space<vmem>>, vector<3x64xf32>
    %cst_9 = arith.constant dense<0.000000e+00> : vector<512x64xf32>
    %7 = tpu.matmul %1, %6, %cst_9 {dimension_numbers = #tpu.dot_dimension_numbers<[1], [0], [0], [1], [0, 0, 1, 1], [], []>} : vector<512x3xf32>, vector<3x64xf32>, vector<512x64xf32> -> vector<512x64xf32>
    %8 = arith.addf %5, %7 : vector<512x64xf32>
    %c0_10 = arith.constant 0 : index
    %c0_11 = arith.constant 0 : index
    %9 = vector.load %arg6[%c0_10, %c0_11] : memref<1x64xf32, #tpu.memory_space<vmem>>, vector<1x64xf32>
    %10 = vector.broadcast %9 : vector<1x64xf32> to vector<512x64xf32>
    %11 = arith.addf %8, %10 : vector<512x64xf32>
    %cst_12 = arith.constant 0.000000e+00 : f32
    %12 = vector.broadcast %cst_12 : f32 to vector<512x64xf32>
    %13 = arith.maximumf %11, %12 : vector<512x64xf32>
    %c0_13 = arith.constant 0 : index
    %c0_14 = arith.constant 0 : index
    %14 = vector.load %arg7[%c0_13, %c0_14] : memref<64x1xf32, #tpu.memory_space<vmem>>, vector<64x1xf32>
    %cst_15 = arith.constant dense<0.000000e+00> : vector<512x1xf32>
    %15 = tpu.matmul %13, %14, %cst_15 {dimension_numbers = #tpu.dot_dimension_numbers<[1], [0], [0], [1], [0, 0, 1, 1], [], []>} : vector<512x64xf32>, vector<64x1xf32>, vector<512x1xf32> -> vector<512x1xf32>
    %c0_16 = arith.constant 0 : index
    %c0_17 = arith.constant 0 : index
    %16 = vector.load %arg8[%c0_16, %c0_17] : memref<1x1xf32, #tpu.memory_space<vmem>>, vector<1x1xf32>
    %17 = vector.broadcast %16 : vector<1x1xf32> to vector<512x1xf32>
    %18 = arith.addf %15, %17 : vector<512x1xf32>
    %c0_18 = arith.constant 0 : index
    %c0_19 = arith.constant 0 : index
    %c0_20 = arith.constant 0 : index
    %19 = vector.load %arg13[%c0_18, %c0_19, %c0_20] : memref<1x512x1xf32, #tpu.memory_space<vmem>>, vector<1x512x1xf32>
    %20 = vector.shape_cast %19 : vector<1x512x1xf32> to vector<512x1xf32>
    %21 = vector.shape_cast %18 : vector<512x1xf32> to vector<1x512x1xf32>
    tpu.vector_store %arg13[%c0_18, %c0_19, %c0_20], %21 {strides = array<i32>} : memref<1x512x1xf32, #tpu.memory_space<vmem>>, vector<1x512x1xf32>,
    %c0_21 = arith.constant 0 : index
    %c0_22 = arith.constant 0 : index
    %22 = vector.load %arg9[%c0_21, %c0_22] : memref<64x32xf32, #tpu.memory_space<vmem>>, vector<64x32xf32>
    %cst_23 = arith.constant dense<0.000000e+00> : vector<512x32xf32>
    %23 = tpu.matmul %13, %22, %cst_23 {dimension_numbers = #tpu.dot_dimension_numbers<[1], [0], [0], [1], [0, 0, 1, 1], [], []>} : vector<512x64xf32>, vector<64x32xf32>, vector<512x32xf32> -> vector<512x32xf32>
    %c0_24 = arith.constant 0 : index
    %c0_25 = arith.constant 0 : index
    %24 = vector.load %arg10[%c0_24, %c0_25] : memref<1x32xf32, #tpu.memory_space<vmem>>, vector<1x32xf32>
    %25 = vector.broadcast %24 : vector<1x32xf32> to vector<512x32xf32>
    %26 = arith.addf %23, %25 : vector<512x32xf32>
    %cst_26 = arith.constant 0.000000e+00 : f32
    %27 = vector.broadcast %cst_26 : f32 to vector<512x32xf32>
    %28 = arith.maximumf %26, %27 : vector<512x32xf32>
    %c0_27 = arith.constant 0 : index
    %c0_28 = arith.constant 0 : index
    %29 = vector.load %arg11[%c0_27, %c0_28] : memref<32x76xf32, #tpu.memory_space<vmem>>, vector<32x76xf32>
    %cst_29 = arith.constant dense<0.000000e+00> : vector<512x76xf32>
    %30 = tpu.matmul %28, %29, %cst_29 {dimension_numbers = #tpu.dot_dimension_numbers<[1], [0], [0], [1], [0, 0, 1, 1], [], []>} : vector<512x32xf32>, vector<32x76xf32>, vector<512x76xf32> -> vector<512x76xf32>
    %c0_30 = arith.constant 0 : index
    %c0_31 = arith.constant 0 : index
    %31 = vector.load %arg12[%c0_30, %c0_31] : memref<1x76xf32, #tpu.memory_space<vmem>>, vector<1x76xf32>
    %32 = vector.broadcast %31 : vector<1x76xf32> to vector<512x76xf32>
    %33 = arith.addf %30, %32 : vector<512x76xf32>
    %c0_32 = arith.constant 0 : index
    %c0_33 = arith.constant 0 : index
    %c0_34 = arith.constant 0 : index
    %34 = vector.load %arg14[%c0_32, %c0_33, %c0_34] : memref<1x512x76xf32, #tpu.memory_space<vmem>>, vector<1x512x76xf32>
    %35 = vector.shape_cast %34 : vector<1x512x76xf32> to vector<512x76xf32>
    %36 = vector.shape_cast %33 : vector<512x76xf32> to vector<1x512x76xf32>
    tpu.vector_store %arg14[%c0_32, %c0_33, %c0_34], %36 {strides = array<i32>} : memref<1x512x76xf32, #tpu.memory_space<vmem>>, vector<1x512x76xf32>,
    return
  }
  func.func @transform_0(%arg0: i32, %arg1: i32) -> (i32, i32, i32) {
    %c0_i32 = arith.constant 0 : i32
    %c0_i32_0 = arith.constant 0 : i32
    return %arg0, %arg1, %c0_i32 : i32, i32, i32
  }
  func.func @transform_1(%arg0: i32, %arg1: i32) -> (i32, i32, i32) {
    %c0_i32 = arith.constant 0 : i32
    %c0_i32_0 = arith.constant 0 : i32
    return %arg0, %c0_i32, %arg1 : i32, i32, i32
  }
  func.func @transform_2(%arg0: i32, %arg1: i32) -> (i32, i32) {
    %c0_i32 = arith.constant 0 : i32
    %c0_i32_0 = arith.constant 0 : i32
    %c0_i32_1 = arith.constant 0 : i32
    return %c0_i32, %c0_i32_0 : i32, i32
  }
  func.func @transform_3(%arg0: i32, %arg1: i32) -> (i32, i32) {
    %c0_i32 = arith.constant 0 : i32
    %c0_i32_0 = arith.constant 0 : i32
    %c0_i32_1 = arith.constant 0 : i32
    return %c0_i32, %c0_i32_0 : i32, i32
  }
  func.func @transform_4(%arg0: i32, %arg1: i32) -> (i32, i32) {
    %c0_i32 = arith.constant 0 : i32
    %c0_i32_0 = arith.constant 0 : i32
    %c0_i32_1 = arith.constant 0 : i32
    return %c0_i32, %c0_i32_0 : i32, i32
  }
  func.func @transform_5(%arg0: i32, %arg1: i32) -> (i32, i32) {
    %c0_i32 = arith.constant 0 : i32
    %c0_i32_0 = arith.constant 0 : i32
    %c0_i32_1 = arith.constant 0 : i32
    return %c0_i32, %c0_i32_0 : i32, i32
  }
  func.func @transform_6(%arg0: i32, %arg1: i32) -> (i32, i32) {
    %c0_i32 = arith.constant 0 : i32
    %c0_i32_0 = arith.constant 0 : i32
    %c0_i32_1 = arith.constant 0 : i32
    return %c0_i32, %c0_i32_0 : i32, i32
  }
  func.func @transform_7(%arg0: i32, %arg1: i32) -> (i32, i32) {
    %c0_i32 = arith.constant 0 : i32
    %c0_i32_0 = arith.constant 0 : i32
    %c0_i32_1 = arith.constant 0 : i32
    return %c0_i32, %c0_i32_0 : i32, i32
  }
  func.func @transform_8(%arg0: i32, %arg1: i32) -> (i32, i32) {
    %c0_i32 = arith.constant 0 : i32
    %c0_i32_0 = arith.constant 0 : i32
    %c0_i32_1 = arith.constant 0 : i32
    return %c0_i32, %c0_i32_0 : i32, i32
  }
  func.func @transform_9(%arg0: i32, %arg1: i32) -> (i32, i32) {
    %c0_i32 = arith.constant 0 : i32
    %c0_i32_0 = arith.constant 0 : i32
    %c0_i32_1 = arith.constant 0 : i32
    return %c0_i32, %c0_i32_0 : i32, i32
  }
  func.func @transform_10(%arg0: i32, %arg1: i32) -> (i32, i32) {
    %c0_i32 = arith.constant 0 : i32
    %c0_i32_0 = arith.constant 0 : i32
    %c0_i32_1 = arith.constant 0 : i32
    return %c0_i32, %c0_i32_0 : i32, i32
  }
  func.func @transform_11(%arg0: i32, %arg1: i32) -> (i32, i32, i32) {
    %c0_i32 = arith.constant 0 : i32
    %c0_i32_0 = arith.constant 0 : i32
    return %arg0, %arg1, %c0_i32 : i32, i32, i32
  }
  func.func @transform_12(%arg0: i32, %arg1: i32) -> (i32, i32, i32) {
    %c0_i32 = arith.constant 0 : i32
    %c0_i32_0 = arith.constant 0 : i32
    return %arg0, %arg1, %c0_i32 : i32, i32, i32
  }
}

</mosaic_0001>

<llo_original>
// kernel: tpu_custom_call.1
$region0: #{tpu_custom_call.1}
  #allocation0 [shape = 'u32[]', space=smem, size = 0x4, offset = 0x4, fixed_abs, tag = 'smem constant byte address 0x4 - core index']
  #allocation1 [shape = 'u32[144,128]{1,0:T(1,128)}', space=vmem, size = 0x12000, scoped, tag = 'internal scratch']
  #allocation2 [shape = 'f32[1,1]{1,0:T(1,128)S(1)}', space=vmem, size = 0x200, scoped, tag = 'scoped memory for tpu_custom_call.1']
  %s0 = inlined_call_operand.vmem [shape: f32[2,1024,3], index: 0, kind: input, shape index: {}]
  %s1 = inlined_call_operand.vmem [shape: f32[2,32,1024], index: 1, kind: input, shape index: {}]
  %s2 = inlined_call_operand.vmem [shape: f32[3,64], index: 2, kind: input, shape index: {}]
  %s3 = inlined_call_operand.vmem [shape: f32[32,64], index: 3, kind: input, shape index: {}]
  %s4 = inlined_call_operand.vmem [shape: f32[1,64], index: 4, kind: input, shape index: {}]
  %s5 = inlined_call_operand.vmem [shape: f32[64,1], index: 5, kind: input, shape index: {}]
  %s6 = inlined_call_operand.<no memory space> [shape: f32[1,1], index: 6, kind: input, shape index: {}]
  %s7 = inlined_call_operand.vmem [shape: f32[64,32], index: 7, kind: input, shape index: {}]
  %s8 = inlined_call_operand.vmem [shape: f32[1,32], index: 8, kind: input, shape index: {}]
  %s9 = inlined_call_operand.vmem [shape: f32[32,76], index: 9, kind: input, shape index: {}]
  %s10 = inlined_call_operand.vmem [shape: f32[1,76], index: 10, kind: input, shape index: {}]
  %s11 = inlined_call_operand.vmem [shape: f32[2,1024,1], index: 11, kind: output, shape index: {0}]
  %s12 = inlined_call_operand.vmem [shape: f32[2,1024,76], index: 12, kind: output, shape index: {1}]
  %13 = xla_tuple %s11, %s12
  %s14 = sld [smem:[#allocation0]]
  $region108: #{tpu_custom_call.1} parent=0
    _
  %s16 = ssub.s32 1, %s14
  %s17 = scalar_select 0, %s16, %s14
  %v18 = vstv %s6
  %19 = vst [vmem:[#allocation2] sm:$0x1] %v18
  $region1: #{tpu_custom_call.1} parent=0
    #allocation3 [shape = 'u8[131072]{0}', space=vmem, size = 0x20000, scoped, tag = 'input window, operand 1']
    loop: start=0, step=1, limit=6
    $region2: #{tpu_custom_call.1} parent=1 // loop_pre_header
      _
    $region3: #{tpu_custom_call.1} parent=1 // loop_header
      %s21 = sphi 0, %s25
      %p22 = scmp.ge.s32.totalorder %s21, 6
      %s28 = sphi 0, %s40
      %s29 = sphi 0, %s36
      %s30 = sphi 0, %s28
      %s31 = sphi 0, %s29
      %s32 = sphi 0, %s30
      %s33 = sphi 0, %s31
      %s45 = sphi 0, %s47
      %s48 = sphi 0, %s45
      %s49 = sphi 0, %s48
      %s65 = sphi 0, %s49
      %s73 = sphi 0, %s75
      %s76 = sphi 0, %s73
      %s77 = sphi 0, %s76
      %s93 = sphi 0, %s77
      %s97 = sphi 0, %s97
      %s99 = sphi 0, %s97
      %s100 = sphi 0, %s99
      %s114 = sphi 0, %s100
      %s118 = sphi 0, %s118
      %s120 = sphi 0, %s118
      %s121 = sphi 0, %s120
      %s135 = sphi 0, %s121
      %s139 = sphi 0, %s139
      %s141 = sphi 0, %s139
      %s142 = sphi 0, %s141
      %s156 = sphi 0, %s142
      %s160 = sphi 0, %s160
      %s162 = sphi 0, %s160
      %s163 = sphi 0, %s162
      %s177 = sphi 0, %s163
      %s181 = sphi 0, %s181
      %s183 = sphi 0, %s181
      %s184 = sphi 0, %s183
      %s198 = sphi 0, %s184
      %s202 = sphi 0, %s202
      %s204 = sphi 0, %s202
      %s205 = sphi 0, %s204
      %s219 = sphi 0, %s205
      %s223 = sphi 0, %s223
      %s225 = sphi 0, %s223
      %s226 = sphi 0, %s225
      %s240 = sphi 0, %s226
      %s244 = sphi 0, %s244
      %s246 = sphi 0, %s244
      %s247 = sphi 0, %s246
      %s261 = sphi 0, %s247
      %s265 = sphi 0, %s265
      %s267 = sphi 0, %s265
      %s268 = sphi 0, %s267
      %s282 = sphi 0, %s268
      %s290 = sphi 0, %s292
      %s293 = sphi 0, %s290
      %s294 = sphi 0, %s293
      %s310 = sphi 0, %s294
      %s318 = sphi 0, %s320
      %s321 = sphi 0, %s318
      %s322 = sphi 0, %s321
      %s338 = sphi 0, %s322
    $region4: #{tpu_custom_call.1} parent=1 // loop_header_branch
      %24 = sbr.rel (%p22) target = $region8
    $region5: #{tpu_custom_call.1} parent=1 // loop_body
      %s26 = ssub.s32 %s21, 1
      %s27 = ssub.s32 %s21, 2
      %s34 = sadd.s32 1, %s29
      %p35 = scmp.ge.s32.totalorder %s34, 2
      %s36 = scalar_select %p35, 0, %s34
      %s37 = sadd.s32 1, %s28
      %s38 = scalar_select %p35, %s37, %s28
      %p39 = scmp.ge.s32.totalorder %s38, 2
      %s40 = scalar_select %p39, 0, %s38
      %s41 = ssub.s32 %s28, %s40
      %s42 = ssub.s32 %s29, %s36
      %s43 = sor.u32 %s41, %s42
      %p44 = scmp.eq.s32.totalorder %s43, 0
      %s46 = sadd.s32 %s45, 1
      %s47 = scalar_select %p44, %s45, %s46
      %p50 = pneg %p44
      %p51 = scmp.eq.s32.totalorder %s21, 3
      %p52 = por %p50, %p51
      %p53 = scmp.ne.s32.totalorder %s45, %s48
      %p54 = scmp.eq.s32.totalorder %s21, 0
      %p55 = por %p53, %p54
      %p56 = scmp.ne.s32.totalorder %s45, %s48
      %p57 = scmp.eq.s32.totalorder %s26, 3
      %p58 = por %p56, %p57
      %p59 = scmp.ne.s32.totalorder %s48, %s49
      %p60 = scmp.eq.s32.totalorder %s26, 0
      %p61 = por %p59, %p60
      %p62 = scmp.ne.s32.totalorder %s48, %s49
      %p63 = scmp.eq.s32.totalorder %s27, 3
      %p64 = por %p62, %p63
      %p66 = scmp.ne.s32.totalorder %s49, %s65
      %p67 = scmp.eq.s32.totalorder %s27, 0
      %p68 = por %p66, %p67
      %s69 = ssub.s32 %s28, %s40
      %s70 = ssub.s32 %s29, %s36
      %s71 = sor.u32 %s69, %s70
      %p72 = scmp.eq.s32.totalorder %s71, 0
      %s74 = sadd.s32 %s73, 1
      %s75 = scalar_select %p72, %s73, %s74
      %p78 = pneg %p72
      %p79 = scmp.eq.s32.totalorder %s21, 3
      %p80 = por %p78, %p79
      %p81 = scmp.ne.s32.totalorder %s73, %s76
      %p82 = scmp.eq.s32.totalorder %s21, 0
      %p83 = por %p81, %p82
      %p84 = scmp.ne.s32.totalorder %s73, %s76
      %p85 = scmp.eq.s32.totalorder %s26, 3
      %p86 = por %p84, %p85
      %p87 = scmp.ne.s32.totalorder %s76, %s77
      %p88 = scmp.eq.s32.totalorder %s26, 0
      %p89 = por %p87, %p88
      %p90 = scmp.ne.s32.totalorder %s76, %s77
      %p91 = scmp.eq.s32.totalorder %s27, 3
      %p92 = por %p90, %p91
      %p94 = scmp.ne.s32.totalorder %s77, %s93
      %p95 = scmp.eq.s32.totalorder %s27, 0
      %p96 = por %p94, %p95
      %s98 = sadd.s32 %s97, 1
      %p101 = scmp.eq.s32.totalorder %s21, 3
      %p102 = scmp.ne.s32.totalorder %s97, %s99
      %p103 = scmp.eq.s32.totalorder %s21, 0
      %p104 = por %p102, %p103
      %p105 = scmp.ne.s32.totalorder %s97, %s99
      %p106 = scmp.eq.s32.totalorder %s26, 3
      %p107 = por %p105, %p106
      %p108 = scmp.ne.s32.totalorder %s99, %s100
      %p109 = scmp.eq.s32.totalorder %s26, 0
      %p110 = por %p108, %p109
      %p111 = scmp.ne.s32.totalorder %s99, %s100
      %p112 = scmp.eq.s32.totalorder %s27, 3
      %p113 = por %p111, %p112
      %p115 = scmp.ne.s32.totalorder %s100, %s114
      %p116 = scmp.eq.s32.totalorder %s27, 0
      %p117 = por %p115, %p116
      %s119 = sadd.s32 %s118, 1
      %p122 = scmp.eq.s32.totalorder %s21, 3
      %p123 = scmp.ne.s32.totalorder %s118, %s120
      %p124 = scmp.eq.s32.totalorder %s21, 0
      %p125 = por %p123, %p124
      %p126 = scmp.ne.s32.totalorder %s118, %s120
      %p127 = scmp.eq.s32.totalorder %s26, 3
      %p128 = por %p126, %p127
      %p129 = scmp.ne.s32.totalorder %s120, %s121
      %p130 = scmp.eq.s32.totalorder %s26, 0
      %p131 = por %p129, %p130
      %p132 = scmp.ne.s32.totalorder %s120, %s121
      %p133 = scmp.eq.s32.totalorder %s27, 3
      %p134 = por %p132, %p133
      %p136 = scmp.ne.s32.totalorder %s121, %s135
      %p137 = scmp.eq.s32.totalorder %s27, 0
      %p138 = por %p136, %p137
      %s140 = sadd.s32 %s139, 1
      %p143 = scmp.eq.s32.totalorder %s21, 3
      %p144 = scmp.ne.s32.totalorder %s139, %s141
      %p145 = scmp.eq.s32.totalorder %s21, 0
      %p146 = por %p144, %p145
      %p147 = scmp.ne.s32.totalorder %s139, %s141
      %p148 = scmp.eq.s32.totalorder %s26, 3
      %p149 = por %p147, %p148
      %p150 = scmp.ne.s32.totalorder %s141, %s142
      %p151 = scmp.eq.s32.totalorder %s26, 0
      %p152 = por %p150, %p151
      %p153 = scmp.ne.s32.totalorder %s141, %s142
      %p154 = scmp.eq.s32.totalorder %s27, 3
      %p155 = por %p153, %p154
      %p157 = scmp.ne.s32.totalorder %s142, %s156
      %p158 = scmp.eq.s32.totalorder %s27, 0
      %p159 = por %p157, %p158
      %s161 = sadd.s32 %s160, 1
      %p164 = scmp.eq.s32.totalorder %s21, 3
      %p165 = scmp.ne.s32.totalorder %s160, %s162
      %p166 = scmp.eq.s32.totalorder %s21, 0
      %p167 = por %p165, %p166
      %p168 = scmp.ne.s32.totalorder %s160, %s162
      %p169 = scmp.eq.s32.totalorder %s26, 3
      %p170 = por %p168, %p169
      %p171 = scmp.ne.s32.totalorder %s162, %s163
      %p172 = scmp.eq.s32.totalorder %s26, 0
      %p173 = por %p171, %p172
      %p174 = scmp.ne.s32.totalorder %s162, %s163
      %p175 = scmp.eq.s32.totalorder %s27, 3
      %p176 = por %p174, %p175
      %p178 = scmp.ne.s32.totalorder %s163, %s177
      %p179 = scmp.eq.s32.totalorder %s27, 0
      %p180 = por %p178, %p179
      %s182 = sadd.s32 %s181, 1
      %p185 = scmp.eq.s32.totalorder %s21, 3
      %p186 = scmp.ne.s32.totalorder %s181, %s183
      %p187 = scmp.eq.s32.totalorder %s21, 0
      %p188 = por %p186, %p187
      %p189 = scmp.ne.s32.totalorder %s181, %s183
      %p190 = scmp.eq.s32.totalorder %s26, 3
      %p191 = por %p189, %p190
      %p192 = scmp.ne.s32.totalorder %s183, %s184
      %p193 = scmp.eq.s32.totalorder %s26, 0
      %p194 = por %p192, %p193
      %p195 = scmp.ne.s32.totalorder %s183, %s184
      %p196 = scmp.eq.s32.totalorder %s27, 3
      %p197 = por %p195, %p196
      %p199 = scmp.ne.s32.totalorder %s184, %s198
      %p200 = scmp.eq.s32.totalorder %s27, 0
      %p201 = por %p199, %p200
      %s203 = sadd.s32 %s202, 1
      %p206 = scmp.eq.s32.totalorder %s21, 3
      %p207 = scmp.ne.s32.totalorder %s202, %s204
      %p208 = scmp.eq.s32.totalorder %s21, 0
      %p209 = por %p207, %p208
      %p210 = scmp.ne.s32.totalorder %s202, %s204
      %p211 = scmp.eq.s32.totalorder %s26, 3
      %p212 = por %p210, %p211
      %p213 = scmp.ne.s32.totalorder %s204, %s205
      %p214 = scmp.eq.s32.totalorder %s26, 0
      %p215 = por %p213, %p214
      %p216 = scmp.ne.s32.totalorder %s204, %s205
      %p217 = scmp.eq.s32.totalorder %s27, 3
      %p218 = por %p216, %p217
      %p220 = scmp.ne.s32.totalorder %s205, %s219
      %p221 = scmp.eq.s32.totalorder %s27, 0
      %p222 = por %p220, %p221
      %s224 = sadd.s32 %s223, 1
      %p227 = scmp.eq.s32.totalorder %s21, 3
      %p228 = scmp.ne.s32.totalorder %s223, %s225
      %p229 = scmp.eq.s32.totalorder %s21, 0
      %p230 = por %p228, %p229
      %p231 = scmp.ne.s32.totalorder %s223, %s225
      %p232 = scmp.eq.s32.totalorder %s26, 3
      %p233 = por %p231, %p232
      %p234 = scmp.ne.s32.totalorder %s225, %s226
      %p235 = scmp.eq.s32.totalorder %s26, 0
      %p236 = por %p234, %p235
      %p237 = scmp.ne.s32.totalorder %s225, %s226
      %p238 = scmp.eq.s32.totalorder %s27, 3
      %p239 = por %p237, %p238
      %p241 = scmp.ne.s32.totalorder %s226, %s240
      %p242 = scmp.eq.s32.totalorder %s27, 0
      %p243 = por %p241, %p242
      %s245 = sadd.s32 %s244, 1
      %p248 = scmp.eq.s32.totalorder %s21, 3
      %p249 = scmp.ne.s32.totalorder %s244, %s246
      %p250 = scmp.eq.s32.totalorder %s21, 0
      %p251 = por %p249, %p250
      %p252 = scmp.ne.s32.totalorder %s244, %s246
      %p253 = scmp.eq.s32.totalorder %s26, 3
      %p254 = por %p252, %p253
      %p255 = scmp.ne.s32.totalorder %s246, %s247
      %p256 = scmp.eq.s32.totalorder %s26, 0
      %p257 = por %p255, %p256
      %p258 = scmp.ne.s32.totalorder %s246, %s247
      %p259 = scmp.eq.s32.totalorder %s27, 3
      %p260 = por %p258, %p259
      %p262 = scmp.ne.s32.totalorder %s247, %s261
      %p263 = scmp.eq.s32.totalorder %s27, 0
      %p264 = por %p262, %p263
      %s266 = sadd.s32 %s265, 1
      %p269 = scmp.eq.s32.totalorder %s21, 3
      %p270 = scmp.ne.s32.totalorder %s265, %s267
      %p271 = scmp.eq.s32.totalorder %s21, 0
      %p272 = por %p270, %p271
      %p273 = scmp.ne.s32.totalorder %s265, %s267
      %p274 = scmp.eq.s32.totalorder %s26, 3
      %p275 = por %p273, %p274
      %p276 = scmp.ne.s32.totalorder %s267, %s268
      %p277 = scmp.eq.s32.totalorder %s26, 0
      %p278 = por %p276, %p277
      %p279 = scmp.ne.s32.totalorder %s267, %s268
      %p280 = scmp.eq.s32.totalorder %s27, 3
      %p281 = por %p279, %p280
      %p283 = scmp.ne.s32.totalorder %s268, %s282
      %p284 = scmp.eq.s32.totalorder %s27, 0
      %p285 = por %p283, %p284
      %s286 = ssub.s32 %s28, %s40
      %s287 = ssub.s32 %s29, %s36
      %s288 = sor.u32 %s286, %s287
      %p289 = scmp.eq.s32.totalorder %s288, 0
      %s291 = sadd.s32 %s290, 1
      %s292 = scalar_select %p289, %s290, %s291
      %p295 = pneg %p289
      %p296 = scmp.eq.s32.totalorder %s21, 3
      %p297 = por %p295, %p296
      %p298 = scmp.ne.s32.totalorder %s290, %s293
      %p299 = scmp.eq.s32.totalorder %s21, 0
      %p300 = por %p298, %p299
      %p301 = scmp.ne.s32.totalorder %s290, %s293
      %p302 = scmp.eq.s32.totalorder %s26, 3
      %p303 = por %p301, %p302
      %p304 = scmp.ne.s32.totalorder %s293, %s294
      %p305 = scmp.eq.s32.totalorder %s26, 0
      %p306 = por %p304, %p305
      %p307 = scmp.ne.s32.totalorder %s293, %s294
      %p308 = scmp.eq.s32.totalorder %s27, 3
      %p309 = por %p307, %p308
      %p311 = scmp.ne.s32.totalorder %s294, %s310
      %p312 = scmp.eq.s32.totalorder %s27, 0
      %p313 = por %p311, %p312
      %s314 = ssub.s32 %s28, %s40
      %s315 = ssub.s32 %s29, %s36
      %s316 = sor.u32 %s314, %s315
      %p317 = scmp.eq.s32.totalorder %s316, 0
      %s319 = sadd.s32 %s318, 1
      %s320 = scalar_select %p317, %s318, %s319
      %p323 = pneg %p317
      %p324 = scmp.eq.s32.totalorder %s21, 3
      %p325 = por %p323, %p324
      %p326 = scmp.ne.s32.totalorder %s318, %s321
      %p327 = scmp.eq.s32.totalorder %s21, 0
      %p328 = por %p326, %p327
      %p329 = scmp.ne.s32.totalorder %s318, %s321
      %p330 = scmp.eq.s32.totalorder %s26, 3
      %p331 = por %p329, %p330
      %p332 = scmp.ne.s32.totalorder %s321, %s322
      %p333 = scmp.eq.s32.totalorder %s26, 0
      %p334 = por %p332, %p333
      %p335 = scmp.ne.s32.totalorder %s321, %s322
      %p336 = scmp.eq.s32.totalorder %s27, 3
      %p337 = por %p335, %p336
      %p339 = scmp.ne.s32.totalorder %s322, %s338
      %p340 = scmp.eq.s32.totalorder %s27, 0
      %p341 = por %p339, %p340
      %p342 = scmp.le.s32.totalorder 1, %s21
      %p343 = scmp.lt.s32.totalorder %s21, 5
      %p344 = pnand %p342, %p343
      %p345 = pneg %p344
      // Predicated region
      $region9: #{tpu_custom_call.1} parent=5 // pred_check
        _
      $region10: #{tpu_custom_call.1} parent=5 // pred_check_branch
        %347 = sbr.rel (%p344) target = $region12
      $region11: #{tpu_custom_call.1} parent=5 // pred_region
        %s348 = ssub.s32 %s21, 1
        // Predicated region
        $region13: #{tpu_custom_call.1} parent=11 // pred_check
          %p349 = pneg %p110
        $region14: #{tpu_custom_call.1} parent=11 // pred_check_branch
          %351 = sbr.rel (%p349) target = $region16
        $region15: #{tpu_custom_call.1} parent=11 // pred_region
          _
        $region16: #{tpu_custom_call.1} parent=11 // pred_fallthru
          _
        // Predicated region
        $region17: #{tpu_custom_call.1} parent=11 // pred_check
          %p352 = pneg %p131
        $region18: #{tpu_custom_call.1} parent=11 // pred_check_branch
          %354 = sbr.rel (%p352) target = $region20
        $region19: #{tpu_custom_call.1} parent=11 // pred_region
          _
        $region20: #{tpu_custom_call.1} parent=11 // pred_fallthru
          _
        // Predicated region
        $region21: #{tpu_custom_call.1} parent=11 // pred_check
          %p355 = pneg %p152
        $region22: #{tpu_custom_call.1} parent=11 // pred_check_branch
          %357 = sbr.rel (%p355) target = $region24
        $region23: #{tpu_custom_call.1} parent=11 // pred_region
          _
        $region24: #{tpu_custom_call.1} parent=11 // pred_fallthru
          _
        // Predicated region
        $region25: #{tpu_custom_call.1} parent=11 // pred_check
          %p358 = pneg %p173
        $region26: #{tpu_custom_call.1} parent=11 // pred_check_branch
          %360 = sbr.rel (%p358) target = $region28
        $region27: #{tpu_custom_call.1} parent=11 // pred_region
          _
        $region28: #{tpu_custom_call.1} parent=11 // pred_fallthru
          _
        // Predicated region
        $region29: #{tpu_custom_call.1} parent=11 // pred_check
          %p361 = pneg %p194
        $region30: #{tpu_custom_call.1} parent=11 // pred_check_branch
          %363 = sbr.rel (%p361) target = $region32
        $region31: #{tpu_custom_call.1} parent=11 // pred_region
          _
        $region32: #{tpu_custom_call.1} parent=11 // pred_fallthru
          _
        // Predicated region
        $region33: #{tpu_custom_call.1} parent=11 // pred_check
          %p364 = pneg %p215
        $region34: #{tpu_custom_call.1} parent=11 // pred_check_branch
          %366 = sbr.rel (%p364) target = $region36
        $region35: #{tpu_custom_call.1} parent=11 // pred_region
          _
        $region36: #{tpu_custom_call.1} parent=11 // pred_fallthru
          _
        // Predicated region
        $region37: #{tpu_custom_call.1} parent=11 // pred_check
          %p367 = pneg %p236
        $region38: #{tpu_custom_call.1} parent=11 // pred_check_branch
          %369 = sbr.rel (%p367) target = $region40
        $region39: #{tpu_custom_call.1} parent=11 // pred_region
          _
        $region40: #{tpu_custom_call.1} parent=11 // pred_fallthru
          _
        // Predicated region
        $region41: #{tpu_custom_call.1} parent=11 // pred_check
          %p370 = pneg %p257
        $region42: #{tpu_custom_call.1} parent=11 // pred_check_branch
          %372 = sbr.rel (%p370) target = $region44
        $region43: #{tpu_custom_call.1} parent=11 // pred_region
          _
        $region44: #{tpu_custom_call.1} parent=11 // pred_fallthru
          _
        // Predicated region
        $region45: #{tpu_custom_call.1} parent=11 // pred_check
          %p373 = pneg %p278
        $region46: #{tpu_custom_call.1} parent=11 // pred_check_branch
          %375 = sbr.rel (%p373) target = $region48
        $region47: #{tpu_custom_call.1} parent=11 // pred_region
          _
        $region48: #{tpu_custom_call.1} parent=11 // pred_fallthru
          _
      $region12: #{tpu_custom_call.1} parent=5 // pred_fallthru
        _
      %p376 = scmp.lt.s32.totalorder %s21, 4
      // Predicated region
      $region49: #{tpu_custom_call.1} parent=5 // pred_check
        %p377 = pneg %p376
      $region50: #{tpu_custom_call.1} parent=5 // pred_check_branch
        %379 = sbr.rel (%p377) target = $region52
      $region51: #{tpu_custom_call.1} parent=5 // pred_region
        // Predicated region
        $region53: #{tpu_custom_call.1} parent=51 // pred_check
          %p380 = pneg %p55
        $region54: #{tpu_custom_call.1} parent=51 // pred_check_branch
          %382 = sbr.rel (%p380) target = $region56
        $region55: #{tpu_custom_call.1} parent=51 // pred_region
          %s383 = smul.u32 64, %s29
          %p384 = scmp.lt.s32.totalorder %s28, 1
          %s385 = scalar_select %p384, %s28, 1
          %p386 = scmp.lt.s32.totalorder %s383, 127
          %s387 = scalar_select %p386, %s383, 127
          %s388 = smul.addr %s385, 128
          %s389 = sadd.s32 %s387, %s388
          %s390 = smul.addr %s389, 8
          %s391 = scalar_lea.vmem %s0, %s390
          %s392 = smul.u32 64, %s29
        $region56: #{tpu_custom_call.1} parent=51 // pred_fallthru
          _
        // Predicated region
        $region57: #{tpu_custom_call.1} parent=51 // pred_check
          %p393 = pneg %p83
        $region58: #{tpu_custom_call.1} parent=51 // pred_check_branch
          %395 = sbr.rel (%p393) target = $region60
        $region59: #{tpu_custom_call.1} parent=51 // pred_region
          %s396 = sand.u32 %s73, 1
          %s397 = sand.u32 %s73, 1
          %s398 = smul.addr %s397, 128
          %s399 = scalar_lea.vmem [#allocation3], %s398
          %s400 = smul.u32 4, %s29
          %s401 = smul.addr %s28, 32
          %s402 = sadd.s32 %s400, %s401
          %s403 = smul.addr %s402, 8
          %s404 = scalar_lea.vmem %s1, %s403
          // Predicated region
          $region61: #{tpu_custom_call.1} parent=59 // pred_check
            _
          $region62: #{tpu_custom_call.1} parent=59 // pred_check_branch
            %406 = sbr.rel (0) target = $region64
          $region63: #{tpu_custom_call.1} parent=59 // pred_region
            // Predicated region
            $region65: #{tpu_custom_call.1} parent=63 // pred_check
              _
            $region66: #{tpu_custom_call.1} parent=63 // pred_check_branch
              %408 = sbr.rel (0) target = $region68
            $region67: #{tpu_custom_call.1} parent=63 // pred_region
              loop: start=0, step=1, limit=1
              $region69: #{tpu_custom_call.1} parent=67 // loop_pre_header
                _
              $region70: #{tpu_custom_call.1} parent=67 // loop_header
                %s410 = sphi 0, %s414
                %p411 = scmp.ge.s32.totalorder %s410, 1
                %s415 = sphi %s404, %s404
                %s416 = sphi %s399, %s399
              $region71: #{tpu_custom_call.1} parent=67 // loop_header_branch
                %413 = sbr.rel (%p411) target = $region75
              $region72: #{tpu_custom_call.1} parent=67 // loop_body
                %v417 = vld [vmem:[%s415] sm:$0xff]
                %418 = vst [vmem:[%s416] sm:$0xff] %v417
                %v419 = vld [vmem:[%s415 + $0x8] sm:$0xff]
                %420 = vst [vmem:[%s416 + $0x8] sm:$0xff] %v419
                %v421 = vld [vmem:[%s415 + $0x10] sm:$0xff]
                %422 = vst [vmem:[%s416 + $0x10] sm:$0xff] %v421
                %v423 = vld [vmem:[%s415 + $0x18] sm:$0xff]
                %424 = vst [vmem:[%s416 + $0x18] sm:$0xff] %v423
                %v425 = vld [vmem:[%s415 + $0x40] sm:$0xff]
                %426 = vst [vmem:[%s416 + $0x20] sm:$0xff] %v425
                %v427 = vld [vmem:[%s415 + $0x48] sm:$0xff]
                %428 = vst [vmem:[%s416 + $0x28] sm:$0xff] %v427
                %v429 = vld [vmem:[%s415 + $0x50] sm:$0xff]
                %430 = vst [vmem:[%s416 + $0x30] sm:$0xff] %v429
                %v431 = vld [vmem:[%s415 + $0x58] sm:$0xff]
                %432 = vst [vmem:[%s416 + $0x38] sm:$0xff] %v431
                %v433 = vld [vmem:[%s415 + $0x80] sm:$0xff]
                %434 = vst [vmem:[%s416 + $0x40] sm:$0xff] %v433
                %v435 = vld [vmem:[%s415 + $0x88] sm:$0xff]
                %436 = vst [vmem:[%s416 + $0x48] sm:$0xff] %v435
                %v437 = vld [vmem:[%s415 + $0x90] sm:$0xff]
                %438 = vst [vmem:[%s416 + $0x50] sm:$0xff] %v437
                %v439 = vld [vmem:[%s415 + $0x98] sm:$0xff]
                %440 = vst [vmem:[%s416 + $0x58] sm:$0xff] %v439
                %v441 = vld [vmem:[%s415 + $0xc0] sm:$0xff]
                %442 = vst [vmem:[%s416 + $0x60] sm:$0xff] %v441
                %v443 = vld [vmem:[%s415 + $0xc8] sm:$0xff]
                %444 = vst [vmem:[%s416 + $0x68] sm:$0xff] %v443
                %v445 = vld [vmem:[%s415 + $0xd0] sm:$0xff]
                %446 = vst [vmem:[%s416 + $0x70] sm:$0xff] %v445
                %v447 = vld [vmem:[%s415 + $0xd8] sm:$0xff]
                %448 = vst [vmem:[%s416 + $0x78] sm:$0xff] %v447
              $region73: #{tpu_custom_call.1} parent=67 // loop_footer
                %s414 = sadd.s32 1, %s410
              $region74: #{tpu_custom_call.1} parent=67 // loop_footer_branch
                %409 = sbr.rel target = $region70
              $region75: #{tpu_custom_call.1} parent=67 // loop_exit
                _
            $region68: #{tpu_custom_call.1} parent=63 // pred_fallthru
              _
            // Predicated region
            $region76: #{tpu_custom_call.1} parent=63 // pred_check
              _
            $region77: #{tpu_custom_call.1} parent=63 // pred_check_branch
              %450 = sbr.rel target = $region79
            $region78: #{tpu_custom_call.1} parent=63 // pred_region
              _
            $region79: #{tpu_custom_call.1} parent=63 // pred_fallthru
              _
          $region64: #{tpu_custom_call.1} parent=59 // pred_fallthru
            _
          %451 = vnop
        $region60: #{tpu_custom_call.1} parent=51 // pred_fallthru
          _
      $region52: #{tpu_custom_call.1} parent=5 // pred_fallthru
        _
      %p452 = scmp.le.s32.totalorder 1, %s21
      %p453 = scmp.lt.s32.totalorder %s21, 5
      %p454 = pnand %p452, %p453
      %p455 = pneg %p454
      // Predicated region
      $region80: #{tpu_custom_call.1} parent=5 // pred_check
        _
      $region81: #{tpu_custom_call.1} parent=5 // pred_check_branch
        %457 = sbr.rel (%p454) target = $region83
      $region82: #{tpu_custom_call.1} parent=5 // pred_region
        %s458 = ssub.s32 %s21, 1
        %s459 = sand.u32 %s76, 1
        %s460 = sand.u32 %s76, 1
        %s461 = smul.addr %s460, 128
        %s462 = scalar_lea.vmem [#allocation3], %s461
        // Predicated region
        $region84: #{tpu_custom_call.1} parent=82 // pred_check
          %p463 = pneg %p89
        $region85: #{tpu_custom_call.1} parent=82 // pred_check_branch
          %465 = sbr.rel (%p463) target = $region87
        $region86: #{tpu_custom_call.1} parent=82 // pred_region
          _
        $region87: #{tpu_custom_call.1} parent=82 // pred_fallthru
          _
        %s466 = smul.u32 64, %s31
        %p467 = scmp.lt.s32.totalorder %s30, 1
        %s468 = scalar_select %p467, %s30, 1
        %p469 = scmp.lt.s32.totalorder %s466, 127
        %s470 = scalar_select %p469, %s466, 127
        %s471 = smul.addr %s468, 128
        %s472 = sadd.s32 %s470, %s471
        %s473 = smul.addr %s472, 8
        %s474 = scalar_lea.vmem %s0, %s473
        %p475 = pneg %p61
        %p476 = pneg %p58
        %s477 = sand.u32 %s76, 1
        %s478 = sand.u32 %s76, 1
        %s479 = smul.addr %s478, 128
        %s480 = scalar_lea.vmem [#allocation3], %s479
        %p481 = pneg %p89
        %p482 = pneg %p86
        %p483 = pneg %p110
        %p484 = pneg %p107
        %p485 = pneg %p131
        %p486 = pneg %p128
        %p487 = pneg %p152
        %p488 = pneg %p149
        %p489 = pneg %p173
        %p490 = pneg %p170
        %p491 = pneg %p194
        %p492 = pneg %p191
        %p493 = pneg %p215
        %p494 = pneg %p212
        %p495 = pneg %p236
        %p496 = pneg %p233
        %p497 = pneg %p257
        %p498 = pneg %p254
        %p499 = pneg %p278
        %p500 = pneg %p275
        %p501 = pneg %p306
        %p502 = pneg %p303
        %s503 = smul.u32 64, %s31
        %p504 = scmp.lt.s32.totalorder %s30, 1
        %s505 = scalar_select %p504, %s30, 1
        %p506 = scmp.lt.s32.totalorder %s503, 127
        %s507 = scalar_select %p506, %s503, 127
        %s508 = smul.addr %s505, 128
        %s509 = sadd.s32 %s507, %s508
        %s510 = smul.addr %s509, 8
        %s511 = scalar_lea.vmem %s11, %s510
        %p512 = pneg %p334
        %p513 = pneg %p331
        %s514 = smul.u32 64, %s31
        %p515 = scmp.lt.s32.totalorder %s30, 1
        %s516 = scalar_select %p515, %s30, 1
        %p517 = scmp.lt.s32.totalorder %s514, 127
        %s518 = scalar_select %p517, %s514, 127
        %s519 = smul.addr %s516, 128
        %s520 = sadd.s32 %s518, %s519
        %s521 = smul.addr %s520, 8
        %s522 = scalar_lea.vmem %s12, %s521
        %s523 = smul.u32 64, %s31
        %p524 = scmp.lt.s32.totalorder %s30, 1
        %s525 = scalar_select %p524, %s30, 1
        %p526 = scmp.lt.s32.totalorder %s523, 127
        %s527 = scalar_select %p526, %s523, 127
        %s528 = smul.addr %s525, 128
        %s529 = sadd.s32 %s527, %s528
        %s530 = smul.addr %s529, 8
        %s531 = scalar_lea.vmem %s0, %s530
        %s532 = smul.u32 64, %s31
        %s533 = smul.u32 4, %s31
        %s534 = smul.u32 64, %s31
        %p535 = scmp.lt.s32.totalorder %s30, 1
        %s536 = scalar_select %p535, %s30, 1
        %p537 = scmp.lt.s32.totalorder %s534, 127
        %s538 = scalar_select %p537, %s534, 127
        %s539 = smul.addr %s536, 128
        %s540 = sadd.s32 %s538, %s539
        %s541 = smul.addr %s540, 8
        %s542 = scalar_lea.vmem %s11, %s541
        %s543 = smul.u32 64, %s31
        %s544 = smul.u32 64, %s31
        %p545 = scmp.lt.s32.totalorder %s30, 1
        %s546 = scalar_select %p545, %s30, 1
        %p547 = scmp.lt.s32.totalorder %s544, 127
        %s548 = scalar_select %p547, %s544, 127
        %s549 = smul.addr %s546, 128
        %s550 = sadd.s32 %s548, %s549
        %s551 = smul.addr %s550, 8
        %s552 = scalar_lea.vmem %s12, %s551
        %s553 = smul.u32 64, %s31
        %v554 = vld [vmem:[%s531] sm:$0xff]
        %v555 = vld [vmem:[%s531 + $0x8] sm:$0xff]
        %v556 = vld [vmem:[%s531 + $0x10] sm:$0xff]
        %v557 = vld [vmem:[%s531 + $0x18] sm:$0xff]
        %v558 = vld [vmem:[%s531 + $0x20] sm:$0xff]
        %v559 = vld [vmem:[%s531 + $0x28] sm:$0xff]
        %v560 = vld [vmem:[%s531 + $0x30] sm:$0xff]
        %v561 = vld [vmem:[%s531 + $0x38] sm:$0xff]
        %v562 = vld [vmem:[%s531 + $0x40] sm:$0xff]
        %v563 = vld [vmem:[%s531 + $0x48] sm:$0xff]
        %v564 = vld [vmem:[%s531 + $0x50] sm:$0xff]
        %v565 = vld [vmem:[%s531 + $0x58] sm:$0xff]
        %v566 = vld [vmem:[%s531 + $0x60] sm:$0xff]
        %v567 = vld [vmem:[%s531 + $0x68] sm:$0xff]
        %v568 = vld [vmem:[%s531 + $0x70] sm:$0xff]
        %v569 = vld [vmem:[%s531 + $0x78] sm:$0xff]
        %v570 = vld [vmem:[%s531 + $0x80] sm:$0xff]
        %v571 = vld [vmem:[%s531 + $0x88] sm:$0xff]
        %v572 = vld [vmem:[%s531 + $0x90] sm:$0xff]
        %v573 = vld [vmem:[%s531 + $0x98] sm:$0xff]
        %v574 = vld [vmem:[%s531 + $0xa0] sm:$0xff]
        %v575 = vld [vmem:[%s531 + $0xa8] sm:$0xff]
        %v576 = vld [vmem:[%s531 + $0xb0] sm:$0xff]
        %v577 = vld [vmem:[%s531 + $0xb8] sm:$0xff]
        %v578 = vld [vmem:[%s531 + $0xc0] sm:$0xff]
        %v579 = vld [vmem:[%s531 + $0xc8] sm:$0xff]
        %v580 = vld [vmem:[%s531 + $0xd0] sm:$0xff]
        %v581 = vld [vmem:[%s531 + $0xd8] sm:$0xff]
        %v582 = vld [vmem:[%s531 + $0xe0] sm:$0xff]
        %v583 = vld [vmem:[%s531 + $0xe8] sm:$0xff]
        %v584 = vld [vmem:[%s531 + $0xf0] sm:$0xff]
        %v585 = vld [vmem:[%s531 + $0xf8] sm:$0xff]
        %v586 = vld [vmem:[%s531 + $0x100] sm:$0xff]
        %v587 = vld [vmem:[%s531 + $0x108] sm:$0xff]
        %v588 = vld [vmem:[%s531 + $0x110] sm:$0xff]
        %v589 = vld [vmem:[%s531 + $0x118] sm:$0xff]
        %v590 = vld [vmem:[%s531 + $0x120] sm:$0xff]
        %v591 = vld [vmem:[%s531 + $0x128] sm:$0xff]
        %v592 = vld [vmem:[%s531 + $0x130] sm:$0xff]
        %v593 = vld [vmem:[%s531 + $0x138] sm:$0xff]
        %v594 = vld [vmem:[%s531 + $0x140] sm:$0xff]
        %v595 = vld [vmem:[%s531 + $0x148] sm:$0xff]
        %v596 = vld [vmem:[%s531 + $0x150] sm:$0xff]
        %v597 = vld [vmem:[%s531 + $0x158] sm:$0xff]
        %v598 = vld [vmem:[%s531 + $0x160] sm:$0xff]
        %v599 = vld [vmem:[%s531 + $0x168] sm:$0xff]
        %v600 = vld [vmem:[%s531 + $0x170] sm:$0xff]
        %v601 = vld [vmem:[%s531 + $0x178] sm:$0xff]
        %v602 = vld [vmem:[%s531 + $0x180] sm:$0xff]
        %v603 = vld [vmem:[%s531 + $0x188] sm:$0xff]
        %v604 = vld [vmem:[%s531 + $0x190] sm:$0xff]
        %v605 = vld [vmem:[%s531 + $0x198] sm:$0xff]
        %v606 = vld [vmem:[%s531 + $0x1a0] sm:$0xff]
        %v607 = vld [vmem:[%s531 + $0x1a8] sm:$0xff]
        %v608 = vld [vmem:[%s531 + $0x1b0] sm:$0xff]
        %v609 = vld [vmem:[%s531 + $0x1b8] sm:$0xff]
        %v610 = vld [vmem:[%s531 + $0x1c0] sm:$0xff]
        %v611 = vld [vmem:[%s531 + $0x1c8] sm:$0xff]
        %v612 = vld [vmem:[%s531 + $0x1d0] sm:$0xff]
        %v613 = vld [vmem:[%s531 + $0x1d8] sm:$0xff]
        %v614 = vld [vmem:[%s531 + $0x1e0] sm:$0xff]
        %v615 = vld [vmem:[%s531 + $0x1e8] sm:$0xff]
        %v616 = vld [vmem:[%s531 + $0x1f0] sm:$0xff]
        %v617 = vld [vmem:[%s531 + $0x1f8] sm:$0xff]
        %v618 = vld [vmem:[%s462] sm:$0xff]
        %v619 = vld [vmem:[%s462 + $0x8] sm:$0xff]
        %v620 = vld [vmem:[%s462 + $0x10] sm:$0xff]
        %v621 = vld [vmem:[%s462 + $0x18] sm:$0xff]
        %v622 = vld [vmem:[%s462 + $0x20] sm:$0xff]
        %v623 = vld [vmem:[%s462 + $0x28] sm:$0xff]
        %v624 = vld [vmem:[%s462 + $0x30] sm:$0xff]
        %v625 = vld [vmem:[%s462 + $0x38] sm:$0xff]
        %v626 = vld [vmem:[%s462 + $0x40] sm:$0xff]
        %v627 = vld [vmem:[%s462 + $0x48] sm:$0xff]
        %v628 = vld [vmem:[%s462 + $0x50] sm:$0xff]
        %v629 = vld [vmem:[%s462 + $0x58] sm:$0xff]
        %v630 = vld [vmem:[%s462 + $0x60] sm:$0xff]
        %v631 = vld [vmem:[%s462 + $0x68] sm:$0xff]
        %v632 = vld [vmem:[%s462 + $0x70] sm:$0xff]
        %v633 = vld [vmem:[%s462 + $0x78] sm:$0xff]
        %v634 = vld [vmem:[%s3] sm:$0xff]
        %v635 = vld [vmem:[%s3 + $0x8] sm:$0xff]
        %v636 = vld [vmem:[%s3 + $0x10] sm:$0xff]
        %v637 = vld [vmem:[%s3 + $0x18] sm:$0xff]
        %v638 = vld [vmem:[%s2] sm:$0x7]
        %vm639 = vcmask 23552
        %v641 = vsel %vm639, %v554, 0
        %v644 = vsel %vm639, %v555, 0
        %v647 = vsel %vm639, %v556, 0
        %v650 = vsel %vm639, %v557, 0
        %v653 = vsel %vm639, %v558, 0
        %v656 = vsel %vm639, %v559, 0
        %v659 = vsel %vm639, %v560, 0
        %v662 = vsel %vm639, %v561, 0
        %v665 = vsel %vm639, %v562, 0
        %v668 = vsel %vm639, %v563, 0
        %v671 = vsel %vm639, %v564, 0
        %v674 = vsel %vm639, %v565, 0
        %v677 = vsel %vm639, %v566, 0
        %v680 = vsel %vm639, %v567, 0
        %v683 = vsel %vm639, %v568, 0
        %v686 = vsel %vm639, %v569, 0
        %v689 = vsel %vm639, %v570, 0
        %v692 = vsel %vm639, %v571, 0
        %v695 = vsel %vm639, %v572, 0
        %v698 = vsel %vm639, %v573, 0
        %v701 = vsel %vm639, %v574, 0
        %v704 = vsel %vm639, %v575, 0
        %v707 = vsel %vm639, %v576, 0
        %v710 = vsel %vm639, %v577, 0
        %v713 = vsel %vm639, %v578, 0
        %v716 = vsel %vm639, %v579, 0
        %v719 = vsel %vm639, %v580, 0
        %v722 = vsel %vm639, %v581, 0
        %v725 = vsel %vm639, %v582, 0
        %v728 = vsel %vm639, %v583, 0
        %v731 = vsel %vm639, %v584, 0
        %v734 = vsel %vm639, %v585, 0
        %v737 = vsel %vm639, %v586, 0
        %v740 = vsel %vm639, %v587, 0
        %v743 = vsel %vm639, %v588, 0
        %v746 = vsel %vm639, %v589, 0
        %v749 = vsel %vm639, %v590, 0
        %v752 = vsel %vm639, %v591, 0
        %v755 = vsel %vm639, %v592, 0
        %v758 = vsel %vm639, %v593, 0
        %v761 = vsel %vm639, %v594, 0
        %v764 = vsel %vm639, %v595, 0
        %v767 = vsel %vm639, %v596, 0
        %v770 = vsel %vm639, %v597, 0
        %v773 = vsel %vm639, %v598, 0
        %v776 = vsel %vm639, %v599, 0
        %v779 = vsel %vm639, %v600, 0
        %v782 = vsel %vm639, %v601, 0
        %v785 = vsel %vm639, %v602, 0
        %v788 = vsel %vm639, %v603, 0
        %v791 = vsel %vm639, %v604, 0
        %v794 = vsel %vm639, %v605, 0
        %v797 = vsel %vm639, %v606, 0
        %v800 = vsel %vm639, %v607, 0
        %v803 = vsel %vm639, %v608, 0
        %v806 = vsel %vm639, %v609, 0
        %v809 = vsel %vm639, %v610, 0
        %v812 = vsel %vm639, %v611, 0
        %v815 = vsel %vm639, %v612, 0
        %v818 = vsel %vm639, %v613, 0
        %v821 = vsel %vm639, %v614, 0
        %v824 = vsel %vm639, %v615, 0
        %v827 = vsel %vm639, %v616, 0
        %v830 = vsel %vm639, %v617, 0
        %vm832 = vcmask 1042432
        %v834 = vsel %vm832, %v638, 0
        %836 = vmatprep.subr.mxu0 0.0
        %837 = vmatpush1.msra.mxu0 %v834
        %838 = vmatprep.subr.mxu0 0.0
        %839 = vmatpush1.msra.mxu0 0.0
        %840 = vmatprep.subr.mxu0 0.0
        %841 = vmatpush1.msra.mxu0 0.0
        %842 = vmatprep.subr.mxu0 0.0
        %843 = vmatpush1.msra.mxu0 0.0
        %844 = vmatprep.subr.mxu0 0.0
        %845 = vmatpush1.msra.mxu0 0.0
        %846 = vmatprep.subr.mxu0 0.0
        %847 = vmatpush1.msra.mxu0 0.0
        %848 = vmatprep.subr.mxu0 0.0
        %849 = vmatpush1.msra.mxu0 0.0
        %850 = vmatprep.subr.mxu0 0.0
        %851 = vmatpush1.msra.mxu0 0.0
        %852 = vmatprep.subr.mxu0 0.0
        %853 = vmatpush1.msra.mxu0 0.0
        %854 = vmatprep.subr.mxu0 0.0
        %855 = vmatpush1.msra.mxu0 0.0
        %856 = vmatprep.subr.mxu0 0.0
        %857 = vmatpush1.msra.mxu0 0.0
        %858 = vmatprep.subr.mxu0 0.0
        %859 = vmatpush1.msra.mxu0 0.0
        %860 = vmatprep.subr.mxu0 0.0
        %861 = vmatpush1.msra.mxu0 0.0
        %862 = vmatprep.subr.mxu0 0.0
        %863 = vmatpush1.msra.mxu0 0.0
        %864 = vmatprep.subr.mxu0 0.0
        %865 = vmatpush1.msra.mxu0 0.0
        %866 = vmatprep.subr.mxu0 0.0
        %867 = vmatpush1.msra.mxu0 0.0
        %868 = vmatprep.subr.mxu0 0.0
        %869 = vmatpush1.msra.mxu0 0.0
        %870 = vmatprep.subr.mxu0 0.0
        %871 = vmatpush1.msra.mxu0 0.0
        %872 = vmatprep.subr.mxu0 0.0
        %873 = vmatpush1.msra.mxu0 0.0
        %874 = vmatprep.subr.mxu0 0.0
        %875 = vmatpush1.msra.mxu0 0.0
        %876 = vmatprep.subr.mxu0 0.0
        %877 = vmatpush1.msra.mxu0 0.0
        %878 = vmatprep.subr.mxu0 0.0
        %879 = vmatpush1.msra.mxu0 0.0
        %880 = vmatprep.subr.mxu0 0.0
        %881 = vmatpush1.msra.mxu0 0.0
        %882 = vmatprep.subr.mxu0 0.0
        %883 = vmatpush1.msra.mxu0 0.0
        %884 = vmatprep.subr.mxu0 0.0
        %885 = vmatpush1.msra.mxu0 0.0
        %886 = vmatprep.subr.mxu0 0.0
        %887 = vmatpush1.msra.mxu0 0.0
        %888 = vmatprep.subr.mxu0 0.0
        %889 = vmatpush1.msra.mxu0 0.0
        %890 = vmatprep.subr.mxu0 0.0
        %891 = vmatpush1.msra.mxu0 0.0
        %892 = vmatprep.subr.mxu0 0.0
        %893 = vmatpush1.msra.mxu0 0.0
        %894 = vmatprep.subr.mxu0 0.0
        %895 = vmatpush1.msra.mxu0 0.0
        %896 = vmatprep.subr.mxu0 0.0
        %897 = vmatpush1.msra.mxu0 0.0
        %898 = vmatprep.subr.mxu0 0.0
        %899 = vmatpush1.msra.mxu0 0.0
        %900 = vmatprep.mubr.f32.mxu0 0.0
        %901 = vmatmul.mubr.f32.gmra.mrb[0].mxu0 %v641
        %v902 = vpop.f32.mrb[0].mxu0
        %v903 = vadd.f32 0.0, %v902
        %v904 = vpop.f32.mrb[0].mxu0
        %905 = vmatprep.mubr.f32.mxu0 0.0
        %906 = vmatmul.mubr.f32.gmra.mrb[0].mxu0 %v644
        %v907 = vpop.f32.mrb[0].mxu0
        %v908 = vadd.f32 0.0, %v907
        %v909 = vpop.f32.mrb[0].mxu0
        %910 = vmatprep.mubr.f32.mxu0 0.0
        %911 = vmatmul.mubr.f32.gmra.mrb[0].mxu0 %v647
        %v912 = vpop.f32.mrb[0].mxu0
        %v913 = vadd.f32 0.0, %v912
        %v914 = vpop.f32.mrb[0].mxu0
        %915 = vmatprep.mubr.f32.mxu0 0.0
        %916 = vmatmul.mubr.f32.gmra.mrb[0].mxu0 %v650
        %v917 = vpop.f32.mrb[0].mxu0
        %v918 = vadd.f32 0.0, %v917
        %v919 = vpop.f32.mrb[0].mxu0
        %920 = vmatprep.mubr.f32.mxu0 0.0
        %921 = vmatmul.mubr.f32.gmra.mrb[0].mxu0 %v653
        %v922 = vpop.f32.mrb[0].mxu0
        %v923 = vadd.f32 0.0, %v922
        %v924 = vpop.f32.mrb[0].mxu0
        %925 = vmatprep.mubr.f32.mxu0 0.0
        %926 = vmatmul.mubr.f32.gmra.mrb[0].mxu0 %v656
        %v927 = vpop.f32.mrb[0].mxu0
        %v928 = vadd.f32 0.0, %v927
        %v929 = vpop.f32.mrb[0].mxu0
        %930 = vmatprep.mubr.f32.mxu0 0.0
        %931 = vmatmul.mubr.f32.gmra.mrb[0].mxu0 %v659
        %v932 = vpop.f32.mrb[0].mxu0
        %v933 = vadd.f32 0.0, %v932
        %v934 = vpop.f32.mrb[0].mxu0
        %935 = vmatprep.mubr.f32.mxu0 0.0
        %936 = vmatmul.mubr.f32.gmra.mrb[0].mxu0 %v662
        %v937 = vpop.f32.mrb[0].mxu0
        %v938 = vadd.f32 0.0, %v937
        %v939 = vpop.f32.mrb[0].mxu0
        %940 = vmatprep.mubr.f32.mxu0 0.0
        %941 = vmatmul.mubr.f32.gmra.mrb[0].mxu0 %v665
        %v942 = vpop.f32.mrb[0].mxu0
        %v943 = vadd.f32 0.0, %v942
        %v944 = vpop.f32.mrb[0].mxu0
        %945 = vmatprep.mubr.f32.mxu0 0.0
        %946 = vmatmul.mubr.f32.gmra.mrb[0].mxu0 %v668
        %v947 = vpop.f32.mrb[0].mxu0
        %v948 = vadd.f32 0.0, %v947
        %v949 = vpop.f32.mrb[0].mxu0
        %950 = vmatprep.mubr.f32.mxu0 0.0
        %951 = vmatmul.mubr.f32.gmra.mrb[0].mxu0 %v671
        %v952 = vpop.f32.mrb[0].mxu0
        %v953 = vadd.f32 0.0, %v952
        %v954 = vpop.f32.mrb[0].mxu0
        %955 = vmatprep.mubr.f32.mxu0 0.0
        %956 = vmatmul.mubr.f32.gmra.mrb[0].mxu0 %v674
        %v957 = vpop.f32.mrb[0].mxu0
        %v958 = vadd.f32 0.0, %v957
        %v959 = vpop.f32.mrb[0].mxu0
        %960 = vmatprep.mubr.f32.mxu0 0.0
        %961 = vmatmul.mubr.f32.gmra.mrb[0].mxu0 %v677
        %v962 = vpop.f32.mrb[0].mxu0
        %v963 = vadd.f32 0.0, %v962
        %v964 = vpop.f32.mrb[0].mxu0
        %965 = vmatprep.mubr.f32.mxu0 0.0
        %966 = vmatmul.mubr.f32.gmra.mrb[0].mxu0 %v680
        %v967 = vpop.f32.mrb[0].mxu0
        %v968 = vadd.f32 0.0, %v967
        %v969 = vpop.f32.mrb[0].mxu0
        %970 = vmatprep.mubr.f32.mxu0 0.0
        %971 = vmatmul.mubr.f32.gmra.mrb[0].mxu0 %v683
        %v972 = vpop.f32.mrb[0].mxu0
        %v973 = vadd.f32 0.0, %v972
        %v974 = vpop.f32.mrb[0].mxu0
        %975 = vmatprep.mubr.f32.mxu0 0.0
        %976 = vmatmul.mubr.f32.gmra.mrb[0].mxu0 %v686
        %v977 = vpop.f32.mrb[0].mxu0
        %v978 = vadd.f32 0.0, %v977
        %v979 = vpop.f32.mrb[0].mxu0
        %980 = vmatprep.mubr.f32.mxu0 0.0
        %981 = vmatmul.mubr.f32.gmra.mrb[0].mxu0 %v689
        %v982 = vpop.f32.mrb[0].mxu0
        %v983 = vadd.f32 0.0, %v982
        %v984 = vpop.f32.mrb[0].mxu0
        %985 = vmatprep.mubr.f32.mxu0 0.0
        %986 = vmatmul.mubr.f32.gmra.mrb[0].mxu0 %v692
        %v987 = vpop.f32.mrb[0].mxu0
        %v988 = vadd.f32 0.0, %v987
        %v989 = vpop.f32.mrb[0].mxu0
        %990 = vmatprep.mubr.f32.mxu0 0.0
        %991 = vmatmul.mubr.f32.gmra.mrb[0].mxu0 %v695
        %v992 = vpop.f32.mrb[0].mxu0
        %v993 = vadd.f32 0.0, %v992
        %v994 = vpop.f32.mrb[0].mxu0
        %995 = vmatprep.mubr.f32.mxu0 0.0
        %996 = vmatmul.mubr.f32.gmra.mrb[0].mxu0 %v698
        %v997 = vpop.f32.mrb[0].mxu0
        %v998 = vadd.f32 0.0, %v997
        %v999 = vpop.f32.mrb[0].mxu0
        %1000 = vmatprep.mubr.f32.mxu0 0.0
        %1001 = vmatmul.mubr.f32.gmra.mrb[0].mxu0 %v701
        %v1002 = vpop.f32.mrb[0].mxu0
        %v1003 = vadd.f32 0.0, %v1002
        %v1004 = vpop.f32.mrb[0].mxu0
        %1005 = vmatprep.mubr.f32.mxu0 0.0
        %1006 = vmatmul.mubr.f32.gmra.mrb[0].mxu0 %v704
        %v1007 = vpop.f32.mrb[0].mxu0
        %v1008 = vadd.f32 0.0, %v1007
        %v1009 = vpop.f32.mrb[0].mxu0
        %1010 = vmatprep.mubr.f32.mxu0 0.0
        %1011 = vmatmul.mubr.f32.gmra.mrb[0].mxu0 %v707
        %v1012 = vpop.f32.mrb[0].mxu0
        %v1013 = vadd.f32 0.0, %v1012
        %v1014 = vpop.f32.mrb[0].mxu0
        %1015 = vmatprep.mubr.f32.mxu0 0.0
        %1016 = vmatmul.mubr.f32.gmra.mrb[0].mxu0 %v710
        %v1017 = vpop.f32.mrb[0].mxu0
        %v1018 = vadd.f32 0.0, %v1017
        %v1019 = vpop.f32.mrb[0].mxu0
        %1020 = vmatprep.mubr.f32.mxu0 0.0
        %1021 = vmatmul.mubr.f32.gmra.mrb[0].mxu0 %v713
        %v1022 = vpop.f32.mrb[0].mxu0
        %v1023 = vadd.f32 0.0, %v1022
        %v1024 = vpop.f32.mrb[0].mxu0
        %1025 = vmatprep.mubr.f32.mxu0 0.0
        %1026 = vmatmul.mubr.f32.gmra.mrb[0].mxu0 %v716
        %v1027 = vpop.f32.mrb[0].mxu0
        %v1028 = vadd.f32 0.0, %v1027
        %v1029 = vpop.f32.mrb[0].mxu0
        %1030 = vmatprep.mubr.f32.mxu0 0.0
        %1031 = vmatmul.mubr.f32.gmra.mrb[0].mxu0 %v719
        %v1032 = vpop.f32.mrb[0].mxu0
        %v1033 = vadd.f32 0.0, %v1032
        %v1034 = vpop.f32.mrb[0].mxu0
        %1035 = vmatprep.mubr.f32.mxu0 0.0
        %1036 = vmatmul.mubr.f32.gmra.mrb[0].mxu0 %v722
        %v1037 = vpop.f32.mrb[0].mxu0
        %v1038 = vadd.f32 0.0, %v1037
        %v1039 = vpop.f32.mrb[0].mxu0
        %1040 = vmatprep.mubr.f32.mxu0 0.0
        %1041 = vmatmul.mubr.f32.gmra.mrb[0].mxu0 %v725
        %v1042 = vpop.f32.mrb[0].mxu0
        %v1043 = vadd.f32 0.0, %v1042
        %v1044 = vpop.f32.mrb[0].mxu0
        %1045 = vmatprep.mubr.f32.mxu0 0.0
        %1046 = vmatmul.mubr.f32.gmra.mrb[0].mxu0 %v728
        %v1047 = vpop.f32.mrb[0].mxu0
        %v1048 = vadd.f32 0.0, %v1047
        %v1049 = vpop.f32.mrb[0].mxu0
        %1050 = vmatprep.mubr.f32.mxu0 0.0
        %1051 = vmatmul.mubr.f32.gmra.mrb[0].mxu0 %v731
        %v1052 = vpop.f32.mrb[0].mxu0
        %v1053 = vadd.f32 0.0, %v1052
        %v1054 = vpop.f32.mrb[0].mxu0
        %1055 = vmatprep.mubr.f32.mxu0 0.0
        %1056 = vmatmul.mubr.f32.gmra.mrb[0].mxu0 %v734
        %v1057 = vpop.f32.mrb[0].mxu0
        %v1058 = vadd.f32 0.0, %v1057
        %v1059 = vpop.f32.mrb[0].mxu0
        %1060 = vmatprep.mubr.f32.mxu0 0.0
        %1061 = vmatmul.mubr.f32.gmra.mrb[0].mxu0 %v737
        %v1062 = vpop.f32.mrb[0].mxu0
        %v1063 = vadd.f32 0.0, %v1062
        %v1064 = vpop.f32.mrb[0].mxu0
        %1065 = vmatprep.mubr.f32.mxu0 0.0
        %1066 = vmatmul.mubr.f32.gmra.mrb[0].mxu0 %v740
        %v1067 = vpop.f32.mrb[0].mxu0
        %v1068 = vadd.f32 0.0, %v1067
        %v1069 = vpop.f32.mrb[0].mxu0
        %1070 = vmatprep.mubr.f32.mxu0 0.0
        %1071 = vmatmul.mubr.f32.gmra.mrb[0].mxu0 %v743
        %v1072 = vpop.f32.mrb[0].mxu0
        %v1073 = vadd.f32 0.0, %v1072
        %v1074 = vpop.f32.mrb[0].mxu0
        %1075 = vmatprep.mubr.f32.mxu0 0.0
        %1076 = vmatmul.mubr.f32.gmra.mrb[0].mxu0 %v746
        %v1077 = vpop.f32.mrb[0].mxu0
        %v1078 = vadd.f32 0.0, %v1077
        %v1079 = vpop.f32.mrb[0].mxu0
        %1080 = vmatprep.mubr.f32.mxu0 0.0
        %1081 = vmatmul.mubr.f32.gmra.mrb[0].mxu0 %v749
        %v1082 = vpop.f32.mrb[0].mxu0
        %v1083 = vadd.f32 0.0, %v1082
        %v1084 = vpop.f32.mrb[0].mxu0
        %1085 = vmatprep.mubr.f32.mxu0 0.0
        %1086 = vmatmul.mubr.f32.gmra.mrb[0].mxu0 %v752
        %v1087 = vpop.f32.mrb[0].mxu0
        %v1088 = vadd.f32 0.0, %v1087
        %v1089 = vpop.f32.mrb[0].mxu0
        %1090 = vmatprep.mubr.f32.mxu0 0.0
        %1091 = vmatmul.mubr.f32.gmra.mrb[0].mxu0 %v755
        %v1092 = vpop.f32.mrb[0].mxu0
        %v1093 = vadd.f32 0.0, %v1092
        %v1094 = vpop.f32.mrb[0].mxu0
        %1095 = vmatprep.mubr.f32.mxu0 0.0
        %1096 = vmatmul.mubr.f32.gmra.mrb[0].mxu0 %v758
        %v1097 = vpop.f32.mrb[0].mxu0
        %v1098 = vadd.f32 0.0, %v1097
        %v1099 = vpop.f32.mrb[0].mxu0
        %1100 = vmatprep.mubr.f32.mxu0 0.0
        %1101 = vmatmul.mubr.f32.gmra.mrb[0].mxu0 %v761
        %v1102 = vpop.f32.mrb[0].mxu0
        %v1103 = vadd.f32 0.0, %v1102
        %v1104 = vpop.f32.mrb[0].mxu0
        %1105 = vmatprep.mubr.f32.mxu0 0.0
        %1106 = vmatmul.mubr.f32.gmra.mrb[0].mxu0 %v764
        %v1107 = vpop.f32.mrb[0].mxu0
        %v1108 = vadd.f32 0.0, %v1107
        %v1109 = vpop.f32.mrb[0].mxu0
        %1110 = vmatprep.mubr.f32.mxu0 0.0
        %1111 = vmatmul.mubr.f32.gmra.mrb[0].mxu0 %v767
        %v1112 = vpop.f32.mrb[0].mxu0
        %v1113 = vadd.f32 0.0, %v1112
        %v1114 = vpop.f32.mrb[0].mxu0
        %1115 = vmatprep.mubr.f32.mxu0 0.0
        %1116 = vmatmul.mubr.f32.gmra.mrb[0].mxu0 %v770
        %v1117 = vpop.f32.mrb[0].mxu0
        %v1118 = vadd.f32 0.0, %v1117
        %v1119 = vpop.f32.mrb[0].mxu0
        %1120 = vmatprep.mubr.f32.mxu0 0.0
        %1121 = vmatmul.mubr.f32.gmra.mrb[0].mxu0 %v773
        %v1122 = vpop.f32.mrb[0].mxu0
        %v1123 = vadd.f32 0.0, %v1122
        %v1124 = vpop.f32.mrb[0].mxu0
        %1125 = vmatprep.mubr.f32.mxu0 0.0
        %1126 = vmatmul.mubr.f32.gmra.mrb[0].mxu0 %v776
        %v1127 = vpop.f32.mrb[0].mxu0
        %v1128 = vadd.f32 0.0, %v1127
        %v1129 = vpop.f32.mrb[0].mxu0
        %1130 = vmatprep.mubr.f32.mxu0 0.0
        %1131 = vmatmul.mubr.f32.gmra.mrb[0].mxu0 %v779
        %v1132 = vpop.f32.mrb[0].mxu0
        %v1133 = vadd.f32 0.0, %v1132
        %v1134 = vpop.f32.mrb[0].mxu0
        %1135 = vmatprep.mubr.f32.mxu0 0.0
        %1136 = vmatmul.mubr.f32.gmra.mrb[0].mxu0 %v782
        %v1137 = vpop.f32.mrb[0].mxu0
        %v1138 = vadd.f32 0.0, %v1137
        %v1139 = vpop.f32.mrb[0].mxu0
        %1140 = vmatprep.mubr.f32.mxu0 0.0
        %1141 = vmatmul.mubr.f32.gmra.mrb[0].mxu0 %v785
        %v1142 = vpop.f32.mrb[0].mxu0
        %v1143 = vadd.f32 0.0, %v1142
        %v1144 = vpop.f32.mrb[0].mxu0
        %1145 = vmatprep.mubr.f32.mxu0 0.0
        %1146 = vmatmul.mubr.f32.gmra.mrb[0].mxu0 %v788
        %v1147 = vpop.f32.mrb[0].mxu0
        %v1148 = vadd.f32 0.0, %v1147
        %v1149 = vpop.f32.mrb[0].mxu0
        %1150 = vmatprep.mubr.f32.mxu0 0.0
        %1151 = vmatmul.mubr.f32.gmra.mrb[0].mxu0 %v791
        %v1152 = vpop.f32.mrb[0].mxu0
        %v1153 = vadd.f32 0.0, %v1152
        %v1154 = vpop.f32.mrb[0].mxu0
        %1155 = vmatprep.mubr.f32.mxu0 0.0
        %1156 = vmatmul.mubr.f32.gmra.mrb[0].mxu0 %v794
        %v1157 = vpop.f32.mrb[0].mxu0
        %v1158 = vadd.f32 0.0, %v1157
        %v1159 = vpop.f32.mrb[0].mxu0
        %1160 = vmatprep.mubr.f32.mxu0 0.0
        %1161 = vmatmul.mubr.f32.gmra.mrb[0].mxu0 %v797
        %v1162 = vpop.f32.mrb[0].mxu0
        %v1163 = vadd.f32 0.0, %v1162
        %v1164 = vpop.f32.mrb[0].mxu0
        %1165 = vmatprep.mubr.f32.mxu0 0.0
        %1166 = vmatmul.mubr.f32.gmra.mrb[0].mxu0 %v800
        %v1167 = vpop.f32.mrb[0].mxu0
        %v1168 = vadd.f32 0.0, %v1167
        %v1169 = vpop.f32.mrb[0].mxu0
        %1170 = vmatprep.mubr.f32.mxu0 0.0
        %1171 = vmatmul.mubr.f32.gmra.mrb[0].mxu0 %v803
        %v1172 = vpop.f32.mrb[0].mxu0
        %v1173 = vadd.f32 0.0, %v1172
        %v1174 = vpop.f32.mrb[0].mxu0
        %1175 = vmatprep.mubr.f32.mxu0 0.0
        %1176 = vmatmul.mubr.f32.gmra.mrb[0].mxu0 %v806
        %v1177 = vpop.f32.mrb[0].mxu0
        %v1178 = vadd.f32 0.0, %v1177
        %v1179 = vpop.f32.mrb[0].mxu0
        %1180 = vmatprep.mubr.f32.mxu0 0.0
        %1181 = vmatmul.mubr.f32.gmra.mrb[0].mxu0 %v809
        %v1182 = vpop.f32.mrb[0].mxu0
        %v1183 = vadd.f32 0.0, %v1182
        %v1184 = vpop.f32.mrb[0].mxu0
        %1185 = vmatprep.mubr.f32.mxu0 0.0
        %1186 = vmatmul.mubr.f32.gmra.mrb[0].mxu0 %v812
        %v1187 = vpop.f32.mrb[0].mxu0
        %v1188 = vadd.f32 0.0, %v1187
        %v1189 = vpop.f32.mrb[0].mxu0
        %1190 = vmatprep.mubr.f32.mxu0 0.0
        %1191 = vmatmul.mubr.f32.gmra.mrb[0].mxu0 %v815
        %v1192 = vpop.f32.mrb[0].mxu0
        %v1193 = vadd.f32 0.0, %v1192
        %v1194 = vpop.f32.mrb[0].mxu0
        %1195 = vmatprep.mubr.f32.mxu0 0.0
        %1196 = vmatmul.mubr.f32.gmra.mrb[0].mxu0 %v818
        %v1197 = vpop.f32.mrb[0].mxu0
        %v1198 = vadd.f32 0.0, %v1197
        %v1199 = vpop.f32.mrb[0].mxu0
        %1200 = vmatprep.mubr.f32.mxu0 0.0
        %1201 = vmatmul.mubr.f32.gmra.mrb[0].mxu0 %v821
        %v1202 = vpop.f32.mrb[0].mxu0
        %v1203 = vadd.f32 0.0, %v1202
        %v1204 = vpop.f32.mrb[0].mxu0
        %1205 = vmatprep.mubr.f32.mxu0 0.0
        %1206 = vmatmul.mubr.f32.gmra.mrb[0].mxu0 %v824
        %v1207 = vpop.f32.mrb[0].mxu0
        %v1208 = vadd.f32 0.0, %v1207
        %v1209 = vpop.f32.mrb[0].mxu0
        %1210 = vmatprep.mubr.f32.mxu0 0.0
        %1211 = vmatmul.mubr.f32.gmra.mrb[0].mxu0 %v827
        %v1212 = vpop.f32.mrb[0].mxu0
        %v1213 = vadd.f32 0.0, %v1212
        %v1214 = vpop.f32.mrb[0].mxu0
        %1215 = vmatprep.mubr.f32.mxu0 0.0
        %1216 = vmatmul.mubr.f32.gmra.mrb[0].mxu0 %v830
        %v1217 = vpop.f32.mrb[0].mxu0
        %v1218 = vadd.f32 0.0, %v1217
        %v1219 = vpop.f32.mrb[0].mxu0
        %1220 = vdwg.mxu0
        %1221 = vxpose.xlu0.b32.start [1/16] %v618, 128
        %1222 = vxpose.xlu0.b32.cont [2/16] %v622, 128
        %1223 = vxpose.xlu0.b32.cont [3/16] %v626, 128
        %1224 = vxpose.xlu0.b32.cont [4/16] %v630, 128
        %1225 = vxpose.xlu0.b32.cont [5/16] 0.0, 128
        %1226 = vxpose.xlu0.b32.cont [6/16] 0.0, 128
        %1227 = vxpose.xlu0.b32.cont [7/16] 0.0, 128
        %1228 = vxpose.xlu0.b32.cont [8/16] 0.0, 128
        %1229 = vxpose.xlu0.b32.cont [9/16] 0.0, 128
        %1230 = vxpose.xlu0.b32.cont [10/16] 0.0, 128
        %1231 = vxpose.xlu0.b32.cont [11/16] 0.0, 128
        %1232 = vxpose.xlu0.b32.cont [12/16] 0.0, 128
        %1233 = vxpose.xlu0.b32.cont [13/16] 0.0, 128
        %1234 = vxpose.xlu0.b32.cont [14/16] 0.0, 128
        %1235 = vxpose.xlu0.b32.cont [15/16] 0.0, 128
        %1236 = vxpose.xlu0.b32.end [16/16] 0.0, 128
        %v1237 = vpop.trf.xlu0
        %v1238 = vpop.trf.xlu0
        %v1239 = vpop.trf.xlu0
        %v1240 = vpop.trf.xlu0
        %v1241 = vpop.trf.xlu0
        %v1242 = vpop.trf.xlu0
        %v1243 = vpop.trf.xlu0
        %v1244 = vpop.trf.xlu0
        %v1245 = vpop.trf.xlu0
        %v1246 = vpop.trf.xlu0
        %v1247 = vpop.trf.xlu0
        %v1248 = vpop.trf.xlu0
        %v1249 = vpop.trf.xlu0
        %v1250 = vpop.trf.xlu0
        %v1251 = vpop.trf.xlu0
        %v1252 = vpop.trf.xlu0
        %1253 = vxpose.xlu0.b32.start [1/16] %v619, 128
        %1254 = vxpose.xlu0.b32.cont [2/16] %v623, 128
        %1255 = vxpose.xlu0.b32.cont [3/16] %v627, 128
        %1256 = vxpose.xlu0.b32.cont [4/16] %v631, 128
        %1257 = vxpose.xlu0.b32.cont [5/16] 0.0, 128
        %1258 = vxpose.xlu0.b32.cont [6/16] 0.0, 128
        %1259 = vxpose.xlu0.b32.cont [7/16] 0.0, 128
        %1260 = vxpose.xlu0.b32.cont [8/16] 0.0, 128
        %1261 = vxpose.xlu0.b32.cont [9/16] 0.0, 128
        %1262 = vxpose.xlu0.b32.cont [10/16] 0.0, 128
        %1263 = vxpose.xlu0.b32.cont [11/16] 0.0, 128
        %1264 = vxpose.xlu0.b32.cont [12/16] 0.0, 128
        %1265 = vxpose.xlu0.b32.cont [13/16] 0.0, 128
        %1266 = vxpose.xlu0.b32.cont [14/16] 0.0, 128
        %1267 = vxpose.xlu0.b32.cont [15/16] 0.0, 128
        %1268 = vxpose.xlu0.b32.end [16/16] 0.0, 128
        %v1269 = vpop.trf.xlu0
        %v1270 = vpop.trf.xlu0
        %v1271 = vpop.trf.xlu0
        %v1272 = vpop.trf.xlu0
        %v1273 = vpop.trf.xlu0
        %v1274 = vpop.trf.xlu0
        %v1275 = vpop.trf.xlu0
        %v1276 = vpop.trf.xlu0
        %v1277 = vpop.trf.xlu0
        %v1278 = vpop.trf.xlu0
        %v1279 = vpop.trf.xlu0
        %v1280 = vpop.trf.xlu0
        %v1281 = vpop.trf.xlu0
        %v1282 = vpop.trf.xlu0
        %v1283 = vpop.trf.xlu0
        %v1284 = vpop.trf.xlu0
        %1285 = vxpose.xlu0.b32.start [1/16] %v620, 128
        %1286 = vxpose.xlu0.b32.cont [2/16] %v624, 128
        %1287 = vxpose.xlu0.b32.cont [3/16] %v628, 128
        %1288 = vxpose.xlu0.b32.cont [4/16] %v632, 128
        %1289 = vxpose.xlu0.b32.cont [5/16] 0.0, 128
        %1290 = vxpose.xlu0.b32.cont [6/16] 0.0, 128
        %1291 = vxpose.xlu0.b32.cont [7/16] 0.0, 128
        %1292 = vxpose.xlu0.b32.cont [8/16] 0.0, 128
        %1293 = vxpose.xlu0.b32.cont [9/16] 0.0, 128
        %1294 = vxpose.xlu0.b32.cont [10/16] 0.0, 128
        %1295 = vxpose.xlu0.b32.cont [11/16] 0.0, 128
        %1296 = vxpose.xlu0.b32.cont [12/16] 0.0, 128
        %1297 = vxpose.xlu0.b32.cont [13/16] 0.0, 128
        %1298 = vxpose.xlu0.b32.cont [14/16] 0.0, 128
        %1299 = vxpose.xlu0.b32.cont [15/16] 0.0, 128
        %1300 = vxpose.xlu0.b32.end [16/16] 0.0, 128
        %v1301 = vpop.trf.xlu0
        %v1302 = vpop.trf.xlu0
        %v1303 = vpop.trf.xlu0
        %v1304 = vpop.trf.xlu0
        %v1305 = vpop.trf.xlu0
        %v1306 = vpop.trf.xlu0
        %v1307 = vpop.trf.xlu0
        %v1308 = vpop.trf.xlu0
        %v1309 = vpop.trf.xlu0
        %v1310 = vpop.trf.xlu0
        %v1311 = vpop.trf.xlu0
        %v1312 = vpop.trf.xlu0
        %v1313 = vpop.trf.xlu0
        %v1314 = vpop.trf.xlu0
        %v1315 = vpop.trf.xlu0
        %v1316 = vpop.trf.xlu0
        %1317 = vxpose.xlu0.b32.start [1/16] %v621, 128
        %1318 = vxpose.xlu0.b32.cont [2/16] %v625, 128
        %1319 = vxpose.xlu0.b32.cont [3/16] %v629, 128
        %1320 = vxpose.xlu0.b32.cont [4/16] %v633, 128
        %1321 = vxpose.xlu0.b32.cont [5/16] 0.0, 128
        %1322 = vxpose.xlu0.b32.cont [6/16] 0.0, 128
        %1323 = vxpose.xlu0.b32.cont [7/16] 0.0, 128
        %1324 = vxpose.xlu0.b32.cont [8/16] 0.0, 128
        %1325 = vxpose.xlu0.b32.cont [9/16] 0.0, 128
        %1326 = vxpose.xlu0.b32.cont [10/16] 0.0, 128
        %1327 = vxpose.xlu0.b32.cont [11/16] 0.0, 128
        %1328 = vxpose.xlu0.b32.cont [12/16] 0.0, 128
        %1329 = vxpose.xlu0.b32.cont [13/16] 0.0, 128
        %1330 = vxpose.xlu0.b32.cont [14/16] 0.0, 128
        %1331 = vxpose.xlu0.b32.cont [15/16] 0.0, 128
        %1332 = vxpose.xlu0.b32.end [16/16] 0.0, 128
        %v1333 = vpop.trf.xlu0
        %v1334 = vpop.trf.xlu0
        %v1335 = vpop.trf.xlu0
        %v1336 = vpop.trf.xlu0
        %v1337 = vpop.trf.xlu0
        %v1338 = vpop.trf.xlu0
        %v1339 = vpop.trf.xlu0
        %v1340 = vpop.trf.xlu0
        %v1341 = vpop.trf.xlu0
        %v1342 = vpop.trf.xlu0
        %v1343 = vpop.trf.xlu0
        %v1344 = vpop.trf.xlu0
        %v1345 = vpop.trf.xlu0
        %v1346 = vpop.trf.xlu0
        %v1347 = vpop.trf.xlu0
        %v1348 = vpop.trf.xlu0
        %vm1349 = vcmask 261120
        %v1351 = vsel %vm1349, %v1237, 0
        %v1354 = vsel %vm1349, %v1238, 0
        %v1357 = vsel %vm1349, %v1239, 0
        %v1360 = vsel %vm1349, %v1240, 0
        %v1363 = vsel %vm1349, %v1241, 0
        %v1366 = vsel %vm1349, %v1242, 0
        %v1369 = vsel %vm1349, %v1243, 0
        %v1372 = vsel %vm1349, %v1244, 0
        %v1375 = vsel %vm1349, %v1245, 0
        %v1378 = vsel %vm1349, %v1246, 0
        %v1381 = vsel %vm1349, %v1247, 0
        %v1384 = vsel %vm1349, %v1248, 0
        %v1387 = vsel %vm1349, %v1249, 0
        %v1390 = vsel %vm1349, %v1250, 0
        %v1393 = vsel %vm1349, %v1251, 0
        %v1396 = vsel %vm1349, %v1252, 0
        %v1399 = vsel %vm1349, %v1269, 0
        %v1402 = vsel %vm1349, %v1270, 0
        %v1405 = vsel %vm1349, %v1271, 0
        %v1408 = vsel %vm1349, %v1272, 0
        %v1411 = vsel %vm1349, %v1273, 0
        %v1414 = vsel %vm1349, %v1274, 0
        %v1417 = vsel %vm1349, %v1275, 0
        %v1420 = vsel %vm1349, %v1276, 0
        %v1423 = vsel %vm1349, %v1277, 0
        %v1426 = vsel %vm1349, %v1278, 0
        %v1429 = vsel %vm1349, %v1279, 0
        %v1432 = vsel %vm1349, %v1280, 0
        %v1435 = vsel %vm1349, %v1281, 0
        %v1438 = vsel %vm1349, %v1282, 0
        %v1441 = vsel %vm1349, %v1283, 0
        %v1444 = vsel %vm1349, %v1284, 0
        %v1447 = vsel %vm1349, %v1301, 0
        %v1450 = vsel %vm1349, %v1302, 0
        %v1453 = vsel %vm1349, %v1303, 0
        %v1456 = vsel %vm1349, %v1304, 0
        %v1459 = vsel %vm1349, %v1305, 0
        %v1462 = vsel %vm1349, %v1306, 0
        %v1465 = vsel %vm1349, %v1307, 0
        %v1468 = vsel %vm1349, %v1308, 0
        %v1471 = vsel %vm1349, %v1309, 0
        %v1474 = vsel %vm1349, %v1310, 0
        %v1477 = vsel %vm1349, %v1311, 0
        %v1480 = vsel %vm1349, %v1312, 0
        %v1483 = vsel %vm1349, %v1313, 0
        %v1486 = vsel %vm1349, %v1314, 0
        %v1489 = vsel %vm1349, %v1315, 0
        %v1492 = vsel %vm1349, %v1316, 0
        %v1495 = vsel %vm1349, %v1333, 0
        %v1498 = vsel %vm1349, %v1334, 0
        %v1501 = vsel %vm1349, %v1335, 0
        %v1504 = vsel %vm1349, %v1336, 0
        %v1507 = vsel %vm1349, %v1337, 0
        %v1510 = vsel %vm1349, %v1338, 0
        %v1513 = vsel %vm1349, %v1339, 0
        %v1516 = vsel %vm1349, %v1340, 0
        %v1519 = vsel %vm1349, %v1341, 0
        %v1522 = vsel %vm1349, %v1342, 0
        %v1525 = vsel %vm1349, %v1343, 0
        %v1528 = vsel %vm1349, %v1344, 0
        %v1531 = vsel %vm1349, %v1345, 0
        %v1534 = vsel %vm1349, %v1346, 0
        %v1537 = vsel %vm1349, %v1347, 0
        %v1540 = vsel %vm1349, %v1348, 0
        %1542 = vmatprep.subr.mxu0 0.0
        %1543 = vmatpush1.msra.mxu0 %v634
        %1544 = vmatprep.subr.mxu0 0.0
        %1545 = vmatpush1.msra.mxu0 %v635
        %1546 = vmatprep.subr.mxu0 0.0
        %1547 = vmatpush1.msra.mxu0 %v636
        %1548 = vmatprep.subr.mxu0 0.0
        %1549 = vmatpush1.msra.mxu0 %v637
        %1550 = vmatprep.subr.mxu0 0.0
        %1551 = vmatpush1.msra.mxu0 0.0
        %1552 = vmatprep.subr.mxu0 0.0
        %1553 = vmatpush1.msra.mxu0 0.0
        %1554 = vmatprep.subr.mxu0 0.0
        %1555 = vmatpush1.msra.mxu0 0.0
        %1556 = vmatprep.subr.mxu0 0.0
        %1557 = vmatpush1.msra.mxu0 0.0
        %1558 = vmatprep.subr.mxu0 0.0
        %1559 = vmatpush1.msra.mxu0 0.0
        %1560 = vmatprep.subr.mxu0 0.0
        %1561 = vmatpush1.msra.mxu0 0.0
        %1562 = vmatprep.subr.mxu0 0.0
        %1563 = vmatpush1.msra.mxu0 0.0
        %1564 = vmatprep.subr.mxu0 0.0
        %1565 = vmatpush1.msra.mxu0 0.0
        %1566 = vmatprep.subr.mxu0 0.0
        %1567 = vmatpush1.msra.mxu0 0.0
        %1568 = vmatprep.subr.mxu0 0.0
        %1569 = vmatpush1.msra.mxu0 0.0
        %1570 = vmatprep.subr.mxu0 0.0
        %1571 = vmatpush1.msra.mxu0 0.0
        %1572 = vmatprep.subr.mxu0 0.0
        %1573 = vmatpush1.msra.mxu0 0.0
        %1574 = vmatprep.subr.mxu0 0.0
        %1575 = vmatpush1.msra.mxu0 0.0
        %1576 = vmatprep.subr.mxu0 0.0
        %1577 = vmatpush1.msra.mxu0 0.0
        %1578 = vmatprep.subr.mxu0 0.0
        %1579 = vmatpush1.msra.mxu0 0.0
        %1580 = vmatprep.subr.mxu0 0.0
        %1581 = vmatpush1.msra.mxu0 0.0
        %1582 = vmatprep.subr.mxu0 0.0
        %1583 = vmatpush1.msra.mxu0 0.0
        %1584 = vmatprep.subr.mxu0 0.0
        %1585 = vmatpush1.msra.mxu0 0.0
        %1586 = vmatprep.subr.mxu0 0.0
        %1587 = vmatpush1.msra.mxu0 0.0
        %1588 = vmatprep.subr.mxu0 0.0
        %1589 = vmatpush1.msra.mxu0 0.0
        %1590 = vmatprep.subr.mxu0 0.0
        %1591 = vmatpush1.msra.mxu0 0.0
        %1592 = vmatprep.subr.mxu0 0.0
        %1593 = vmatpush1.msra.mxu0 0.0
        %1594 = vmatprep.subr.mxu0 0.0
        %1595 = vmatpush1.msra.mxu0 0.0
        %1596 = vmatprep.subr.mxu0 0.0
        %1597 = vmatpush1.msra.mxu0 0.0
        %1598 = vmatprep.subr.mxu0 0.0
        %1599 = vmatpush1.msra.mxu0 0.0
        %1600 = vmatprep.subr.mxu0 0.0
        %1601 = vmatpush1.msra.mxu0 0.0
        %1602 = vmatprep.subr.mxu0 0.0
        %1603 = vmatpush1.msra.mxu0 0.0
        %1604 = vmatprep.subr.mxu0 0.0
        %1605 = vmatpush1.msra.mxu0 0.0
        %1606 = vmatprep.mubr.f32.mxu0 0.0
        %1607 = vmatmul.mubr.f32.gmra.mrb[0].mxu0 %v1351
        %v1608 = vpop.f32.mrb[0].mxu0
        %v1609 = vadd.f32 %v903, %v1608
        %v1610 = vpop.f32.mrb[0].mxu0
        %1611 = vmatprep.mubr.f32.mxu0 0.0
        %1612 = vmatmul.mubr.f32.gmra.mrb[0].mxu0 %v1354
        %v1613 = vpop.f32.mrb[0].mxu0
        %v1614 = vadd.f32 %v908, %v1613
        %v1615 = vpop.f32.mrb[0].mxu0
        %1616 = vmatprep.mubr.f32.mxu0 0.0
        %1617 = vmatmul.mubr.f32.gmra.mrb[0].mxu0 %v1357
        %v1618 = vpop.f32.mrb[0].mxu0
        %v1619 = vadd.f32 %v913, %v1618
        %v1620 = vpop.f32.mrb[0].mxu0
        %1621 = vmatprep.mubr.f32.mxu0 0.0
        %1622 = vmatmul.mubr.f32.gmra.mrb[0].mxu0 %v1360
        %v1623 = vpop.f32.mrb[0].mxu0
        %v1624 = vadd.f32 %v918, %v1623
        %v1625 = vpop.f32.mrb[0].mxu0
        %1626 = vmatprep.mubr.f32.mxu0 0.0
        %1627 = vmatmul.mubr.f32.gmra.mrb[0].mxu0 %v1363
        %v1628 = vpop.f32.mrb[0].mxu0
        %v1629 = vadd.f32 %v923, %v1628
        %v1630 = vpop.f32.mrb[0].mxu0
        %1631 = vmatprep.mubr.f32.mxu0 0.0
        %1632 = vmatmul.mubr.f32.gmra.mrb[0].mxu0 %v1366
        %v1633 = vpop.f32.mrb[0].mxu0
        %v1634 = vadd.f32 %v928, %v1633
        %v1635 = vpop.f32.mrb[0].mxu0
        %1636 = vmatprep.mubr.f32.mxu0 0.0
        %1637 = vmatmul.mubr.f32.gmra.mrb[0].mxu0 %v1369
        %v1638 = vpop.f32.mrb[0].mxu0
        %v1639 = vadd.f32 %v933, %v1638
        %v1640 = vpop.f32.mrb[0].mxu0
        %1641 = vmatprep.mubr.f32.mxu0 0.0
        %1642 = vmatmul.mubr.f32.gmra.mrb[0].mxu0 %v1372
        %v1643 = vpop.f32.mrb[0].mxu0
        %v1644 = vadd.f32 %v938, %v1643
        %v1645 = vpop.f32.mrb[0].mxu0
        %1646 = vmatprep.mubr.f32.mxu0 0.0
        %1647 = vmatmul.mubr.f32.gmra.mrb[0].mxu0 %v1375
        %v1648 = vpop.f32.mrb[0].mxu0
        %v1649 = vadd.f32 %v943, %v1648
        %v1650 = vpop.f32.mrb[0].mxu0
        %1651 = vmatprep.mubr.f32.mxu0 0.0
        %1652 = vmatmul.mubr.f32.gmra.mrb[0].mxu0 %v1378
        %v1653 = vpop.f32.mrb[0].mxu0
        %v1654 = vadd.f32 %v948, %v1653
        %v1655 = vpop.f32.mrb[0].mxu0
        %1656 = vmatprep.mubr.f32.mxu0 0.0
        %1657 = vmatmul.mubr.f32.gmra.mrb[0].mxu0 %v1381
        %v1658 = vpop.f32.mrb[0].mxu0
        %v1659 = vadd.f32 %v953, %v1658
        %v1660 = vpop.f32.mrb[0].mxu0
        %1661 = vmatprep.mubr.f32.mxu0 0.0
        %1662 = vmatmul.mubr.f32.gmra.mrb[0].mxu0 %v1384
        %v1663 = vpop.f32.mrb[0].mxu0
        %v1664 = vadd.f32 %v958, %v1663
        %v1665 = vpop.f32.mrb[0].mxu0
        %1666 = vmatprep.mubr.f32.mxu0 0.0
        %1667 = vmatmul.mubr.f32.gmra.mrb[0].mxu0 %v1387
        %v1668 = vpop.f32.mrb[0].mxu0
        %v1669 = vadd.f32 %v963, %v1668
        %v1670 = vpop.f32.mrb[0].mxu0
        %1671 = vmatprep.mubr.f32.mxu0 0.0
        %1672 = vmatmul.mubr.f32.gmra.mrb[0].mxu0 %v1390
        %v1673 = vpop.f32.mrb[0].mxu0
        %v1674 = vadd.f32 %v968, %v1673
        %v1675 = vpop.f32.mrb[0].mxu0
        %1676 = vmatprep.mubr.f32.mxu0 0.0
        %1677 = vmatmul.mubr.f32.gmra.mrb[0].mxu0 %v1393
        %v1678 = vpop.f32.mrb[0].mxu0
        %v1679 = vadd.f32 %v973, %v1678
        %v1680 = vpop.f32.mrb[0].mxu0
        %1681 = vmatprep.mubr.f32.mxu0 0.0
        %1682 = vmatmul.mubr.f32.gmra.mrb[0].mxu0 %v1396
        %v1683 = vpop.f32.mrb[0].mxu0
        %v1684 = vadd.f32 %v978, %v1683
        %v1685 = vpop.f32.mrb[0].mxu0
        %1686 = vmatprep.mubr.f32.mxu0 0.0
        %1687 = vmatmul.mubr.f32.gmra.mrb[0].mxu0 %v1399
        %v1688 = vpop.f32.mrb[0].mxu0
        %v1689 = vadd.f32 %v983, %v1688
        %v1690 = vpop.f32.mrb[0].mxu0
        %1691 = vmatprep.mubr.f32.mxu0 0.0
        %1692 = vmatmul.mubr.f32.gmra.mrb[0].mxu0 %v1402
        %v1693 = vpop.f32.mrb[0].mxu0
        %v1694 = vadd.f32 %v988, %v1693
        %v1695 = vpop.f32.mrb[0].mxu0
        %1696 = vmatprep.mubr.f32.mxu0 0.0
        %1697 = vmatmul.mubr.f32.gmra.mrb[0].mxu0 %v1405
        %v1698 = vpop.f32.mrb[0].mxu0
        %v1699 = vadd.f32 %v993, %v1698
        %v1700 = vpop.f32.mrb[0].mxu0
        %1701 = vmatprep.mubr.f32.mxu0 0.0
        %1702 = vmatmul.mubr.f32.gmra.mrb[0].mxu0 %v1408
        %v1703 = vpop.f32.mrb[0].mxu0
        %v1704 = vadd.f32 %v998, %v1703
        %v1705 = vpop.f32.mrb[0].mxu0
        %1706 = vmatprep.mubr.f32.mxu0 0.0
        %1707 = vmatmul.mubr.f32.gmra.mrb[0].mxu0 %v1411
        %v1708 = vpop.f32.mrb[0].mxu0
        %v1709 = vadd.f32 %v1003, %v1708
        %v1710 = vpop.f32.mrb[0].mxu0
        %1711 = vmatprep.mubr.f32.mxu0 0.0
        %1712 = vmatmul.mubr.f32.gmra.mrb[0].mxu0 %v1414
        %v1713 = vpop.f32.mrb[0].mxu0
        %v1714 = vadd.f32 %v1008, %v1713
        %v1715 = vpop.f32.mrb[0].mxu0
        %1716 = vmatprep.mubr.f32.mxu0 0.0
        %1717 = vmatmul.mubr.f32.gmra.mrb[0].mxu0 %v1417
        %v1718 = vpop.f32.mrb[0].mxu0
        %v1719 = vadd.f32 %v1013, %v1718
        %v1720 = vpop.f32.mrb[0].mxu0
        %1721 = vmatprep.mubr.f32.mxu0 0.0
        %1722 = vmatmul.mubr.f32.gmra.mrb[0].mxu0 %v1420
        %v1723 = vpop.f32.mrb[0].mxu0
        %v1724 = vadd.f32 %v1018, %v1723
        %v1725 = vpop.f32.mrb[0].mxu0
        %1726 = vmatprep.mubr.f32.mxu0 0.0
        %1727 = vmatmul.mubr.f32.gmra.mrb[0].mxu0 %v1423
        %v1728 = vpop.f32.mrb[0].mxu0
        %v1729 = vadd.f32 %v1023, %v1728
        %v1730 = vpop.f32.mrb[0].mxu0
        %1731 = vmatprep.mubr.f32.mxu0 0.0
        %1732 = vmatmul.mubr.f32.gmra.mrb[0].mxu0 %v1426
        %v1733 = vpop.f32.mrb[0].mxu0
        %v1734 = vadd.f32 %v1028, %v1733
        %v1735 = vpop.f32.mrb[0].mxu0
        %1736 = vmatprep.mubr.f32.mxu0 0.0
        %1737 = vmatmul.mubr.f32.gmra.mrb[0].mxu0 %v1429
        %v1738 = vpop.f32.mrb[0].mxu0
        %v1739 = vadd.f32 %v1033, %v1738
        %v1740 = vpop.f32.mrb[0].mxu0
        %1741 = vmatprep.mubr.f32.mxu0 0.0
        %1742 = vmatmul.mubr.f32.gmra.mrb[0].mxu0 %v1432
        %v1743 = vpop.f32.mrb[0].mxu0
        %v1744 = vadd.f32 %v1038, %v1743
        %v1745 = vpop.f32.mrb[0].mxu0
        %1746 = vmatprep.mubr.f32.mxu0 0.0
        %1747 = vmatmul.mubr.f32.gmra.mrb[0].mxu0 %v1435
        %v1748 = vpop.f32.mrb[0].mxu0
        %v1749 = vadd.f32 %v1043, %v1748
        %v1750 = vpop.f32.mrb[0].mxu0
        %1751 = vmatprep.mubr.f32.mxu0 0.0
        %1752 = vmatmul.mubr.f32.gmra.mrb[0].mxu0 %v1438
        %v1753 = vpop.f32.mrb[0].mxu0
        %v1754 = vadd.f32 %v1048, %v1753
        %v1755 = vpop.f32.mrb[0].mxu0
        %1756 = vmatprep.mubr.f32.mxu0 0.0
        %1757 = vmatmul.mubr.f32.gmra.mrb[0].mxu0 %v1441
        %v1758 = vpop.f32.mrb[0].mxu0
        %v1759 = vadd.f32 %v1053, %v1758
        %v1760 = vpop.f32.mrb[0].mxu0
        %1761 = vmatprep.mubr.f32.mxu0 0.0
        %1762 = vmatmul.mubr.f32.gmra.mrb[0].mxu0 %v1444
        %v1763 = vpop.f32.mrb[0].mxu0
        %v1764 = vadd.f32 %v1058, %v1763
        %v1765 = vpop.f32.mrb[0].mxu0
        %1766 = vmatprep.mubr.f32.mxu0 0.0
        %1767 = vmatmul.mubr.f32.gmra.mrb[0].mxu0 %v1447
        %v1768 = vpop.f32.mrb[0].mxu0
        %v1769 = vadd.f32 %v1063, %v1768
        %v1770 = vpop.f32.mrb[0].mxu0
        %1771 = vmatprep.mubr.f32.mxu0 0.0
        %1772 = vmatmul.mubr.f32.gmra.mrb[0].mxu0 %v1450
        %v1773 = vpop.f32.mrb[0].mxu0
        %v1774 = vadd.f32 %v1068, %v1773
        %v1775 = vpop.f32.mrb[0].mxu0
        %1776 = vmatprep.mubr.f32.mxu0 0.0
        %1777 = vmatmul.mubr.f32.gmra.mrb[0].mxu0 %v1453
        %v1778 = vpop.f32.mrb[0].mxu0
        %v1779 = vadd.f32 %v1073, %v1778
        %v1780 = vpop.f32.mrb[0].mxu0
        %1781 = vmatprep.mubr.f32.mxu0 0.0
        %1782 = vmatmul.mubr.f32.gmra.mrb[0].mxu0 %v1456
        %v1783 = vpop.f32.mrb[0].mxu0
        %v1784 = vadd.f32 %v1078, %v1783
        %v1785 = vpop.f32.mrb[0].mxu0
        %1786 = vmatprep.mubr.f32.mxu0 0.0
        %1787 = vmatmul.mubr.f32.gmra.mrb[0].mxu0 %v1459
        %v1788 = vpop.f32.mrb[0].mxu0
        %v1789 = vadd.f32 %v1083, %v1788
        %v1790 = vpop.f32.mrb[0].mxu0
        %1791 = vmatprep.mubr.f32.mxu0 0.0
        %1792 = vmatmul.mubr.f32.gmra.mrb[0].mxu0 %v1462
        %v1793 = vpop.f32.mrb[0].mxu0
        %v1794 = vadd.f32 %v1088, %v1793
        %v1795 = vpop.f32.mrb[0].mxu0
        %1796 = vmatprep.mubr.f32.mxu0 0.0
        %1797 = vmatmul.mubr.f32.gmra.mrb[0].mxu0 %v1465
        %v1798 = vpop.f32.mrb[0].mxu0
        %v1799 = vadd.f32 %v1093, %v1798
        %v1800 = vpop.f32.mrb[0].mxu0
        %1801 = vmatprep.mubr.f32.mxu0 0.0
        %1802 = vmatmul.mubr.f32.gmra.mrb[0].mxu0 %v1468
        %v1803 = vpop.f32.mrb[0].mxu0
        %v1804 = vadd.f32 %v1098, %v1803
        %v1805 = vpop.f32.mrb[0].mxu0
        %1806 = vmatprep.mubr.f32.mxu0 0.0
        %1807 = vmatmul.mubr.f32.gmra.mrb[0].mxu0 %v1471
        %v1808 = vpop.f32.mrb[0].mxu0
        %v1809 = vadd.f32 %v1103, %v1808
        %v1810 = vpop.f32.mrb[0].mxu0
        %1811 = vmatprep.mubr.f32.mxu0 0.0
        %1812 = vmatmul.mubr.f32.gmra.mrb[0].mxu0 %v1474
        %v1813 = vpop.f32.mrb[0].mxu0
        %v1814 = vadd.f32 %v1108, %v1813
        %v1815 = vpop.f32.mrb[0].mxu0
        %1816 = vmatprep.mubr.f32.mxu0 0.0
        %1817 = vmatmul.mubr.f32.gmra.mrb[0].mxu0 %v1477
        %v1818 = vpop.f32.mrb[0].mxu0
        %v1819 = vadd.f32 %v1113, %v1818
        %v1820 = vpop.f32.mrb[0].mxu0
        %1821 = vmatprep.mubr.f32.mxu0 0.0
        %1822 = vmatmul.mubr.f32.gmra.mrb[0].mxu0 %v1480
        %v1823 = vpop.f32.mrb[0].mxu0
        %v1824 = vadd.f32 %v1118, %v1823
        %v1825 = vpop.f32.mrb[0].mxu0
        %1826 = vmatprep.mubr.f32.mxu0 0.0
        %1827 = vmatmul.mubr.f32.gmra.mrb[0].mxu0 %v1483
        %v1828 = vpop.f32.mrb[0].mxu0
        %v1829 = vadd.f32 %v1123, %v1828
        %v1830 = vpop.f32.mrb[0].mxu0
        %1831 = vmatprep.mubr.f32.mxu0 0.0
        %1832 = vmatmul.mubr.f32.gmra.mrb[0].mxu0 %v1486
        %v1833 = vpop.f32.mrb[0].mxu0
        %v1834 = vadd.f32 %v1128, %v1833
        %v1835 = vpop.f32.mrb[0].mxu0
        %1836 = vmatprep.mubr.f32.mxu0 0.0
        %1837 = vmatmul.mubr.f32.gmra.mrb[0].mxu0 %v1489
        %v1838 = vpop.f32.mrb[0].mxu0
        %v1839 = vadd.f32 %v1133, %v1838
        %v1840 = vpop.f32.mrb[0].mxu0
        %1841 = vmatprep.mubr.f32.mxu0 0.0
        %1842 = vmatmul.mubr.f32.gmra.mrb[0].mxu0 %v1492
        %v1843 = vpop.f32.mrb[0].mxu0
        %v1844 = vadd.f32 %v1138, %v1843
        %v1845 = vpop.f32.mrb[0].mxu0
        %1846 = vmatprep.mubr.f32.mxu0 0.0
        %1847 = vmatmul.mubr.f32.gmra.mrb[0].mxu0 %v1495
        %v1848 = vpop.f32.mrb[0].mxu0
        %v1849 = vadd.f32 %v1143, %v1848
        %v1850 = vpop.f32.mrb[0].mxu0
        %1851 = vmatprep.mubr.f32.mxu0 0.0
        %1852 = vmatmul.mubr.f32.gmra.mrb[0].mxu0 %v1498
        %v1853 = vpop.f32.mrb[0].mxu0
        %v1854 = vadd.f32 %v1148, %v1853
        %v1855 = vpop.f32.mrb[0].mxu0
        %1856 = vmatprep.mubr.f32.mxu0 0.0
        %1857 = vmatmul.mubr.f32.gmra.mrb[0].mxu0 %v1501
        %v1858 = vpop.f32.mrb[0].mxu0
        %v1859 = vadd.f32 %v1153, %v1858
        %v1860 = vpop.f32.mrb[0].mxu0
        %1861 = vmatprep.mubr.f32.mxu0 0.0
        %1862 = vmatmul.mubr.f32.gmra.mrb[0].mxu0 %v1504
        %v1863 = vpop.f32.mrb[0].mxu0
        %v1864 = vadd.f32 %v1158, %v1863
        %v1865 = vpop.f32.mrb[0].mxu0
        %1866 = vmatprep.mubr.f32.mxu0 0.0
        %1867 = vmatmul.mubr.f32.gmra.mrb[0].mxu0 %v1507
        %v1868 = vpop.f32.mrb[0].mxu0
        %v1869 = vadd.f32 %v1163, %v1868
        %v1870 = vpop.f32.mrb[0].mxu0
        %1871 = vmatprep.mubr.f32.mxu0 0.0
        %1872 = vmatmul.mubr.f32.gmra.mrb[0].mxu0 %v1510
        %v1873 = vpop.f32.mrb[0].mxu0
        %v1874 = vadd.f32 %v1168, %v1873
        %v1875 = vpop.f32.mrb[0].mxu0
        %1876 = vmatprep.mubr.f32.mxu0 0.0
        %1877 = vmatmul.mubr.f32.gmra.mrb[0].mxu0 %v1513
        %v1878 = vpop.f32.mrb[0].mxu0
        %v1879 = vadd.f32 %v1173, %v1878
        %v1880 = vpop.f32.mrb[0].mxu0
        %1881 = vmatprep.mubr.f32.mxu0 0.0
        %1882 = vmatmul.mubr.f32.gmra.mrb[0].mxu0 %v1516
        %v1883 = vpop.f32.mrb[0].mxu0
        %v1884 = vadd.f32 %v1178, %v1883
        %v1885 = vpop.f32.mrb[0].mxu0
        %1886 = vmatprep.mubr.f32.mxu0 0.0
        %1887 = vmatmul.mubr.f32.gmra.mrb[0].mxu0 %v1519
        %v1888 = vpop.f32.mrb[0].mxu0
        %v1889 = vadd.f32 %v1183, %v1888
        %v1890 = vpop.f32.mrb[0].mxu0
        %1891 = vmatprep.mubr.f32.mxu0 0.0
        %1892 = vmatmul.mubr.f32.gmra.mrb[0].mxu0 %v1522
        %v1893 = vpop.f32.mrb[0].mxu0
        %v1894 = vadd.f32 %v1188, %v1893
        %v1895 = vpop.f32.mrb[0].mxu0
        %1896 = vmatprep.mubr.f32.mxu0 0.0
        %1897 = vmatmul.mubr.f32.gmra.mrb[0].mxu0 %v1525
        %v1898 = vpop.f32.mrb[0].mxu0
        %v1899 = vadd.f32 %v1193, %v1898
        %v1900 = vpop.f32.mrb[0].mxu0
        %1901 = vmatprep.mubr.f32.mxu0 0.0
        %1902 = vmatmul.mubr.f32.gmra.mrb[0].mxu0 %v1528
        %v1903 = vpop.f32.mrb[0].mxu0
        %v1904 = vadd.f32 %v1198, %v1903
        %v1905 = vpop.f32.mrb[0].mxu0
        %1906 = vmatprep.mubr.f32.mxu0 0.0
        %1907 = vmatmul.mubr.f32.gmra.mrb[0].mxu0 %v1531
        %v1908 = vpop.f32.mrb[0].mxu0
        %v1909 = vadd.f32 %v1203, %v1908
        %v1910 = vpop.f32.mrb[0].mxu0
        %1911 = vmatprep.mubr.f32.mxu0 0.0
        %1912 = vmatmul.mubr.f32.gmra.mrb[0].mxu0 %v1534
        %v1913 = vpop.f32.mrb[0].mxu0
        %v1914 = vadd.f32 %v1208, %v1913
        %v1915 = vpop.f32.mrb[0].mxu0
        %1916 = vmatprep.mubr.f32.mxu0 0.0
        %1917 = vmatmul.mubr.f32.gmra.mrb[0].mxu0 %v1537
        %v1918 = vpop.f32.mrb[0].mxu0
        %v1919 = vadd.f32 %v1213, %v1918
        %v1920 = vpop.f32.mrb[0].mxu0
        %1921 = vmatprep.mubr.f32.mxu0 0.0
        %1922 = vmatmul.mubr.f32.gmra.mrb[0].mxu0 %v1540
        %v1923 = vpop.f32.mrb[0].mxu0
        %v1924 = vadd.f32 %v1218, %v1923
        %v1925 = vpop.f32.mrb[0].mxu0
        %1926 = vdwg.mxu0
        %v1927 = vld [vmem:[%s4] sm:$0x1]
        %v1929 = vlaneseq
        %v1930 = vshrl.u32 %v1929, 7
        %v1931 = vsub.s32 0, %v1930
        %v1932 = vrot.slane %v1927, %v1931
        %v1934 = vadd.f32 %v1609, %v1932
        %v1935 = vadd.f32 %v1614, %v1932
        %v1936 = vadd.f32 %v1619, %v1932
        %v1937 = vadd.f32 %v1624, %v1932
        %v1938 = vadd.f32 %v1629, %v1932
        %v1939 = vadd.f32 %v1634, %v1932
        %v1940 = vadd.f32 %v1639, %v1932
        %v1941 = vadd.f32 %v1644, %v1932
        %v1942 = vadd.f32 %v1649, %v1932
        %v1943 = vadd.f32 %v1654, %v1932
        %v1944 = vadd.f32 %v1659, %v1932
        %v1945 = vadd.f32 %v1664, %v1932
        %v1946 = vadd.f32 %v1669, %v1932
        %v1947 = vadd.f32 %v1674, %v1932
        %v1948 = vadd.f32 %v1679, %v1932
        %v1949 = vadd.f32 %v1684, %v1932
        %v1950 = vadd.f32 %v1689, %v1932
        %v1951 = vadd.f32 %v1694, %v1932
        %v1952 = vadd.f32 %v1699, %v1932
        %v1953 = vadd.f32 %v1704, %v1932
        %v1954 = vadd.f32 %v1709, %v1932
        %v1955 = vadd.f32 %v1714, %v1932
        %v1956 = vadd.f32 %v1719, %v1932
        %v1957 = vadd.f32 %v1724, %v1932
        %v1958 = vadd.f32 %v1729, %v1932
        %v1959 = vadd.f32 %v1734, %v1932
        %v1960 = vadd.f32 %v1739, %v1932
        %v1961 = vadd.f32 %v1744, %v1932
        %v1962 = vadd.f32 %v1749, %v1932
        %v1963 = vadd.f32 %v1754, %v1932
        %v1964 = vadd.f32 %v1759, %v1932
        %v1965 = vadd.f32 %v1764, %v1932
        %v1966 = vadd.f32 %v1769, %v1932
        %v1967 = vadd.f32 %v1774, %v1932
        %v1968 = vadd.f32 %v1779, %v1932
        %v1969 = vadd.f32 %v1784, %v1932
        %v1970 = vadd.f32 %v1789, %v1932
        %v1971 = vadd.f32 %v1794, %v1932
        %v1972 = vadd.f32 %v1799, %v1932
        %v1973 = vadd.f32 %v1804, %v1932
        %v1974 = vadd.f32 %v1809, %v1932
        %v1975 = vadd.f32 %v1814, %v1932
        %v1976 = vadd.f32 %v1819, %v1932
        %v1977 = vadd.f32 %v1824, %v1932
        %v1978 = vadd.f32 %v1829, %v1932
        %v1979 = vadd.f32 %v1834, %v1932
        %v1980 = vadd.f32 %v1839, %v1932
        %v1981 = vadd.f32 %v1844, %v1932
        %v1982 = vadd.f32 %v1849, %v1932
        %v1983 = vadd.f32 %v1854, %v1932
        %v1984 = vadd.f32 %v1859, %v1932
        %v1985 = vadd.f32 %v1864, %v1932
        %v1986 = vadd.f32 %v1869, %v1932
        %v1987 = vadd.f32 %v1874, %v1932
        %v1988 = vadd.f32 %v1879, %v1932
        %v1989 = vadd.f32 %v1884, %v1932
        %v1990 = vadd.f32 %v1889, %v1932
        %v1991 = vadd.f32 %v1894, %v1932
        %v1992 = vadd.f32 %v1899, %v1932
        %v1993 = vadd.f32 %v1904, %v1932
        %v1994 = vadd.f32 %v1909, %v1932
        %v1995 = vadd.f32 %v1914, %v1932
        %v1996 = vadd.f32 %v1919, %v1932
        %v1997 = vadd.f32 %v1924, %v1932
        %v1998 = vmax.f32 %v1934, 0.0
        %v1999 = vmax.f32 %v1935, 0.0
        %v2000 = vmax.f32 %v1936, 0.0
        %v2001 = vmax.f32 %v1937, 0.0
        %v2002 = vmax.f32 %v1938, 0.0
        %v2003 = vmax.f32 %v1939, 0.0
        %v2004 = vmax.f32 %v1940, 0.0
        %v2005 = vmax.f32 %v1941, 0.0
        %v2006 = vmax.f32 %v1942, 0.0
        %v2007 = vmax.f32 %v1943, 0.0
        %v2008 = vmax.f32 %v1944, 0.0
        %v2009 = vmax.f32 %v1945, 0.0
        %v2010 = vmax.f32 %v1946, 0.0
        %v2011 = vmax.f32 %v1947, 0.0
        %v2012 = vmax.f32 %v1948, 0.0
        %v2013 = vmax.f32 %v1949, 0.0
        %v2014 = vmax.f32 %v1950, 0.0
        %v2015 = vmax.f32 %v1951, 0.0
        %v2016 = vmax.f32 %v1952, 0.0
        %v2017 = vmax.f32 %v1953, 0.0
        %v2018 = vmax.f32 %v1954, 0.0
        %v2019 = vmax.f32 %v1955, 0.0
        %v2020 = vmax.f32 %v1956, 0.0
        %v2021 = vmax.f32 %v1957, 0.0
        %v2022 = vmax.f32 %v1958, 0.0
        %v2023 = vmax.f32 %v1959, 0.0
        %v2024 = vmax.f32 %v1960, 0.0
        %v2025 = vmax.f32 %v1961, 0.0
        %v2026 = vmax.f32 %v1962, 0.0
        %v2027 = vmax.f32 %v1963, 0.0
        %v2028 = vmax.f32 %v1964, 0.0
        %v2029 = vmax.f32 %v1965, 0.0
        %v2030 = vmax.f32 %v1966, 0.0
        %v2031 = vmax.f32 %v1967, 0.0
        %v2032 = vmax.f32 %v1968, 0.0
        %v2033 = vmax.f32 %v1969, 0.0
        %v2034 = vmax.f32 %v1970, 0.0
        %v2035 = vmax.f32 %v1971, 0.0
        %v2036 = vmax.f32 %v1972, 0.0
        %v2037 = vmax.f32 %v1973, 0.0
        %v2038 = vmax.f32 %v1974, 0.0
        %v2039 = vmax.f32 %v1975, 0.0
        %v2040 = vmax.f32 %v1976, 0.0
        %v2041 = vmax.f32 %v1977, 0.0
        %v2042 = vmax.f32 %v1978, 0.0
        %v2043 = vmax.f32 %v1979, 0.0
        %v2044 = vmax.f32 %v1980, 0.0
        %v2045 = vmax.f32 %v1981, 0.0
        %v2046 = vmax.f32 %v1982, 0.0
        %v2047 = vmax.f32 %v1983, 0.0
        %v2048 = vmax.f32 %v1984, 0.0
        %v2049 = vmax.f32 %v1985, 0.0
        %v2050 = vmax.f32 %v1986, 0.0
        %v2051 = vmax.f32 %v1987, 0.0
        %v2052 = vmax.f32 %v1988, 0.0
        %v2053 = vmax.f32 %v1989, 0.0
        %v2054 = vmax.f32 %v1990, 0.0
        %v2055 = vmax.f32 %v1991, 0.0
        %v2056 = vmax.f32 %v1992, 0.0
        %v2057 = vmax.f32 %v1993, 0.0
        %v2058 = vmax.f32 %v1994, 0.0
        %v2059 = vmax.f32 %v1995, 0.0
        %v2060 = vmax.f32 %v1996, 0.0
        %v2061 = vmax.f32 %v1997, 0.0
        %v2062 = vld [vmem:[%s5] sm:$0xff]
        %v2063 = vld [vmem:[%s5 + $0x8] sm:$0xff]
        %v2064 = vld [vmem:[%s5 + $0x10] sm:$0xff]
        %v2065 = vld [vmem:[%s5 + $0x18] sm:$0xff]
        %v2066 = vld [vmem:[%s5 + $0x20] sm:$0xff]
        %v2067 = vld [vmem:[%s5 + $0x28] sm:$0xff]
        %v2068 = vld [vmem:[%s5 + $0x30] sm:$0xff]
        %v2069 = vld [vmem:[%s5 + $0x38] sm:$0xff]
        %v2070 = vld [vmem:[#allocation2] sm:$0x1]
        %v2072 = vlaneseq
        %v2073 = vshrl.u32 %v2072, 7
        %v2074 = vsub.s32 0, %v2073
        %v2075 = vrot.slane %v2070, %v2074
        %vm2077 = vcmask 523264
        %v2079 = vsel %vm2077, %v1998, 0
        %v2082 = vsel %vm2077, %v1999, 0
        %v2085 = vsel %vm2077, %v2000, 0
        %v2088 = vsel %vm2077, %v2001, 0
        %v2091 = vsel %vm2077, %v2002, 0
        %v2094 = vsel %vm2077, %v2003, 0
        %v2097 = vsel %vm2077, %v2004, 0
        %v2100 = vsel %vm2077, %v2005, 0
        %v2103 = vsel %vm2077, %v2006, 0
        %v2106 = vsel %vm2077, %v2007, 0
        %v2109 = vsel %vm2077, %v2008, 0
        %v2112 = vsel %vm2077, %v2009, 0
        %v2115 = vsel %vm2077, %v2010, 0
        %v2118 = vsel %vm2077, %v2011, 0
        %v2121 = vsel %vm2077, %v2012, 0
        %v2124 = vsel %vm2077, %v2013, 0
        %v2127 = vsel %vm2077, %v2014, 0
        %v2130 = vsel %vm2077, %v2015, 0
        %v2133 = vsel %vm2077, %v2016, 0
        %v2136 = vsel %vm2077, %v2017, 0
        %v2139 = vsel %vm2077, %v2018, 0
        %v2142 = vsel %vm2077, %v2019, 0
        %v2145 = vsel %vm2077, %v2020, 0
        %v2148 = vsel %vm2077, %v2021, 0
        %v2151 = vsel %vm2077, %v2022, 0
        %v2154 = vsel %vm2077, %v2023, 0
        %v2157 = vsel %vm2077, %v2024, 0
        %v2160 = vsel %vm2077, %v2025, 0
        %v2163 = vsel %vm2077, %v2026, 0
        %v2166 = vsel %vm2077, %v2027, 0
        %v2169 = vsel %vm2077, %v2028, 0
        %v2172 = vsel %vm2077, %v2029, 0
        %v2175 = vsel %vm2077, %v2030, 0
        %v2178 = vsel %vm2077, %v2031, 0
        %v2181 = vsel %vm2077, %v2032, 0
        %v2184 = vsel %vm2077, %v2033, 0
        %v2187 = vsel %vm2077, %v2034, 0
        %v2190 = vsel %vm2077, %v2035, 0
        %v2193 = vsel %vm2077, %v2036, 0
        %v2196 = vsel %vm2077, %v2037, 0
        %v2199 = vsel %vm2077, %v2038, 0
        %v2202 = vsel %vm2077, %v2039, 0
        %v2205 = vsel %vm2077, %v2040, 0
        %v2208 = vsel %vm2077, %v2041, 0
        %v2211 = vsel %vm2077, %v2042, 0
        %v2214 = vsel %vm2077, %v2043, 0
        %v2217 = vsel %vm2077, %v2044, 0
        %v2220 = vsel %vm2077, %v2045, 0
        %v2223 = vsel %vm2077, %v2046, 0
        %v2226 = vsel %vm2077, %v2047, 0
        %v2229 = vsel %vm2077, %v2048, 0
        %v2232 = vsel %vm2077, %v2049, 0
        %v2235 = vsel %vm2077, %v2050, 0
        %v2238 = vsel %vm2077, %v2051, 0
        %v2241 = vsel %vm2077, %v2052, 0
        %v2244 = vsel %vm2077, %v2053, 0
        %v2247 = vsel %vm2077, %v2054, 0
        %v2250 = vsel %vm2077, %v2055, 0
        %v2253 = vsel %vm2077, %v2056, 0
        %v2256 = vsel %vm2077, %v2057, 0
        %v2259 = vsel %vm2077, %v2058, 0
        %v2262 = vsel %vm2077, %v2059, 0
        %v2265 = vsel %vm2077, %v2060, 0
        %v2268 = vsel %vm2077, %v2061, 0
        %2270 = vmatprep.subr.mxu0 0.0
        %2271 = vmatpush1.msra.mxu0 %v2062
        %2272 = vmatprep.subr.mxu0 0.0
        %2273 = vmatpush1.msra.mxu0 %v2063
        %2274 = vmatprep.subr.mxu0 0.0
        %2275 = vmatpush1.msra.mxu0 %v2064
        %2276 = vmatprep.subr.mxu0 0.0
        %2277 = vmatpush1.msra.mxu0 %v2065
        %2278 = vmatprep.subr.mxu0 0.0
        %2279 = vmatpush1.msra.mxu0 %v2066
        %2280 = vmatprep.subr.mxu0 0.0
        %2281 = vmatpush1.msra.mxu0 %v2067
        %2282 = vmatprep.subr.mxu0 0.0
        %2283 = vmatpush1.msra.mxu0 %v2068
        %2284 = vmatprep.subr.mxu0 0.0
        %2285 = vmatpush1.msra.mxu0 %v2069
        %2286 = vmatprep.subr.mxu0 0.0
        %2287 = vmatpush1.msra.mxu0 0.0
        %2288 = vmatprep.subr.mxu0 0.0
        %2289 = vmatpush1.msra.mxu0 0.0
        %2290 = vmatprep.subr.mxu0 0.0
        %2291 = vmatpush1.msra.mxu0 0.0
        %2292 = vmatprep.subr.mxu0 0.0
        %2293 = vmatpush1.msra.mxu0 0.0
        %2294 = vmatprep.subr.mxu0 0.0
        %2295 = vmatpush1.msra.mxu0 0.0
        %2296 = vmatprep.subr.mxu0 0.0
        %2297 = vmatpush1.msra.mxu0 0.0
        %2298 = vmatprep.subr.mxu0 0.0
        %2299 = vmatpush1.msra.mxu0 0.0
        %2300 = vmatprep.subr.mxu0 0.0
        %2301 = vmatpush1.msra.mxu0 0.0
        %2302 = vmatprep.subr.mxu0 0.0
        %2303 = vmatpush1.msra.mxu0 0.0
        %2304 = vmatprep.subr.mxu0 0.0
        %2305 = vmatpush1.msra.mxu0 0.0
        %2306 = vmatprep.subr.mxu0 0.0
        %2307 = vmatpush1.msra.mxu0 0.0
        %2308 = vmatprep.subr.mxu0 0.0
        %2309 = vmatpush1.msra.mxu0 0.0
        %2310 = vmatprep.subr.mxu0 0.0
        %2311 = vmatpush1.msra.mxu0 0.0
        %2312 = vmatprep.subr.mxu0 0.0
        %2313 = vmatpush1.msra.mxu0 0.0
        %2314 = vmatprep.subr.mxu0 0.0
        %2315 = vmatpush1.msra.mxu0 0.0
        %2316 = vmatprep.subr.mxu0 0.0
        %2317 = vmatpush1.msra.mxu0 0.0
        %2318 = vmatprep.subr.mxu0 0.0
        %2319 = vmatpush1.msra.mxu0 0.0
        %2320 = vmatprep.subr.mxu0 0.0
        %2321 = vmatpush1.msra.mxu0 0.0
        %2322 = vmatprep.subr.mxu0 0.0
        %2323 = vmatpush1.msra.mxu0 0.0
        %2324 = vmatprep.subr.mxu0 0.0
        %2325 = vmatpush1.msra.mxu0 0.0
        %2326 = vmatprep.subr.mxu0 0.0
        %2327 = vmatpush1.msra.mxu0 0.0
        %2328 = vmatprep.subr.mxu0 0.0
        %2329 = vmatpush1.msra.mxu0 0.0
        %2330 = vmatprep.subr.mxu0 0.0
        %2331 = vmatpush1.msra.mxu0 0.0
        %2332 = vmatprep.subr.mxu0 0.0
        %2333 = vmatpush1.msra.mxu0 0.0
        %2334 = vmatprep.mubr.f32.mxu0 0.0
        %2335 = vmatmul.mubr.f32.gmra.mrb[0].mxu0 %v2079
        %v2336 = vpop.f32.mrb[0].mxu0
        %v2337 = vadd.f32 %v2075, %v2336
        %v2338 = vpop.f32.mrb[0].mxu0
        %2339 = vmatprep.mubr.f32.mxu0 0.0
        %2340 = vmatmul.mubr.f32.gmra.mrb[0].mxu0 %v2082
        %v2341 = vpop.f32.mrb[0].mxu0
        %v2342 = vadd.f32 %v2075, %v2341
        %v2343 = vpop.f32.mrb[0].mxu0
        %2344 = vmatprep.mubr.f32.mxu0 0.0
        %2345 = vmatmul.mubr.f32.gmra.mrb[0].mxu0 %v2085
        %v2346 = vpop.f32.mrb[0].mxu0
        %v2347 = vadd.f32 %v2075, %v2346
        %v2348 = vpop.f32.mrb[0].mxu0
        %2349 = vmatprep.mubr.f32.mxu0 0.0
        %2350 = vmatmul.mubr.f32.gmra.mrb[0].mxu0 %v2088
        %v2351 = vpop.f32.mrb[0].mxu0
        %v2352 = vadd.f32 %v2075, %v2351
        %v2353 = vpop.f32.mrb[0].mxu0
        %2354 = vmatprep.mubr.f32.mxu0 0.0
        %2355 = vmatmul.mubr.f32.gmra.mrb[0].mxu0 %v2091
        %v2356 = vpop.f32.mrb[0].mxu0
        %v2357 = vadd.f32 %v2075, %v2356
        %v2358 = vpop.f32.mrb[0].mxu0
        %2359 = vmatprep.mubr.f32.mxu0 0.0
        %2360 = vmatmul.mubr.f32.gmra.mrb[0].mxu0 %v2094
        %v2361 = vpop.f32.mrb[0].mxu0
        %v2362 = vadd.f32 %v2075, %v2361
        %v2363 = vpop.f32.mrb[0].mxu0
        %2364 = vmatprep.mubr.f32.mxu0 0.0
        %2365 = vmatmul.mubr.f32.gmra.mrb[0].mxu0 %v2097
        %v2366 = vpop.f32.mrb[0].mxu0
        %v2367 = vadd.f32 %v2075, %v2366
        %v2368 = vpop.f32.mrb[0].mxu0
        %2369 = vmatprep.mubr.f32.mxu0 0.0
        %2370 = vmatmul.mubr.f32.gmra.mrb[0].mxu0 %v2100
        %v2371 = vpop.f32.mrb[0].mxu0
        %v2372 = vadd.f32 %v2075, %v2371
        %v2373 = vpop.f32.mrb[0].mxu0
        %2374 = vmatprep.mubr.f32.mxu0 0.0
        %2375 = vmatmul.mubr.f32.gmra.mrb[0].mxu0 %v2103
        %v2376 = vpop.f32.mrb[0].mxu0
        %v2377 = vadd.f32 %v2075, %v2376
        %v2378 = vpop.f32.mrb[0].mxu0
        %2379 = vmatprep.mubr.f32.mxu0 0.0
        %2380 = vmatmul.mubr.f32.gmra.mrb[0].mxu0 %v2106
        %v2381 = vpop.f32.mrb[0].mxu0
        %v2382 = vadd.f32 %v2075, %v2381
        %v2383 = vpop.f32.mrb[0].mxu0
        %2384 = vmatprep.mubr.f32.mxu0 0.0
        %2385 = vmatmul.mubr.f32.gmra.mrb[0].mxu0 %v2109
        %v2386 = vpop.f32.mrb[0].mxu0
        %v2387 = vadd.f32 %v2075, %v2386
        %v2388 = vpop.f32.mrb[0].mxu0
        %2389 = vmatprep.mubr.f32.mxu0 0.0
        %2390 = vmatmul.mubr.f32.gmra.mrb[0].mxu0 %v2112
        %v2391 = vpop.f32.mrb[0].mxu0
        %v2392 = vadd.f32 %v2075, %v2391
        %v2393 = vpop.f32.mrb[0].mxu0
        %2394 = vmatprep.mubr.f32.mxu0 0.0
        %2395 = vmatmul.mubr.f32.gmra.mrb[0].mxu0 %v2115
        %v2396 = vpop.f32.mrb[0].mxu0
        %v2397 = vadd.f32 %v2075, %v2396
        %v2398 = vpop.f32.mrb[0].mxu0
        %2399 = vmatprep.mubr.f32.mxu0 0.0
        %2400 = vmatmul.mubr.f32.gmra.mrb[0].mxu0 %v2118
        %v2401 = vpop.f32.mrb[0].mxu0
        %v2402 = vadd.f32 %v2075, %v2401
        %v2403 = vpop.f32.mrb[0].mxu0
        %2404 = vmatprep.mubr.f32.mxu0 0.0
        %2405 = vmatmul.mubr.f32.gmra.mrb[0].mxu0 %v2121
        %v2406 = vpop.f32.mrb[0].mxu0
        %v2407 = vadd.f32 %v2075, %v2406
        %v2408 = vpop.f32.mrb[0].mxu0
        %2409 = vmatprep.mubr.f32.mxu0 0.0
        %2410 = vmatmul.mubr.f32.gmra.mrb[0].mxu0 %v2124
        %v2411 = vpop.f32.mrb[0].mxu0
        %v2412 = vadd.f32 %v2075, %v2411
        %v2413 = vpop.f32.mrb[0].mxu0
        %2414 = vmatprep.mubr.f32.mxu0 0.0
        %2415 = vmatmul.mubr.f32.gmra.mrb[0].mxu0 %v2127
        %v2416 = vpop.f32.mrb[0].mxu0
        %v2417 = vadd.f32 %v2075, %v2416
        %v2418 = vpop.f32.mrb[0].mxu0
        %2419 = vmatprep.mubr.f32.mxu0 0.0
        %2420 = vmatmul.mubr.f32.gmra.mrb[0].mxu0 %v2130
        %v2421 = vpop.f32.mrb[0].mxu0
        %v2422 = vadd.f32 %v2075, %v2421
        %v2423 = vpop.f32.mrb[0].mxu0
        %2424 = vmatprep.mubr.f32.mxu0 0.0
        %2425 = vmatmul.mubr.f32.gmra.mrb[0].mxu0 %v2133
        %v2426 = vpop.f32.mrb[0].mxu0
        %v2427 = vadd.f32 %v2075, %v2426
        %v2428 = vpop.f32.mrb[0].mxu0
        %2429 = vmatprep.mubr.f32.mxu0 0.0
        %2430 = vmatmul.mubr.f32.gmra.mrb[0].mxu0 %v2136
        %v2431 = vpop.f32.mrb[0].mxu0
        %v2432 = vadd.f32 %v2075, %v2431
        %v2433 = vpop.f32.mrb[0].mxu0
        %2434 = vmatprep.mubr.f32.mxu0 0.0
        %2435 = vmatmul.mubr.f32.gmra.mrb[0].mxu0 %v2139
        %v2436 = vpop.f32.mrb[0].mxu0
        %v2437 = vadd.f32 %v2075, %v2436
        %v2438 = vpop.f32.mrb[0].mxu0
        %2439 = vmatprep.mubr.f32.mxu0 0.0
        %2440 = vmatmul.mubr.f32.gmra.mrb[0].mxu0 %v2142
        %v2441 = vpop.f32.mrb[0].mxu0
        %v2442 = vadd.f32 %v2075, %v2441
        %v2443 = vpop.f32.mrb[0].mxu0
        %2444 = vmatprep.mubr.f32.mxu0 0.0
        %2445 = vmatmul.mubr.f32.gmra.mrb[0].mxu0 %v2145
        %v2446 = vpop.f32.mrb[0].mxu0
        %v2447 = vadd.f32 %v2075, %v2446
        %v2448 = vpop.f32.mrb[0].mxu0
        %2449 = vmatprep.mubr.f32.mxu0 0.0
        %2450 = vmatmul.mubr.f32.gmra.mrb[0].mxu0 %v2148
        %v2451 = vpop.f32.mrb[0].mxu0
        %v2452 = vadd.f32 %v2075, %v2451
        %v2453 = vpop.f32.mrb[0].mxu0
        %2454 = vmatprep.mubr.f32.mxu0 0.0
        %2455 = vmatmul.mubr.f32.gmra.mrb[0].mxu0 %v2151
        %v2456 = vpop.f32.mrb[0].mxu0
        %v2457 = vadd.f32 %v2075, %v2456
        %v2458 = vpop.f32.mrb[0].mxu0
        %2459 = vmatprep.mubr.f32.mxu0 0.0
        %2460 = vmatmul.mubr.f32.gmra.mrb[0].mxu0 %v2154
        %v2461 = vpop.f32.mrb[0].mxu0
        %v2462 = vadd.f32 %v2075, %v2461
        %v2463 = vpop.f32.mrb[0].mxu0
        %2464 = vmatprep.mubr.f32.mxu0 0.0
        %2465 = vmatmul.mubr.f32.gmra.mrb[0].mxu0 %v2157
        %v2466 = vpop.f32.mrb[0].mxu0
        %v2467 = vadd.f32 %v2075, %v2466
        %v2468 = vpop.f32.mrb[0].mxu0
        %2469 = vmatprep.mubr.f32.mxu0 0.0
        %2470 = vmatmul.mubr.f32.gmra.mrb[0].mxu0 %v2160
        %v2471 = vpop.f32.mrb[0].mxu0
        %v2472 = vadd.f32 %v2075, %v2471
        %v2473 = vpop.f32.mrb[0].mxu0
        %2474 = vmatprep.mubr.f32.mxu0 0.0
        %2475 = vmatmul.mubr.f32.gmra.mrb[0].mxu0 %v2163
        %v2476 = vpop.f32.mrb[0].mxu0
        %v2477 = vadd.f32 %v2075, %v2476
        %v2478 = vpop.f32.mrb[0].mxu0
        %2479 = vmatprep.mubr.f32.mxu0 0.0
        %2480 = vmatmul.mubr.f32.gmra.mrb[0].mxu0 %v2166
        %v2481 = vpop.f32.mrb[0].mxu0
        %v2482 = vadd.f32 %v2075, %v2481
        %v2483 = vpop.f32.mrb[0].mxu0
        %2484 = vmatprep.mubr.f32.mxu0 0.0
        %2485 = vmatmul.mubr.f32.gmra.mrb[0].mxu0 %v2169
        %v2486 = vpop.f32.mrb[0].mxu0
        %v2487 = vadd.f32 %v2075, %v2486
        %v2488 = vpop.f32.mrb[0].mxu0
        %2489 = vmatprep.mubr.f32.mxu0 0.0
        %2490 = vmatmul.mubr.f32.gmra.mrb[0].mxu0 %v2172
        %v2491 = vpop.f32.mrb[0].mxu0
        %v2492 = vadd.f32 %v2075, %v2491
        %v2493 = vpop.f32.mrb[0].mxu0
        %2494 = vmatprep.mubr.f32.mxu0 0.0
        %2495 = vmatmul.mubr.f32.gmra.mrb[0].mxu0 %v2175
        %v2496 = vpop.f32.mrb[0].mxu0
        %v2497 = vadd.f32 %v2075, %v2496
        %v2498 = vpop.f32.mrb[0].mxu0
        %2499 = vmatprep.mubr.f32.mxu0 0.0
        %2500 = vmatmul.mubr.f32.gmra.mrb[0].mxu0 %v2178
        %v2501 = vpop.f32.mrb[0].mxu0
        %v2502 = vadd.f32 %v2075, %v2501
        %v2503 = vpop.f32.mrb[0].mxu0
        %2504 = vmatprep.mubr.f32.mxu0 0.0
        %2505 = vmatmul.mubr.f32.gmra.mrb[0].mxu0 %v2181
        %v2506 = vpop.f32.mrb[0].mxu0
        %v2507 = vadd.f32 %v2075, %v2506
        %v2508 = vpop.f32.mrb[0].mxu0
        %2509 = vmatprep.mubr.f32.mxu0 0.0
        %2510 = vmatmul.mubr.f32.gmra.mrb[0].mxu0 %v2184
        %v2511 = vpop.f32.mrb[0].mxu0
        %v2512 = vadd.f32 %v2075, %v2511
        %v2513 = vpop.f32.mrb[0].mxu0
        %2514 = vmatprep.mubr.f32.mxu0 0.0
        %2515 = vmatmul.mubr.f32.gmra.mrb[0].mxu0 %v2187
        %v2516 = vpop.f32.mrb[0].mxu0
        %v2517 = vadd.f32 %v2075, %v2516
        %v2518 = vpop.f32.mrb[0].mxu0
        %2519 = vmatprep.mubr.f32.mxu0 0.0
        %2520 = vmatmul.mubr.f32.gmra.mrb[0].mxu0 %v2190
        %v2521 = vpop.f32.mrb[0].mxu0
        %v2522 = vadd.f32 %v2075, %v2521
        %v2523 = vpop.f32.mrb[0].mxu0
        %2524 = vmatprep.mubr.f32.mxu0 0.0
        %2525 = vmatmul.mubr.f32.gmra.mrb[0].mxu0 %v2193
        %v2526 = vpop.f32.mrb[0].mxu0
        %v2527 = vadd.f32 %v2075, %v2526
        %v2528 = vpop.f32.mrb[0].mxu0
        %2529 = vmatprep.mubr.f32.mxu0 0.0
        %2530 = vmatmul.mubr.f32.gmra.mrb[0].mxu0 %v2196
        %v2531 = vpop.f32.mrb[0].mxu0
        %v2532 = vadd.f32 %v2075, %v2531
        %v2533 = vpop.f32.mrb[0].mxu0
        %2534 = vmatprep.mubr.f32.mxu0 0.0
        %2535 = vmatmul.mubr.f32.gmra.mrb[0].mxu0 %v2199
        %v2536 = vpop.f32.mrb[0].mxu0
        %v2537 = vadd.f32 %v2075, %v2536
        %v2538 = vpop.f32.mrb[0].mxu0
        %2539 = vmatprep.mubr.f32.mxu0 0.0
        %2540 = vmatmul.mubr.f32.gmra.mrb[0].mxu0 %v2202
        %v2541 = vpop.f32.mrb[0].mxu0
        %v2542 = vadd.f32 %v2075, %v2541
        %v2543 = vpop.f32.mrb[0].mxu0
        %2544 = vmatprep.mubr.f32.mxu0 0.0
        %2545 = vmatmul.mubr.f32.gmra.mrb[0].mxu0 %v2205
        %v2546 = vpop.f32.mrb[0].mxu0
        %v2547 = vadd.f32 %v2075, %v2546
        %v2548 = vpop.f32.mrb[0].mxu0
        %2549 = vmatprep.mubr.f32.mxu0 0.0
        %2550 = vmatmul.mubr.f32.gmra.mrb[0].mxu0 %v2208
        %v2551 = vpop.f32.mrb[0].mxu0
        %v2552 = vadd.f32 %v2075, %v2551
        %v2553 = vpop.f32.mrb[0].mxu0
        %2554 = vmatprep.mubr.f32.mxu0 0.0
        %2555 = vmatmul.mubr.f32.gmra.mrb[0].mxu0 %v2211
        %v2556 = vpop.f32.mrb[0].mxu0
        %v2557 = vadd.f32 %v2075, %v2556
        %v2558 = vpop.f32.mrb[0].mxu0
        %2559 = vmatprep.mubr.f32.mxu0 0.0
        %2560 = vmatmul.mubr.f32.gmra.mrb[0].mxu0 %v2214
        %v2561 = vpop.f32.mrb[0].mxu0
        %v2562 = vadd.f32 %v2075, %v2561
        %v2563 = vpop.f32.mrb[0].mxu0
        %2564 = vmatprep.mubr.f32.mxu0 0.0
        %2565 = vmatmul.mubr.f32.gmra.mrb[0].mxu0 %v2217
        %v2566 = vpop.f32.mrb[0].mxu0
        %v2567 = vadd.f32 %v2075, %v2566
        %v2568 = vpop.f32.mrb[0].mxu0
        %2569 = vmatprep.mubr.f32.mxu0 0.0
        %2570 = vmatmul.mubr.f32.gmra.mrb[0].mxu0 %v2220
        %v2571 = vpop.f32.mrb[0].mxu0
        %v2572 = vadd.f32 %v2075, %v2571
        %v2573 = vpop.f32.mrb[0].mxu0
        %2574 = vmatprep.mubr.f32.mxu0 0.0
        %2575 = vmatmul.mubr.f32.gmra.mrb[0].mxu0 %v2223
        %v2576 = vpop.f32.mrb[0].mxu0
        %v2577 = vadd.f32 %v2075, %v2576
        %v2578 = vpop.f32.mrb[0].mxu0
        %2579 = vmatprep.mubr.f32.mxu0 0.0
        %2580 = vmatmul.mubr.f32.gmra.mrb[0].mxu0 %v2226
        %v2581 = vpop.f32.mrb[0].mxu0
        %v2582 = vadd.f32 %v2075, %v2581
        %v2583 = vpop.f32.mrb[0].mxu0
        %2584 = vmatprep.mubr.f32.mxu0 0.0
        %2585 = vmatmul.mubr.f32.gmra.mrb[0].mxu0 %v2229
        %v2586 = vpop.f32.mrb[0].mxu0
        %v2587 = vadd.f32 %v2075, %v2586
        %v2588 = vpop.f32.mrb[0].mxu0
        %2589 = vmatprep.mubr.f32.mxu0 0.0
        %2590 = vmatmul.mubr.f32.gmra.mrb[0].mxu0 %v2232
        %v2591 = vpop.f32.mrb[0].mxu0
        %v2592 = vadd.f32 %v2075, %v2591
        %v2593 = vpop.f32.mrb[0].mxu0
        %2594 = vmatprep.mubr.f32.mxu0 0.0
        %2595 = vmatmul.mubr.f32.gmra.mrb[0].mxu0 %v2235
        %v2596 = vpop.f32.mrb[0].mxu0
        %v2597 = vadd.f32 %v2075, %v2596
        %v2598 = vpop.f32.mrb[0].mxu0
        %2599 = vmatprep.mubr.f32.mxu0 0.0
        %2600 = vmatmul.mubr.f32.gmra.mrb[0].mxu0 %v2238
        %v2601 = vpop.f32.mrb[0].mxu0
        %v2602 = vadd.f32 %v2075, %v2601
        %v2603 = vpop.f32.mrb[0].mxu0
        %2604 = vmatprep.mubr.f32.mxu0 0.0
        %2605 = vmatmul.mubr.f32.gmra.mrb[0].mxu0 %v2241
        %v2606 = vpop.f32.mrb[0].mxu0
        %v2607 = vadd.f32 %v2075, %v2606
        %v2608 = vpop.f32.mrb[0].mxu0
        %2609 = vmatprep.mubr.f32.mxu0 0.0
        %2610 = vmatmul.mubr.f32.gmra.mrb[0].mxu0 %v2244
        %v2611 = vpop.f32.mrb[0].mxu0
        %v2612 = vadd.f32 %v2075, %v2611
        %v2613 = vpop.f32.mrb[0].mxu0
        %2614 = vmatprep.mubr.f32.mxu0 0.0
        %2615 = vmatmul.mubr.f32.gmra.mrb[0].mxu0 %v2247
        %v2616 = vpop.f32.mrb[0].mxu0
        %v2617 = vadd.f32 %v2075, %v2616
        %v2618 = vpop.f32.mrb[0].mxu0
        %2619 = vmatprep.mubr.f32.mxu0 0.0
        %2620 = vmatmul.mubr.f32.gmra.mrb[0].mxu0 %v2250
        %v2621 = vpop.f32.mrb[0].mxu0
        %v2622 = vadd.f32 %v2075, %v2621
        %v2623 = vpop.f32.mrb[0].mxu0
        %2624 = vmatprep.mubr.f32.mxu0 0.0
        %2625 = vmatmul.mubr.f32.gmra.mrb[0].mxu0 %v2253
        %v2626 = vpop.f32.mrb[0].mxu0
        %v2627 = vadd.f32 %v2075, %v2626
        %v2628 = vpop.f32.mrb[0].mxu0
        %2629 = vmatprep.mubr.f32.mxu0 0.0
        %2630 = vmatmul.mubr.f32.gmra.mrb[0].mxu0 %v2256
        %v2631 = vpop.f32.mrb[0].mxu0
        %v2632 = vadd.f32 %v2075, %v2631
        %v2633 = vpop.f32.mrb[0].mxu0
        %2634 = vmatprep.mubr.f32.mxu0 0.0
        %2635 = vmatmul.mubr.f32.gmra.mrb[0].mxu0 %v2259
        %v2636 = vpop.f32.mrb[0].mxu0
        %v2637 = vadd.f32 %v2075, %v2636
        %v2638 = vpop.f32.mrb[0].mxu0
        %2639 = vmatprep.mubr.f32.mxu0 0.0
        %2640 = vmatmul.mubr.f32.gmra.mrb[0].mxu0 %v2262
        %v2641 = vpop.f32.mrb[0].mxu0
        %v2642 = vadd.f32 %v2075, %v2641
        %v2643 = vpop.f32.mrb[0].mxu0
        %2644 = vmatprep.mubr.f32.mxu0 0.0
        %2645 = vmatmul.mubr.f32.gmra.mrb[0].mxu0 %v2265
        %v2646 = vpop.f32.mrb[0].mxu0
        %v2647 = vadd.f32 %v2075, %v2646
        %v2648 = vpop.f32.mrb[0].mxu0
        %2649 = vmatprep.mubr.f32.mxu0 0.0
        %2650 = vmatmul.mubr.f32.gmra.mrb[0].mxu0 %v2268
        %v2651 = vpop.f32.mrb[0].mxu0
        %v2652 = vadd.f32 %v2075, %v2651
        %v2653 = vpop.f32.mrb[0].mxu0
        %2654 = vdwg.mxu0
        %vm2655 = vcmask 7168
        %2656 = vst.msk [vmem:[%s542] sm:$0xff] %vm2655, %v2337
        %2657 = vst.msk [vmem:[%s542 + $0x8] sm:$0xff] %vm2655, %v2342
        %2658 = vst.msk [vmem:[%s542 + $0x10] sm:$0xff] %vm2655, %v2347
        %2659 = vst.msk [vmem:[%s542 + $0x18] sm:$0xff] %vm2655, %v2352
        %2660 = vst.msk [vmem:[%s542 + $0x20] sm:$0xff] %vm2655, %v2357
        %2661 = vst.msk [vmem:[%s542 + $0x28] sm:$0xff] %vm2655, %v2362
        %2662 = vst.msk [vmem:[%s542 + $0x30] sm:$0xff] %vm2655, %v2367
        %2663 = vst.msk [vmem:[%s542 + $0x38] sm:$0xff] %vm2655, %v2372
        %2664 = vst.msk [vmem:[%s542 + $0x40] sm:$0xff] %vm2655, %v2377
        %2665 = vst.msk [vmem:[%s542 + $0x48] sm:$0xff] %vm2655, %v2382
        %2666 = vst.msk [vmem:[%s542 + $0x50] sm:$0xff] %vm2655, %v2387
        %2667 = vst.msk [vmem:[%s542 + $0x58] sm:$0xff] %vm2655, %v2392
        %2668 = vst.msk [vmem:[%s542 + $0x60] sm:$0xff] %vm2655, %v2397
        %2669 = vst.msk [vmem:[%s542 + $0x68] sm:$0xff] %vm2655, %v2402
        %2670 = vst.msk [vmem:[%s542 + $0x70] sm:$0xff] %vm2655, %v2407
        %2671 = vst.msk [vmem:[%s542 + $0x78] sm:$0xff] %vm2655, %v2412
        %2672 = vst.msk [vmem:[%s542 + $0x80] sm:$0xff] %vm2655, %v2417
        %2673 = vst.msk [vmem:[%s542 + $0x88] sm:$0xff] %vm2655, %v2422
        %2674 = vst.msk [vmem:[%s542 + $0x90] sm:$0xff] %vm2655, %v2427
        %2675 = vst.msk [vmem:[%s542 + $0x98] sm:$0xff] %vm2655, %v2432
        %2676 = vst.msk [vmem:[%s542 + $0xa0] sm:$0xff] %vm2655, %v2437
        %2677 = vst.msk [vmem:[%s542 + $0xa8] sm:$0xff] %vm2655, %v2442
        %2678 = vst.msk [vmem:[%s542 + $0xb0] sm:$0xff] %vm2655, %v2447
        %2679 = vst.msk [vmem:[%s542 + $0xb8] sm:$0xff] %vm2655, %v2452
        %2680 = vst.msk [vmem:[%s542 + $0xc0] sm:$0xff] %vm2655, %v2457
        %2681 = vst.msk [vmem:[%s542 + $0xc8] sm:$0xff] %vm2655, %v2462
        %2682 = vst.msk [vmem:[%s542 + $0xd0] sm:$0xff] %vm2655, %v2467
        %2683 = vst.msk [vmem:[%s542 + $0xd8] sm:$0xff] %vm2655, %v2472
        %2684 = vst.msk [vmem:[%s542 + $0xe0] sm:$0xff] %vm2655, %v2477
        %2685 = vst.msk [vmem:[%s542 + $0xe8] sm:$0xff] %vm2655, %v2482
        %2686 = vst.msk [vmem:[%s542 + $0xf0] sm:$0xff] %vm2655, %v2487
        %2687 = vst.msk [vmem:[%s542 + $0xf8] sm:$0xff] %vm2655, %v2492
        %2688 = vst.msk [vmem:[%s542 + $0x100] sm:$0xff] %vm2655, %v2497
        %2689 = vst.msk [vmem:[%s542 + $0x108] sm:$0xff] %vm2655, %v2502
        %2690 = vst.msk [vmem:[%s542 + $0x110] sm:$0xff] %vm2655, %v2507
        %2691 = vst.msk [vmem:[%s542 + $0x118] sm:$0xff] %vm2655, %v2512
        %2692 = vst.msk [vmem:[%s542 + $0x120] sm:$0xff] %vm2655, %v2517
        %2693 = vst.msk [vmem:[%s542 + $0x128] sm:$0xff] %vm2655, %v2522
        %2694 = vst.msk [vmem:[%s542 + $0x130] sm:$0xff] %vm2655, %v2527
        %2695 = vst.msk [vmem:[%s542 + $0x138] sm:$0xff] %vm2655, %v2532
        %2696 = vst.msk [vmem:[%s542 + $0x140] sm:$0xff] %vm2655, %v2537
        %2697 = vst.msk [vmem:[%s542 + $0x148] sm:$0xff] %vm2655, %v2542
        %2698 = vst.msk [vmem:[%s542 + $0x150] sm:$0xff] %vm2655, %v2547
        %2699 = vst.msk [vmem:[%s542 + $0x158] sm:$0xff] %vm2655, %v2552
        %2700 = vst.msk [vmem:[%s542 + $0x160] sm:$0xff] %vm2655, %v2557
        %2701 = vst.msk [vmem:[%s542 + $0x168] sm:$0xff] %vm2655, %v2562
        %2702 = vst.msk [vmem:[%s542 + $0x170] sm:$0xff] %vm2655, %v2567
        %2703 = vst.msk [vmem:[%s542 + $0x178] sm:$0xff] %vm2655, %v2572
        %2704 = vst.msk [vmem:[%s542 + $0x180] sm:$0xff] %vm2655, %v2577
        %2705 = vst.msk [vmem:[%s542 + $0x188] sm:$0xff] %vm2655, %v2582
        %2706 = vst.msk [vmem:[%s542 + $0x190] sm:$0xff] %vm2655, %v2587
        %2707 = vst.msk [vmem:[%s542 + $0x198] sm:$0xff] %vm2655, %v2592
        %2708 = vst.msk [vmem:[%s542 + $0x1a0] sm:$0xff] %vm2655, %v2597
        %2709 = vst.msk [vmem:[%s542 + $0x1a8] sm:$0xff] %vm2655, %v2602
        %2710 = vst.msk [vmem:[%s542 + $0x1b0] sm:$0xff] %vm2655, %v2607
        %2711 = vst.msk [vmem:[%s542 + $0x1b8] sm:$0xff] %vm2655, %v2612
        %2712 = vst.msk [vmem:[%s542 + $0x1c0] sm:$0xff] %vm2655, %v2617
        %2713 = vst.msk [vmem:[%s542 + $0x1c8] sm:$0xff] %vm2655, %v2622
        %2714 = vst.msk [vmem:[%s542 + $0x1d0] sm:$0xff] %vm2655, %v2627
        %2715 = vst.msk [vmem:[%s542 + $0x1d8] sm:$0xff] %vm2655, %v2632
        %2716 = vst.msk [vmem:[%s542 + $0x1e0] sm:$0xff] %vm2655, %v2637
        %2717 = vst.msk [vmem:[%s542 + $0x1e8] sm:$0xff] %vm2655, %v2642
        %2718 = vst.msk [vmem:[%s542 + $0x1f0] sm:$0xff] %vm2655, %v2647
        %2719 = vst.msk [vmem:[%s542 + $0x1f8] sm:$0xff] %vm2655, %v2652
        %v2720 = vld [vmem:[%s7] sm:$0xff]
        %v2721 = vld [vmem:[%s7 + $0x8] sm:$0xff]
        %v2722 = vld [vmem:[%s7 + $0x10] sm:$0xff]
        %v2723 = vld [vmem:[%s7 + $0x18] sm:$0xff]
        %v2724 = vld [vmem:[%s7 + $0x20] sm:$0xff]
        %v2725 = vld [vmem:[%s7 + $0x28] sm:$0xff]
        %v2726 = vld [vmem:[%s7 + $0x30] sm:$0xff]
        %v2727 = vld [vmem:[%s7 + $0x38] sm:$0xff]
        %v2728 = vld [vmem:[%s8] sm:$0x1]
        %v2730 = vlaneseq
        %v2731 = vshrl.u32 %v2730, 7
        %v2732 = vsub.s32 0, %v2731
        %v2733 = vrot.slane %v2728, %v2732
        %2735 = vmatprep.subr.mxu0 0.0
        %2736 = vmatpush1.msra.mxu0 %v2720
        %2737 = vmatprep.subr.mxu0 0.0
        %2738 = vmatpush1.msra.mxu0 %v2721
        %2739 = vmatprep.subr.mxu0 0.0
        %2740 = vmatpush1.msra.mxu0 %v2722
        %2741 = vmatprep.subr.mxu0 0.0
        %2742 = vmatpush1.msra.mxu0 %v2723
        %2743 = vmatprep.subr.mxu0 0.0
        %2744 = vmatpush1.msra.mxu0 %v2724
        %2745 = vmatprep.subr.mxu0 0.0
        %2746 = vmatpush1.msra.mxu0 %v2725
        %2747 = vmatprep.subr.mxu0 0.0
        %2748 = vmatpush1.msra.mxu0 %v2726
        %2749 = vmatprep.subr.mxu0 0.0
        %2750 = vmatpush1.msra.mxu0 %v2727
        %2751 = vmatprep.subr.mxu0 0.0
        %2752 = vmatpush1.msra.mxu0 0.0
        %2753 = vmatprep.subr.mxu0 0.0
        %2754 = vmatpush1.msra.mxu0 0.0
        %2755 = vmatprep.subr.mxu0 0.0
        %2756 = vmatpush1.msra.mxu0 0.0
        %2757 = vmatprep.subr.mxu0 0.0
        %2758 = vmatpush1.msra.mxu0 0.0
        %2759 = vmatprep.subr.mxu0 0.0
        %2760 = vmatpush1.msra.mxu0 0.0
        %2761 = vmatprep.subr.mxu0 0.0
        %2762 = vmatpush1.msra.mxu0 0.0
        %2763 = vmatprep.subr.mxu0 0.0
        %2764 = vmatpush1.msra.mxu0 0.0
        %2765 = vmatprep.subr.mxu0 0.0
        %2766 = vmatpush1.msra.mxu0 0.0
        %2767 = vmatprep.subr.mxu0 0.0
        %2768 = vmatpush1.msra.mxu0 0.0
        %2769 = vmatprep.subr.mxu0 0.0
        %2770 = vmatpush1.msra.mxu0 0.0
        %2771 = vmatprep.subr.mxu0 0.0
        %2772 = vmatpush1.msra.mxu0 0.0
        %2773 = vmatprep.subr.mxu0 0.0
        %2774 = vmatpush1.msra.mxu0 0.0
        %2775 = vmatprep.subr.mxu0 0.0
        %2776 = vmatpush1.msra.mxu0 0.0
        %2777 = vmatprep.subr.mxu0 0.0
        %2778 = vmatpush1.msra.mxu0 0.0
        %2779 = vmatprep.subr.mxu0 0.0
        %2780 = vmatpush1.msra.mxu0 0.0
        %2781 = vmatprep.subr.mxu0 0.0
        %2782 = vmatpush1.msra.mxu0 0.0
        %2783 = vmatprep.subr.mxu0 0.0
        %2784 = vmatpush1.msra.mxu0 0.0
        %2785 = vmatprep.subr.mxu0 0.0
        %2786 = vmatpush1.msra.mxu0 0.0
        %2787 = vmatprep.subr.mxu0 0.0
        %2788 = vmatpush1.msra.mxu0 0.0
        %2789 = vmatprep.subr.mxu0 0.0
        %2790 = vmatpush1.msra.mxu0 0.0
        %2791 = vmatprep.subr.mxu0 0.0
        %2792 = vmatpush1.msra.mxu0 0.0
        %2793 = vmatprep.subr.mxu0 0.0
        %2794 = vmatpush1.msra.mxu0 0.0
        %2795 = vmatprep.subr.mxu0 0.0
        %2796 = vmatpush1.msra.mxu0 0.0
        %2797 = vmatprep.subr.mxu0 0.0
        %2798 = vmatpush1.msra.mxu0 0.0
        %2799 = vmatprep.mubr.f32.mxu0 0.0
        %2800 = vmatmul.mubr.f32.gmra.mrb[0].mxu0 %v2079
        %v2801 = vpop.f32.mrb[0].mxu0
        %v2802 = vadd.f32 %v2733, %v2801
        %v2803 = vpop.f32.mrb[0].mxu0
        %2804 = vmatprep.mubr.f32.mxu0 0.0
        %2805 = vmatmul.mubr.f32.gmra.mrb[0].mxu0 %v2082
        %v2806 = vpop.f32.mrb[0].mxu0
        %v2807 = vadd.f32 %v2733, %v2806
        %v2808 = vpop.f32.mrb[0].mxu0
        %2809 = vmatprep.mubr.f32.mxu0 0.0
        %2810 = vmatmul.mubr.f32.gmra.mrb[0].mxu0 %v2085
        %v2811 = vpop.f32.mrb[0].mxu0
        %v2812 = vadd.f32 %v2733, %v2811
        %v2813 = vpop.f32.mrb[0].mxu0
        %2814 = vmatprep.mubr.f32.mxu0 0.0
        %2815 = vmatmul.mubr.f32.gmra.mrb[0].mxu0 %v2088
        %v2816 = vpop.f32.mrb[0].mxu0
        %v2817 = vadd.f32 %v2733, %v2816
        %v2818 = vpop.f32.mrb[0].mxu0
        %2819 = vmatprep.mubr.f32.mxu0 0.0
        %2820 = vmatmul.mubr.f32.gmra.mrb[0].mxu0 %v2091
        %v2821 = vpop.f32.mrb[0].mxu0
        %v2822 = vadd.f32 %v2733, %v2821
        %v2823 = vpop.f32.mrb[0].mxu0
        %2824 = vmatprep.mubr.f32.mxu0 0.0
        %2825 = vmatmul.mubr.f32.gmra.mrb[0].mxu0 %v2094
        %v2826 = vpop.f32.mrb[0].mxu0
        %v2827 = vadd.f32 %v2733, %v2826
        %v2828 = vpop.f32.mrb[0].mxu0
        %2829 = vmatprep.mubr.f32.mxu0 0.0
        %2830 = vmatmul.mubr.f32.gmra.mrb[0].mxu0 %v2097
        %v2831 = vpop.f32.mrb[0].mxu0
        %v2832 = vadd.f32 %v2733, %v2831
        %v2833 = vpop.f32.mrb[0].mxu0
        %2834 = vmatprep.mubr.f32.mxu0 0.0
        %2835 = vmatmul.mubr.f32.gmra.mrb[0].mxu0 %v2100
        %v2836 = vpop.f32.mrb[0].mxu0
        %v2837 = vadd.f32 %v2733, %v2836
        %v2838 = vpop.f32.mrb[0].mxu0
        %2839 = vmatprep.mubr.f32.mxu0 0.0
        %2840 = vmatmul.mubr.f32.gmra.mrb[0].mxu0 %v2103
        %v2841 = vpop.f32.mrb[0].mxu0
        %v2842 = vadd.f32 %v2733, %v2841
        %v2843 = vpop.f32.mrb[0].mxu0
        %2844 = vmatprep.mubr.f32.mxu0 0.0
        %2845 = vmatmul.mubr.f32.gmra.mrb[0].mxu0 %v2106
        %v2846 = vpop.f32.mrb[0].mxu0
        %v2847 = vadd.f32 %v2733, %v2846
        %v2848 = vpop.f32.mrb[0].mxu0
        %2849 = vmatprep.mubr.f32.mxu0 0.0
        %2850 = vmatmul.mubr.f32.gmra.mrb[0].mxu0 %v2109
        %v2851 = vpop.f32.mrb[0].mxu0
        %v2852 = vadd.f32 %v2733, %v2851
        %v2853 = vpop.f32.mrb[0].mxu0
        %2854 = vmatprep.mubr.f32.mxu0 0.0
        %2855 = vmatmul.mubr.f32.gmra.mrb[0].mxu0 %v2112
        %v2856 = vpop.f32.mrb[0].mxu0
        %v2857 = vadd.f32 %v2733, %v2856
        %v2858 = vpop.f32.mrb[0].mxu0
        %2859 = vmatprep.mubr.f32.mxu0 0.0
        %2860 = vmatmul.mubr.f32.gmra.mrb[0].mxu0 %v2115
        %v2861 = vpop.f32.mrb[0].mxu0
        %v2862 = vadd.f32 %v2733, %v2861
        %v2863 = vpop.f32.mrb[0].mxu0
        %2864 = vmatprep.mubr.f32.mxu0 0.0
        %2865 = vmatmul.mubr.f32.gmra.mrb[0].mxu0 %v2118
        %v2866 = vpop.f32.mrb[0].mxu0
        %v2867 = vadd.f32 %v2733, %v2866
        %v2868 = vpop.f32.mrb[0].mxu0
        %2869 = vmatprep.mubr.f32.mxu0 0.0
        %2870 = vmatmul.mubr.f32.gmra.mrb[0].mxu0 %v2121
        %v2871 = vpop.f32.mrb[0].mxu0
        %v2872 = vadd.f32 %v2733, %v2871
        %v2873 = vpop.f32.mrb[0].mxu0
        %2874 = vmatprep.mubr.f32.mxu0 0.0
        %2875 = vmatmul.mubr.f32.gmra.mrb[0].mxu0 %v2124
        %v2876 = vpop.f32.mrb[0].mxu0
        %v2877 = vadd.f32 %v2733, %v2876
        %v2878 = vpop.f32.mrb[0].mxu0
        %2879 = vmatprep.mubr.f32.mxu0 0.0
        %2880 = vmatmul.mubr.f32.gmra.mrb[0].mxu0 %v2127
        %v2881 = vpop.f32.mrb[0].mxu0
        %v2882 = vadd.f32 %v2733, %v2881
        %v2883 = vpop.f32.mrb[0].mxu0
        %2884 = vmatprep.mubr.f32.mxu0 0.0
        %2885 = vmatmul.mubr.f32.gmra.mrb[0].mxu0 %v2130
        %v2886 = vpop.f32.mrb[0].mxu0
        %v2887 = vadd.f32 %v2733, %v2886
        %v2888 = vpop.f32.mrb[0].mxu0
        %2889 = vmatprep.mubr.f32.mxu0 0.0
        %2890 = vmatmul.mubr.f32.gmra.mrb[0].mxu0 %v2133
        %v2891 = vpop.f32.mrb[0].mxu0
        %v2892 = vadd.f32 %v2733, %v2891
        %v2893 = vpop.f32.mrb[0].mxu0
        %2894 = vmatprep.mubr.f32.mxu0 0.0
        %2895 = vmatmul.mubr.f32.gmra.mrb[0].mxu0 %v2136
        %v2896 = vpop.f32.mrb[0].mxu0
        %v2897 = vadd.f32 %v2733, %v2896
        %v2898 = vpop.f32.mrb[0].mxu0
        %2899 = vmatprep.mubr.f32.mxu0 0.0
        %2900 = vmatmul.mubr.f32.gmra.mrb[0].mxu0 %v2139
        %v2901 = vpop.f32.mrb[0].mxu0
        %v2902 = vadd.f32 %v2733, %v2901
        %v2903 = vpop.f32.mrb[0].mxu0
        %2904 = vmatprep.mubr.f32.mxu0 0.0
        %2905 = vmatmul.mubr.f32.gmra.mrb[0].mxu0 %v2142
        %v2906 = vpop.f32.mrb[0].mxu0
        %v2907 = vadd.f32 %v2733, %v2906
        %v2908 = vpop.f32.mrb[0].mxu0
        %2909 = vmatprep.mubr.f32.mxu0 0.0
        %2910 = vmatmul.mubr.f32.gmra.mrb[0].mxu0 %v2145
        %v2911 = vpop.f32.mrb[0].mxu0
        %v2912 = vadd.f32 %v2733, %v2911
        %v2913 = vpop.f32.mrb[0].mxu0
        %2914 = vmatprep.mubr.f32.mxu0 0.0
        %2915 = vmatmul.mubr.f32.gmra.mrb[0].mxu0 %v2148
        %v2916 = vpop.f32.mrb[0].mxu0
        %v2917 = vadd.f32 %v2733, %v2916
        %v2918 = vpop.f32.mrb[0].mxu0
        %2919 = vmatprep.mubr.f32.mxu0 0.0
        %2920 = vmatmul.mubr.f32.gmra.mrb[0].mxu0 %v2151
        %v2921 = vpop.f32.mrb[0].mxu0
        %v2922 = vadd.f32 %v2733, %v2921
        %v2923 = vpop.f32.mrb[0].mxu0
        %2924 = vmatprep.mubr.f32.mxu0 0.0
        %2925 = vmatmul.mubr.f32.gmra.mrb[0].mxu0 %v2154
        %v2926 = vpop.f32.mrb[0].mxu0
        %v2927 = vadd.f32 %v2733, %v2926
        %v2928 = vpop.f32.mrb[0].mxu0
        %2929 = vmatprep.mubr.f32.mxu0 0.0
        %2930 = vmatmul.mubr.f32.gmra.mrb[0].mxu0 %v2157
        %v2931 = vpop.f32.mrb[0].mxu0
        %v2932 = vadd.f32 %v2733, %v2931
        %v2933 = vpop.f32.mrb[0].mxu0
        %2934 = vmatprep.mubr.f32.mxu0 0.0
        %2935 = vmatmul.mubr.f32.gmra.mrb[0].mxu0 %v2160
        %v2936 = vpop.f32.mrb[0].mxu0
        %v2937 = vadd.f32 %v2733, %v2936
        %v2938 = vpop.f32.mrb[0].mxu0
        %2939 = vmatprep.mubr.f32.mxu0 0.0
        %2940 = vmatmul.mubr.f32.gmra.mrb[0].mxu0 %v2163
        %v2941 = vpop.f32.mrb[0].mxu0
        %v2942 = vadd.f32 %v2733, %v2941
        %v2943 = vpop.f32.mrb[0].mxu0
        %2944 = vmatprep.mubr.f32.mxu0 0.0
        %2945 = vmatmul.mubr.f32.gmra.mrb[0].mxu0 %v2166
        %v2946 = vpop.f32.mrb[0].mxu0
        %v2947 = vadd.f32 %v2733, %v2946
        %v2948 = vpop.f32.mrb[0].mxu0
        %2949 = vmatprep.mubr.f32.mxu0 0.0
        %2950 = vmatmul.mubr.f32.gmra.mrb[0].mxu0 %v2169
        %v2951 = vpop.f32.mrb[0].mxu0
        %v2952 = vadd.f32 %v2733, %v2951
        %v2953 = vpop.f32.mrb[0].mxu0
        %2954 = vmatprep.mubr.f32.mxu0 0.0
        %2955 = vmatmul.mubr.f32.gmra.mrb[0].mxu0 %v2172
        %v2956 = vpop.f32.mrb[0].mxu0
        %v2957 = vadd.f32 %v2733, %v2956
        %v2958 = vpop.f32.mrb[0].mxu0
        %2959 = vmatprep.mubr.f32.mxu0 0.0
        %2960 = vmatmul.mubr.f32.gmra.mrb[0].mxu0 %v2175
        %v2961 = vpop.f32.mrb[0].mxu0
        %v2962 = vadd.f32 %v2733, %v2961
        %v2963 = vpop.f32.mrb[0].mxu0
        %2964 = vmatprep.mubr.f32.mxu0 0.0
        %2965 = vmatmul.mubr.f32.gmra.mrb[0].mxu0 %v2178
        %v2966 = vpop.f32.mrb[0].mxu0
        %v2967 = vadd.f32 %v2733, %v2966
        %v2968 = vpop.f32.mrb[0].mxu0
        %2969 = vmatprep.mubr.f32.mxu0 0.0
        %2970 = vmatmul.mubr.f32.gmra.mrb[0].mxu0 %v2181
        %v2971 = vpop.f32.mrb[0].mxu0
        %v2972 = vadd.f32 %v2733, %v2971
        %v2973 = vpop.f32.mrb[0].mxu0
        %2974 = vmatprep.mubr.f32.mxu0 0.0
        %2975 = vmatmul.mubr.f32.gmra.mrb[0].mxu0 %v2184
        %v2976 = vpop.f32.mrb[0].mxu0
        %v2977 = vadd.f32 %v2733, %v2976
        %v2978 = vpop.f32.mrb[0].mxu0
        %2979 = vmatprep.mubr.f32.mxu0 0.0
        %2980 = vmatmul.mubr.f32.gmra.mrb[0].mxu0 %v2187
        %v2981 = vpop.f32.mrb[0].mxu0
        %v2982 = vadd.f32 %v2733, %v2981
        %v2983 = vpop.f32.mrb[0].mxu0
        %2984 = vmatprep.mubr.f32.mxu0 0.0
        %2985 = vmatmul.mubr.f32.gmra.mrb[0].mxu0 %v2190
        %v2986 = vpop.f32.mrb[0].mxu0
        %v2987 = vadd.f32 %v2733, %v2986
        %v2988 = vpop.f32.mrb[0].mxu0
        %2989 = vmatprep.mubr.f32.mxu0 0.0
        %2990 = vmatmul.mubr.f32.gmra.mrb[0].mxu0 %v2193
        %v2991 = vpop.f32.mrb[0].mxu0
        %v2992 = vadd.f32 %v2733, %v2991
        %v2993 = vpop.f32.mrb[0].mxu0
        %2994 = vmatprep.mubr.f32.mxu0 0.0
        %2995 = vmatmul.mubr.f32.gmra.mrb[0].mxu0 %v2196
        %v2996 = vpop.f32.mrb[0].mxu0
        %v2997 = vadd.f32 %v2733, %v2996
        %v2998 = vpop.f32.mrb[0].mxu0
        %2999 = vmatprep.mubr.f32.mxu0 0.0
        %3000 = vmatmul.mubr.f32.gmra.mrb[0].mxu0 %v2199
        %v3001 = vpop.f32.mrb[0].mxu0
        %v3002 = vadd.f32 %v2733, %v3001
        %v3003 = vpop.f32.mrb[0].mxu0
        %3004 = vmatprep.mubr.f32.mxu0 0.0
        %3005 = vmatmul.mubr.f32.gmra.mrb[0].mxu0 %v2202
        %v3006 = vpop.f32.mrb[0].mxu0
        %v3007 = vadd.f32 %v2733, %v3006
        %v3008 = vpop.f32.mrb[0].mxu0
        %3009 = vmatprep.mubr.f32.mxu0 0.0
        %3010 = vmatmul.mubr.f32.gmra.mrb[0].mxu0 %v2205
        %v3011 = vpop.f32.mrb[0].mxu0
        %v3012 = vadd.f32 %v2733, %v3011
        %v3013 = vpop.f32.mrb[0].mxu0
        %3014 = vmatprep.mubr.f32.mxu0 0.0
        %3015 = vmatmul.mubr.f32.gmra.mrb[0].mxu0 %v2208
        %v3016 = vpop.f32.mrb[0].mxu0
        %v3017 = vadd.f32 %v2733, %v3016
        %v3018 = vpop.f32.mrb[0].mxu0
        %3019 = vmatprep.mubr.f32.mxu0 0.0
        %3020 = vmatmul.mubr.f32.gmra.mrb[0].mxu0 %v2211
        %v3021 = vpop.f32.mrb[0].mxu0
        %v3022 = vadd.f32 %v2733, %v3021
        %v3023 = vpop.f32.mrb[0].mxu0
        %3024 = vmatprep.mubr.f32.mxu0 0.0
        %3025 = vmatmul.mubr.f32.gmra.mrb[0].mxu0 %v2214
        %v3026 = vpop.f32.mrb[0].mxu0
        %v3027 = vadd.f32 %v2733, %v3026
        %v3028 = vpop.f32.mrb[0].mxu0
        %3029 = vmatprep.mubr.f32.mxu0 0.0
        %3030 = vmatmul.mubr.f32.gmra.mrb[0].mxu0 %v2217
        %v3031 = vpop.f32.mrb[0].mxu0
        %v3032 = vadd.f32 %v2733, %v3031
        %v3033 = vpop.f32.mrb[0].mxu0
        %3034 = vmatprep.mubr.f32.mxu0 0.0
        %3035 = vmatmul.mubr.f32.gmra.mrb[0].mxu0 %v2220
        %v3036 = vpop.f32.mrb[0].mxu0
        %v3037 = vadd.f32 %v2733, %v3036
        %v3038 = vpop.f32.mrb[0].mxu0
        %3039 = vmatprep.mubr.f32.mxu0 0.0
        %3040 = vmatmul.mubr.f32.gmra.mrb[0].mxu0 %v2223
        %v3041 = vpop.f32.mrb[0].mxu0
        %v3042 = vadd.f32 %v2733, %v3041
        %v3043 = vpop.f32.mrb[0].mxu0
        %3044 = vmatprep.mubr.f32.mxu0 0.0
        %3045 = vmatmul.mubr.f32.gmra.mrb[0].mxu0 %v2226
        %v3046 = vpop.f32.mrb[0].mxu0
        %v3047 = vadd.f32 %v2733, %v3046
        %v3048 = vpop.f32.mrb[0].mxu0
        %3049 = vmatprep.mubr.f32.mxu0 0.0
        %3050 = vmatmul.mubr.f32.gmra.mrb[0].mxu0 %v2229
        %v3051 = vpop.f32.mrb[0].mxu0
        %v3052 = vadd.f32 %v2733, %v3051
        %v3053 = vpop.f32.mrb[0].mxu0
        %3054 = vmatprep.mubr.f32.mxu0 0.0
        %3055 = vmatmul.mubr.f32.gmra.mrb[0].mxu0 %v2232
        %v3056 = vpop.f32.mrb[0].mxu0
        %v3057 = vadd.f32 %v2733, %v3056
        %v3058 = vpop.f32.mrb[0].mxu0
        %3059 = vmatprep.mubr.f32.mxu0 0.0
        %3060 = vmatmul.mubr.f32.gmra.mrb[0].mxu0 %v2235
        %v3061 = vpop.f32.mrb[0].mxu0
        %v3062 = vadd.f32 %v2733, %v3061
        %v3063 = vpop.f32.mrb[0].mxu0
        %3064 = vmatprep.mubr.f32.mxu0 0.0
        %3065 = vmatmul.mubr.f32.gmra.mrb[0].mxu0 %v2238
        %v3066 = vpop.f32.mrb[0].mxu0
        %v3067 = vadd.f32 %v2733, %v3066
        %v3068 = vpop.f32.mrb[0].mxu0
        %3069 = vmatprep.mubr.f32.mxu0 0.0
        %3070 = vmatmul.mubr.f32.gmra.mrb[0].mxu0 %v2241
        %v3071 = vpop.f32.mrb[0].mxu0
        %v3072 = vadd.f32 %v2733, %v3071
        %v3073 = vpop.f32.mrb[0].mxu0
        %3074 = vmatprep.mubr.f32.mxu0 0.0
        %3075 = vmatmul.mubr.f32.gmra.mrb[0].mxu0 %v2244
        %v3076 = vpop.f32.mrb[0].mxu0
        %v3077 = vadd.f32 %v2733, %v3076
        %v3078 = vpop.f32.mrb[0].mxu0
        %3079 = vmatprep.mubr.f32.mxu0 0.0
        %3080 = vmatmul.mubr.f32.gmra.mrb[0].mxu0 %v2247
        %v3081 = vpop.f32.mrb[0].mxu0
        %v3082 = vadd.f32 %v2733, %v3081
        %v3083 = vpop.f32.mrb[0].mxu0
        %3084 = vmatprep.mubr.f32.mxu0 0.0
        %3085 = vmatmul.mubr.f32.gmra.mrb[0].mxu0 %v2250
        %v3086 = vpop.f32.mrb[0].mxu0
        %v3087 = vadd.f32 %v2733, %v3086
        %v3088 = vpop.f32.mrb[0].mxu0
        %3089 = vmatprep.mubr.f32.mxu0 0.0
        %3090 = vmatmul.mubr.f32.gmra.mrb[0].mxu0 %v2253
        %v3091 = vpop.f32.mrb[0].mxu0
        %v3092 = vadd.f32 %v2733, %v3091
        %v3093 = vpop.f32.mrb[0].mxu0
        %3094 = vmatprep.mubr.f32.mxu0 0.0
        %3095 = vmatmul.mubr.f32.gmra.mrb[0].mxu0 %v2256
        %v3096 = vpop.f32.mrb[0].mxu0
        %v3097 = vadd.f32 %v2733, %v3096
        %v3098 = vpop.f32.mrb[0].mxu0
        %3099 = vmatprep.mubr.f32.mxu0 0.0
        %3100 = vmatmul.mubr.f32.gmra.mrb[0].mxu0 %v2259
        %v3101 = vpop.f32.mrb[0].mxu0
        %v3102 = vadd.f32 %v2733, %v3101
        %v3103 = vpop.f32.mrb[0].mxu0
        %3104 = vmatprep.mubr.f32.mxu0 0.0
        %3105 = vmatmul.mubr.f32.gmra.mrb[0].mxu0 %v2262
        %v3106 = vpop.f32.mrb[0].mxu0
        %v3107 = vadd.f32 %v2733, %v3106
        %v3108 = vpop.f32.mrb[0].mxu0
        %3109 = vmatprep.mubr.f32.mxu0 0.0
        %3110 = vmatmul.mubr.f32.gmra.mrb[0].mxu0 %v2265
        %v3111 = vpop.f32.mrb[0].mxu0
        %v3112 = vadd.f32 %v2733, %v3111
        %v3113 = vpop.f32.mrb[0].mxu0
        %3114 = vmatprep.mubr.f32.mxu0 0.0
        %3115 = vmatmul.mubr.f32.gmra.mrb[0].mxu0 %v2268
        %v3116 = vpop.f32.mrb[0].mxu0
        %v3117 = vadd.f32 %v2733, %v3116
        %v3118 = vpop.f32.mrb[0].mxu0
        %3119 = vdwg.mxu0
        %v3120 = vmax.f32 %v2802, 0.0
        %v3121 = vmax.f32 %v2807, 0.0
        %v3122 = vmax.f32 %v2812, 0.0
        %v3123 = vmax.f32 %v2817, 0.0
        %v3124 = vmax.f32 %v2822, 0.0
        %v3125 = vmax.f32 %v2827, 0.0
        %v3126 = vmax.f32 %v2832, 0.0
        %v3127 = vmax.f32 %v2837, 0.0
        %v3128 = vmax.f32 %v2842, 0.0
        %v3129 = vmax.f32 %v2847, 0.0
        %v3130 = vmax.f32 %v2852, 0.0
        %v3131 = vmax.f32 %v2857, 0.0
        %v3132 = vmax.f32 %v2862, 0.0
        %v3133 = vmax.f32 %v2867, 0.0
        %v3134 = vmax.f32 %v2872, 0.0
        %v3135 = vmax.f32 %v2877, 0.0
        %v3136 = vmax.f32 %v2882, 0.0
        %v3137 = vmax.f32 %v2887, 0.0
        %v3138 = vmax.f32 %v2892, 0.0
        %v3139 = vmax.f32 %v2897, 0.0
        %v3140 = vmax.f32 %v2902, 0.0
        %v3141 = vmax.f32 %v2907, 0.0
        %v3142 = vmax.f32 %v2912, 0.0
        %v3143 = vmax.f32 %v2917, 0.0
        %v3144 = vmax.f32 %v2922, 0.0
        %v3145 = vmax.f32 %v2927, 0.0
        %v3146 = vmax.f32 %v2932, 0.0
        %v3147 = vmax.f32 %v2937, 0.0
        %v3148 = vmax.f32 %v2942, 0.0
        %v3149 = vmax.f32 %v2947, 0.0
        %v3150 = vmax.f32 %v2952, 0.0
        %v3151 = vmax.f32 %v2957, 0.0
        %v3152 = vmax.f32 %v2962, 0.0
        %v3153 = vmax.f32 %v2967, 0.0
        %v3154 = vmax.f32 %v2972, 0.0
        %v3155 = vmax.f32 %v2977, 0.0
        %v3156 = vmax.f32 %v2982, 0.0
        %v3157 = vmax.f32 %v2987, 0.0
        %v3158 = vmax.f32 %v2992, 0.0
        %v3159 = vmax.f32 %v2997, 0.0
        %v3160 = vmax.f32 %v3002, 0.0
        %v3161 = vmax.f32 %v3007, 0.0
        %v3162 = vmax.f32 %v3012, 0.0
        %v3163 = vmax.f32 %v3017, 0.0
        %v3164 = vmax.f32 %v3022, 0.0
        %v3165 = vmax.f32 %v3027, 0.0
        %v3166 = vmax.f32 %v3032, 0.0
        %v3167 = vmax.f32 %v3037, 0.0
        %v3168 = vmax.f32 %v3042, 0.0
        %v3169 = vmax.f32 %v3047, 0.0
        %v3170 = vmax.f32 %v3052, 0.0
        %v3171 = vmax.f32 %v3057, 0.0
        %v3172 = vmax.f32 %v3062, 0.0
        %v3173 = vmax.f32 %v3067, 0.0
        %v3174 = vmax.f32 %v3072, 0.0
        %v3175 = vmax.f32 %v3077, 0.0
        %v3176 = vmax.f32 %v3082, 0.0
        %v3177 = vmax.f32 %v3087, 0.0
        %v3178 = vmax.f32 %v3092, 0.0
        %v3179 = vmax.f32 %v3097, 0.0
        %v3180 = vmax.f32 %v3102, 0.0
        %v3181 = vmax.f32 %v3107, 0.0
        %v3182 = vmax.f32 %v3112, 0.0
        %v3183 = vmax.f32 %v3117, 0.0
        %v3184 = vld [vmem:[%s9] sm:$0xff]
        %v3185 = vld [vmem:[%s9 + $0x8] sm:$0xff]
        %v3186 = vld [vmem:[%s9 + $0x10] sm:$0xff]
        %v3187 = vld [vmem:[%s9 + $0x18] sm:$0xff]
        %v3188 = vld [vmem:[%s10] sm:$0x1]
        %v3190 = vlaneseq
        %v3191 = vshrl.u32 %v3190, 7
        %v3192 = vsub.s32 0, %v3191
        %v3193 = vrot.slane %v3188, %v3192
        %v3196 = vsel %vm1349, %v3120, 0
        %v3199 = vsel %vm1349, %v3121, 0
        %v3202 = vsel %vm1349, %v3122, 0
        %v3205 = vsel %vm1349, %v3123, 0
        %v3208 = vsel %vm1349, %v3124, 0
        %v3211 = vsel %vm1349, %v3125, 0
        %v3214 = vsel %vm1349, %v3126, 0
        %v3217 = vsel %vm1349, %v3127, 0
        %v3220 = vsel %vm1349, %v3128, 0
        %v3223 = vsel %vm1349, %v3129, 0
        %v3226 = vsel %vm1349, %v3130, 0
        %v3229 = vsel %vm1349, %v3131, 0
        %v3232 = vsel %vm1349, %v3132, 0
        %v3235 = vsel %vm1349, %v3133, 0
        %v3238 = vsel %vm1349, %v3134, 0
        %v3241 = vsel %vm1349, %v3135, 0
        %v3244 = vsel %vm1349, %v3136, 0
        %v3247 = vsel %vm1349, %v3137, 0
        %v3250 = vsel %vm1349, %v3138, 0
        %v3253 = vsel %vm1349, %v3139, 0
        %v3256 = vsel %vm1349, %v3140, 0
        %v3259 = vsel %vm1349, %v3141, 0
        %v3262 = vsel %vm1349, %v3142, 0
        %v3265 = vsel %vm1349, %v3143, 0
        %v3268 = vsel %vm1349, %v3144, 0
        %v3271 = vsel %vm1349, %v3145, 0
        %v3274 = vsel %vm1349, %v3146, 0
        %v3277 = vsel %vm1349, %v3147, 0
        %v3280 = vsel %vm1349, %v3148, 0
        %v3283 = vsel %vm1349, %v3149, 0
        %v3286 = vsel %vm1349, %v3150, 0
        %v3289 = vsel %vm1349, %v3151, 0
        %v3292 = vsel %vm1349, %v3152, 0
        %v3295 = vsel %vm1349, %v3153, 0
        %v3298 = vsel %vm1349, %v3154, 0
        %v3301 = vsel %vm1349, %v3155, 0
        %v3304 = vsel %vm1349, %v3156, 0
        %v3307 = vsel %vm1349, %v3157, 0
        %v3310 = vsel %vm1349, %v3158, 0
        %v3313 = vsel %vm1349, %v3159, 0
        %v3316 = vsel %vm1349, %v3160, 0
        %v3319 = vsel %vm1349, %v3161, 0
        %v3322 = vsel %vm1349, %v3162, 0
        %v3325 = vsel %vm1349, %v3163, 0
        %v3328 = vsel %vm1349, %v3164, 0
        %v3331 = vsel %vm1349, %v3165, 0
        %v3334 = vsel %vm1349, %v3166, 0
        %v3337 = vsel %vm1349, %v3167, 0
        %v3340 = vsel %vm1349, %v3168, 0
        %v3343 = vsel %vm1349, %v3169, 0
        %v3346 = vsel %vm1349, %v3170, 0
        %v3349 = vsel %vm1349, %v3171, 0
        %v3352 = vsel %vm1349, %v3172, 0
        %v3355 = vsel %vm1349, %v3173, 0
        %v3358 = vsel %vm1349, %v3174, 0
        %v3361 = vsel %vm1349, %v3175, 0
        %v3364 = vsel %vm1349, %v3176, 0
        %v3367 = vsel %vm1349, %v3177, 0
        %v3370 = vsel %vm1349, %v3178, 0
        %v3373 = vsel %vm1349, %v3179, 0
        %v3376 = vsel %vm1349, %v3180, 0
        %v3379 = vsel %vm1349, %v3181, 0
        %v3382 = vsel %vm1349, %v3182, 0
        %v3385 = vsel %vm1349, %v3183, 0
        %3387 = vmatprep.subr.mxu0 0.0
        %3388 = vmatpush1.msra.mxu0 %v3184
        %3389 = vmatprep.subr.mxu0 0.0
        %3390 = vmatpush1.msra.mxu0 %v3185
        %3391 = vmatprep.subr.mxu0 0.0
        %3392 = vmatpush1.msra.mxu0 %v3186
        %3393 = vmatprep.subr.mxu0 0.0
        %3394 = vmatpush1.msra.mxu0 %v3187
        %3395 = vmatprep.subr.mxu0 0.0
        %3396 = vmatpush1.msra.mxu0 0.0
        %3397 = vmatprep.subr.mxu0 0.0
        %3398 = vmatpush1.msra.mxu0 0.0
        %3399 = vmatprep.subr.mxu0 0.0
        %3400 = vmatpush1.msra.mxu0 0.0
        %3401 = vmatprep.subr.mxu0 0.0
        %3402 = vmatpush1.msra.mxu0 0.0
        %3403 = vmatprep.subr.mxu0 0.0
        %3404 = vmatpush1.msra.mxu0 0.0
        %3405 = vmatprep.subr.mxu0 0.0
        %3406 = vmatpush1.msra.mxu0 0.0
        %3407 = vmatprep.subr.mxu0 0.0
        %3408 = vmatpush1.msra.mxu0 0.0
        %3409 = vmatprep.subr.mxu0 0.0
        %3410 = vmatpush1.msra.mxu0 0.0
        %3411 = vmatprep.subr.mxu0 0.0
        %3412 = vmatpush1.msra.mxu0 0.0
        %3413 = vmatprep.subr.mxu0 0.0
        %3414 = vmatpush1.msra.mxu0 0.0
        %3415 = vmatprep.subr.mxu0 0.0
        %3416 = vmatpush1.msra.mxu0 0.0
        %3417 = vmatprep.subr.mxu0 0.0
        %3418 = vmatpush1.msra.mxu0 0.0
        %3419 = vmatprep.subr.mxu0 0.0
        %3420 = vmatpush1.msra.mxu0 0.0
        %3421 = vmatprep.subr.mxu0 0.0
        %3422 = vmatpush1.msra.mxu0 0.0
        %3423 = vmatprep.subr.mxu0 0.0
        %3424 = vmatpush1.msra.mxu0 0.0
        %3425 = vmatprep.subr.mxu0 0.0
        %3426 = vmatpush1.msra.mxu0 0.0
        %3427 = vmatprep.subr.mxu0 0.0
        %3428 = vmatpush1.msra.mxu0 0.0
        %3429 = vmatprep.subr.mxu0 0.0
        %3430 = vmatpush1.msra.mxu0 0.0
        %3431 = vmatprep.subr.mxu0 0.0
        %3432 = vmatpush1.msra.mxu0 0.0
        %3433 = vmatprep.subr.mxu0 0.0
        %3434 = vmatpush1.msra.mxu0 0.0
        %3435 = vmatprep.subr.mxu0 0.0
        %3436 = vmatpush1.msra.mxu0 0.0
        %3437 = vmatprep.subr.mxu0 0.0
        %3438 = vmatpush1.msra.mxu0 0.0
        %3439 = vmatprep.subr.mxu0 0.0
        %3440 = vmatpush1.msra.mxu0 0.0
        %3441 = vmatprep.subr.mxu0 0.0
        %3442 = vmatpush1.msra.mxu0 0.0
        %3443 = vmatprep.subr.mxu0 0.0
        %3444 = vmatpush1.msra.mxu0 0.0
        %3445 = vmatprep.subr.mxu0 0.0
        %3446 = vmatpush1.msra.mxu0 0.0
        %3447 = vmatprep.subr.mxu0 0.0
        %3448 = vmatpush1.msra.mxu0 0.0
        %3449 = vmatprep.subr.mxu0 0.0
        %3450 = vmatpush1.msra.mxu0 0.0
        %3451 = vmatprep.mubr.f32.mxu0 0.0
        %3452 = vmatmul.mubr.f32.gmra.mrb[0].mxu0 %v3196
        %v3453 = vpop.f32.mrb[0].mxu0
        %v3454 = vadd.f32 %v3193, %v3453
        %v3455 = vpop.f32.mrb[0].mxu0
        %3456 = vmatprep.mubr.f32.mxu0 0.0
        %3457 = vmatmul.mubr.f32.gmra.mrb[0].mxu0 %v3199
        %v3458 = vpop.f32.mrb[0].mxu0
        %v3459 = vadd.f32 %v3193, %v3458
        %v3460 = vpop.f32.mrb[0].mxu0
        %3461 = vmatprep.mubr.f32.mxu0 0.0
        %3462 = vmatmul.mubr.f32.gmra.mrb[0].mxu0 %v3202
        %v3463 = vpop.f32.mrb[0].mxu0
        %v3464 = vadd.f32 %v3193, %v3463
        %v3465 = vpop.f32.mrb[0].mxu0
        %3466 = vmatprep.mubr.f32.mxu0 0.0
        %3467 = vmatmul.mubr.f32.gmra.mrb[0].mxu0 %v3205
        %v3468 = vpop.f32.mrb[0].mxu0
        %v3469 = vadd.f32 %v3193, %v3468
        %v3470 = vpop.f32.mrb[0].mxu0
        %3471 = vmatprep.mubr.f32.mxu0 0.0
        %3472 = vmatmul.mubr.f32.gmra.mrb[0].mxu0 %v3208
        %v3473 = vpop.f32.mrb[0].mxu0
        %v3474 = vadd.f32 %v3193, %v3473
        %v3475 = vpop.f32.mrb[0].mxu0
        %3476 = vmatprep.mubr.f32.mxu0 0.0
        %3477 = vmatmul.mubr.f32.gmra.mrb[0].mxu0 %v3211
        %v3478 = vpop.f32.mrb[0].mxu0
        %v3479 = vadd.f32 %v3193, %v3478
        %v3480 = vpop.f32.mrb[0].mxu0
        %3481 = vmatprep.mubr.f32.mxu0 0.0
        %3482 = vmatmul.mubr.f32.gmra.mrb[0].mxu0 %v3214
        %v3483 = vpop.f32.mrb[0].mxu0
        %v3484 = vadd.f32 %v3193, %v3483
        %v3485 = vpop.f32.mrb[0].mxu0
        %3486 = vmatprep.mubr.f32.mxu0 0.0
        %3487 = vmatmul.mubr.f32.gmra.mrb[0].mxu0 %v3217
        %v3488 = vpop.f32.mrb[0].mxu0
        %v3489 = vadd.f32 %v3193, %v3488
        %v3490 = vpop.f32.mrb[0].mxu0
        %3491 = vmatprep.mubr.f32.mxu0 0.0
        %3492 = vmatmul.mubr.f32.gmra.mrb[0].mxu0 %v3220
        %v3493 = vpop.f32.mrb[0].mxu0
        %v3494 = vadd.f32 %v3193, %v3493
        %v3495 = vpop.f32.mrb[0].mxu0
        %3496 = vmatprep.mubr.f32.mxu0 0.0
        %3497 = vmatmul.mubr.f32.gmra.mrb[0].mxu0 %v3223
        %v3498 = vpop.f32.mrb[0].mxu0
        %v3499 = vadd.f32 %v3193, %v3498
        %v3500 = vpop.f32.mrb[0].mxu0
        %3501 = vmatprep.mubr.f32.mxu0 0.0
        %3502 = vmatmul.mubr.f32.gmra.mrb[0].mxu0 %v3226
        %v3503 = vpop.f32.mrb[0].mxu0
        %v3504 = vadd.f32 %v3193, %v3503
        %v3505 = vpop.f32.mrb[0].mxu0
        %3506 = vmatprep.mubr.f32.mxu0 0.0
        %3507 = vmatmul.mubr.f32.gmra.mrb[0].mxu0 %v3229
        %v3508 = vpop.f32.mrb[0].mxu0
        %v3509 = vadd.f32 %v3193, %v3508
        %v3510 = vpop.f32.mrb[0].mxu0
        %3511 = vmatprep.mubr.f32.mxu0 0.0
        %3512 = vmatmul.mubr.f32.gmra.mrb[0].mxu0 %v3232
        %v3513 = vpop.f32.mrb[0].mxu0
        %v3514 = vadd.f32 %v3193, %v3513
        %v3515 = vpop.f32.mrb[0].mxu0
        %3516 = vmatprep.mubr.f32.mxu0 0.0
        %3517 = vmatmul.mubr.f32.gmra.mrb[0].mxu0 %v3235
        %v3518 = vpop.f32.mrb[0].mxu0
        %v3519 = vadd.f32 %v3193, %v3518
        %v3520 = vpop.f32.mrb[0].mxu0
        %3521 = vmatprep.mubr.f32.mxu0 0.0
        %3522 = vmatmul.mubr.f32.gmra.mrb[0].mxu0 %v3238
        %v3523 = vpop.f32.mrb[0].mxu0
        %v3524 = vadd.f32 %v3193, %v3523
        %v3525 = vpop.f32.mrb[0].mxu0
        %3526 = vmatprep.mubr.f32.mxu0 0.0
        %3527 = vmatmul.mubr.f32.gmra.mrb[0].mxu0 %v3241
        %v3528 = vpop.f32.mrb[0].mxu0
        %v3529 = vadd.f32 %v3193, %v3528
        %v3530 = vpop.f32.mrb[0].mxu0
        %3531 = vmatprep.mubr.f32.mxu0 0.0
        %3532 = vmatmul.mubr.f32.gmra.mrb[0].mxu0 %v3244
        %v3533 = vpop.f32.mrb[0].mxu0
        %v3534 = vadd.f32 %v3193, %v3533
        %v3535 = vpop.f32.mrb[0].mxu0
        %3536 = vmatprep.mubr.f32.mxu0 0.0
        %3537 = vmatmul.mubr.f32.gmra.mrb[0].mxu0 %v3247
        %v3538 = vpop.f32.mrb[0].mxu0
        %v3539 = vadd.f32 %v3193, %v3538
        %v3540 = vpop.f32.mrb[0].mxu0
        %3541 = vmatprep.mubr.f32.mxu0 0.0
        %3542 = vmatmul.mubr.f32.gmra.mrb[0].mxu0 %v3250
        %v3543 = vpop.f32.mrb[0].mxu0
        %v3544 = vadd.f32 %v3193, %v3543
        %v3545 = vpop.f32.mrb[0].mxu0
        %3546 = vmatprep.mubr.f32.mxu0 0.0
        %3547 = vmatmul.mubr.f32.gmra.mrb[0].mxu0 %v3253
        %v3548 = vpop.f32.mrb[0].mxu0
        %v3549 = vadd.f32 %v3193, %v3548
        %v3550 = vpop.f32.mrb[0].mxu0
        %3551 = vmatprep.mubr.f32.mxu0 0.0
        %3552 = vmatmul.mubr.f32.gmra.mrb[0].mxu0 %v3256
        %v3553 = vpop.f32.mrb[0].mxu0
        %v3554 = vadd.f32 %v3193, %v3553
        %v3555 = vpop.f32.mrb[0].mxu0
        %3556 = vmatprep.mubr.f32.mxu0 0.0
        %3557 = vmatmul.mubr.f32.gmra.mrb[0].mxu0 %v3259
        %v3558 = vpop.f32.mrb[0].mxu0
        %v3559 = vadd.f32 %v3193, %v3558
        %v3560 = vpop.f32.mrb[0].mxu0
        %3561 = vmatprep.mubr.f32.mxu0 0.0
        %3562 = vmatmul.mubr.f32.gmra.mrb[0].mxu0 %v3262
        %v3563 = vpop.f32.mrb[0].mxu0
        %v3564 = vadd.f32 %v3193, %v3563
        %v3565 = vpop.f32.mrb[0].mxu0
        %3566 = vmatprep.mubr.f32.mxu0 0.0
        %3567 = vmatmul.mubr.f32.gmra.mrb[0].mxu0 %v3265
        %v3568 = vpop.f32.mrb[0].mxu0
        %v3569 = vadd.f32 %v3193, %v3568
        %v3570 = vpop.f32.mrb[0].mxu0
        %3571 = vmatprep.mubr.f32.mxu0 0.0
        %3572 = vmatmul.mubr.f32.gmra.mrb[0].mxu0 %v3268
        %v3573 = vpop.f32.mrb[0].mxu0
        %v3574 = vadd.f32 %v3193, %v3573
        %v3575 = vpop.f32.mrb[0].mxu0
        %3576 = vmatprep.mubr.f32.mxu0 0.0
        %3577 = vmatmul.mubr.f32.gmra.mrb[0].mxu0 %v3271
        %v3578 = vpop.f32.mrb[0].mxu0
        %v3579 = vadd.f32 %v3193, %v3578
        %v3580 = vpop.f32.mrb[0].mxu0
        %3581 = vmatprep.mubr.f32.mxu0 0.0
        %3582 = vmatmul.mubr.f32.gmra.mrb[0].mxu0 %v3274
        %v3583 = vpop.f32.mrb[0].mxu0
        %v3584 = vadd.f32 %v3193, %v3583
        %v3585 = vpop.f32.mrb[0].mxu0
        %3586 = vmatprep.mubr.f32.mxu0 0.0
        %3587 = vmatmul.mubr.f32.gmra.mrb[0].mxu0 %v3277
        %v3588 = vpop.f32.mrb[0].mxu0
        %v3589 = vadd.f32 %v3193, %v3588
        %v3590 = vpop.f32.mrb[0].mxu0
        %3591 = vmatprep.mubr.f32.mxu0 0.0
        %3592 = vmatmul.mubr.f32.gmra.mrb[0].mxu0 %v3280
        %v3593 = vpop.f32.mrb[0].mxu0
        %v3594 = vadd.f32 %v3193, %v3593
        %v3595 = vpop.f32.mrb[0].mxu0
        %3596 = vmatprep.mubr.f32.mxu0 0.0
        %3597 = vmatmul.mubr.f32.gmra.mrb[0].mxu0 %v3283
        %v3598 = vpop.f32.mrb[0].mxu0
        %v3599 = vadd.f32 %v3193, %v3598
        %v3600 = vpop.f32.mrb[0].mxu0
        %3601 = vmatprep.mubr.f32.mxu0 0.0
        %3602 = vmatmul.mubr.f32.gmra.mrb[0].mxu0 %v3286
        %v3603 = vpop.f32.mrb[0].mxu0
        %v3604 = vadd.f32 %v3193, %v3603
        %v3605 = vpop.f32.mrb[0].mxu0
        %3606 = vmatprep.mubr.f32.mxu0 0.0
        %3607 = vmatmul.mubr.f32.gmra.mrb[0].mxu0 %v3289
        %v3608 = vpop.f32.mrb[0].mxu0
        %v3609 = vadd.f32 %v3193, %v3608
        %v3610 = vpop.f32.mrb[0].mxu0
        %3611 = vmatprep.mubr.f32.mxu0 0.0
        %3612 = vmatmul.mubr.f32.gmra.mrb[0].mxu0 %v3292
        %v3613 = vpop.f32.mrb[0].mxu0
        %v3614 = vadd.f32 %v3193, %v3613
        %v3615 = vpop.f32.mrb[0].mxu0
        %3616 = vmatprep.mubr.f32.mxu0 0.0
        %3617 = vmatmul.mubr.f32.gmra.mrb[0].mxu0 %v3295
        %v3618 = vpop.f32.mrb[0].mxu0
        %v3619 = vadd.f32 %v3193, %v3618
        %v3620 = vpop.f32.mrb[0].mxu0
        %3621 = vmatprep.mubr.f32.mxu0 0.0
        %3622 = vmatmul.mubr.f32.gmra.mrb[0].mxu0 %v3298
        %v3623 = vpop.f32.mrb[0].mxu0
        %v3624 = vadd.f32 %v3193, %v3623
        %v3625 = vpop.f32.mrb[0].mxu0
        %3626 = vmatprep.mubr.f32.mxu0 0.0
        %3627 = vmatmul.mubr.f32.gmra.mrb[0].mxu0 %v3301
        %v3628 = vpop.f32.mrb[0].mxu0
        %v3629 = vadd.f32 %v3193, %v3628
        %v3630 = vpop.f32.mrb[0].mxu0
        %3631 = vmatprep.mubr.f32.mxu0 0.0
        %3632 = vmatmul.mubr.f32.gmra.mrb[0].mxu0 %v3304
        %v3633 = vpop.f32.mrb[0].mxu0
        %v3634 = vadd.f32 %v3193, %v3633
        %v3635 = vpop.f32.mrb[0].mxu0
        %3636 = vmatprep.mubr.f32.mxu0 0.0
        %3637 = vmatmul.mubr.f32.gmra.mrb[0].mxu0 %v3307
        %v3638 = vpop.f32.mrb[0].mxu0
        %v3639 = vadd.f32 %v3193, %v3638
        %v3640 = vpop.f32.mrb[0].mxu0
        %3641 = vmatprep.mubr.f32.mxu0 0.0
        %3642 = vmatmul.mubr.f32.gmra.mrb[0].mxu0 %v3310
        %v3643 = vpop.f32.mrb[0].mxu0
        %v3644 = vadd.f32 %v3193, %v3643
        %v3645 = vpop.f32.mrb[0].mxu0
        %3646 = vmatprep.mubr.f32.mxu0 0.0
        %3647 = vmatmul.mubr.f32.gmra.mrb[0].mxu0 %v3313
        %v3648 = vpop.f32.mrb[0].mxu0
        %v3649 = vadd.f32 %v3193, %v3648
        %v3650 = vpop.f32.mrb[0].mxu0
        %3651 = vmatprep.mubr.f32.mxu0 0.0
        %3652 = vmatmul.mubr.f32.gmra.mrb[0].mxu0 %v3316
        %v3653 = vpop.f32.mrb[0].mxu0
        %v3654 = vadd.f32 %v3193, %v3653
        %v3655 = vpop.f32.mrb[0].mxu0
        %3656 = vmatprep.mubr.f32.mxu0 0.0
        %3657 = vmatmul.mubr.f32.gmra.mrb[0].mxu0 %v3319
        %v3658 = vpop.f32.mrb[0].mxu0
        %v3659 = vadd.f32 %v3193, %v3658
        %v3660 = vpop.f32.mrb[0].mxu0
        %3661 = vmatprep.mubr.f32.mxu0 0.0
        %3662 = vmatmul.mubr.f32.gmra.mrb[0].mxu0 %v3322
        %v3663 = vpop.f32.mrb[0].mxu0
        %v3664 = vadd.f32 %v3193, %v3663
        %v3665 = vpop.f32.mrb[0].mxu0
        %3666 = vmatprep.mubr.f32.mxu0 0.0
        %3667 = vmatmul.mubr.f32.gmra.mrb[0].mxu0 %v3325
        %v3668 = vpop.f32.mrb[0].mxu0
        %v3669 = vadd.f32 %v3193, %v3668
        %v3670 = vpop.f32.mrb[0].mxu0
        %3671 = vmatprep.mubr.f32.mxu0 0.0
        %3672 = vmatmul.mubr.f32.gmra.mrb[0].mxu0 %v3328
        %v3673 = vpop.f32.mrb[0].mxu0
        %v3674 = vadd.f32 %v3193, %v3673
        %v3675 = vpop.f32.mrb[0].mxu0
        %3676 = vmatprep.mubr.f32.mxu0 0.0
        %3677 = vmatmul.mubr.f32.gmra.mrb[0].mxu0 %v3331
        %v3678 = vpop.f32.mrb[0].mxu0
        %v3679 = vadd.f32 %v3193, %v3678
        %v3680 = vpop.f32.mrb[0].mxu0
        %3681 = vmatprep.mubr.f32.mxu0 0.0
        %3682 = vmatmul.mubr.f32.gmra.mrb[0].mxu0 %v3334
        %v3683 = vpop.f32.mrb[0].mxu0
        %v3684 = vadd.f32 %v3193, %v3683
        %v3685 = vpop.f32.mrb[0].mxu0
        %3686 = vmatprep.mubr.f32.mxu0 0.0
        %3687 = vmatmul.mubr.f32.gmra.mrb[0].mxu0 %v3337
        %v3688 = vpop.f32.mrb[0].mxu0
        %v3689 = vadd.f32 %v3193, %v3688
        %v3690 = vpop.f32.mrb[0].mxu0
        %3691 = vmatprep.mubr.f32.mxu0 0.0
        %3692 = vmatmul.mubr.f32.gmra.mrb[0].mxu0 %v3340
        %v3693 = vpop.f32.mrb[0].mxu0
        %v3694 = vadd.f32 %v3193, %v3693
        %v3695 = vpop.f32.mrb[0].mxu0
        %3696 = vmatprep.mubr.f32.mxu0 0.0
        %3697 = vmatmul.mubr.f32.gmra.mrb[0].mxu0 %v3343
        %v3698 = vpop.f32.mrb[0].mxu0
        %v3699 = vadd.f32 %v3193, %v3698
        %v3700 = vpop.f32.mrb[0].mxu0
        %3701 = vmatprep.mubr.f32.mxu0 0.0
        %3702 = vmatmul.mubr.f32.gmra.mrb[0].mxu0 %v3346
        %v3703 = vpop.f32.mrb[0].mxu0
        %v3704 = vadd.f32 %v3193, %v3703
        %v3705 = vpop.f32.mrb[0].mxu0
        %3706 = vmatprep.mubr.f32.mxu0 0.0
        %3707 = vmatmul.mubr.f32.gmra.mrb[0].mxu0 %v3349
        %v3708 = vpop.f32.mrb[0].mxu0
        %v3709 = vadd.f32 %v3193, %v3708
        %v3710 = vpop.f32.mrb[0].mxu0
        %3711 = vmatprep.mubr.f32.mxu0 0.0
        %3712 = vmatmul.mubr.f32.gmra.mrb[0].mxu0 %v3352
        %v3713 = vpop.f32.mrb[0].mxu0
        %v3714 = vadd.f32 %v3193, %v3713
        %v3715 = vpop.f32.mrb[0].mxu0
        %3716 = vmatprep.mubr.f32.mxu0 0.0
        %3717 = vmatmul.mubr.f32.gmra.mrb[0].mxu0 %v3355
        %v3718 = vpop.f32.mrb[0].mxu0
        %v3719 = vadd.f32 %v3193, %v3718
        %v3720 = vpop.f32.mrb[0].mxu0
        %3721 = vmatprep.mubr.f32.mxu0 0.0
        %3722 = vmatmul.mubr.f32.gmra.mrb[0].mxu0 %v3358
        %v3723 = vpop.f32.mrb[0].mxu0
        %v3724 = vadd.f32 %v3193, %v3723
        %v3725 = vpop.f32.mrb[0].mxu0
        %3726 = vmatprep.mubr.f32.mxu0 0.0
        %3727 = vmatmul.mubr.f32.gmra.mrb[0].mxu0 %v3361
        %v3728 = vpop.f32.mrb[0].mxu0
        %v3729 = vadd.f32 %v3193, %v3728
        %v3730 = vpop.f32.mrb[0].mxu0
        %3731 = vmatprep.mubr.f32.mxu0 0.0
        %3732 = vmatmul.mubr.f32.gmra.mrb[0].mxu0 %v3364
        %v3733 = vpop.f32.mrb[0].mxu0
        %v3734 = vadd.f32 %v3193, %v3733
        %v3735 = vpop.f32.mrb[0].mxu0
        %3736 = vmatprep.mubr.f32.mxu0 0.0
        %3737 = vmatmul.mubr.f32.gmra.mrb[0].mxu0 %v3367
        %v3738 = vpop.f32.mrb[0].mxu0
        %v3739 = vadd.f32 %v3193, %v3738
        %v3740 = vpop.f32.mrb[0].mxu0
        %3741 = vmatprep.mubr.f32.mxu0 0.0
        %3742 = vmatmul.mubr.f32.gmra.mrb[0].mxu0 %v3370
        %v3743 = vpop.f32.mrb[0].mxu0
        %v3744 = vadd.f32 %v3193, %v3743
        %v3745 = vpop.f32.mrb[0].mxu0
        %3746 = vmatprep.mubr.f32.mxu0 0.0
        %3747 = vmatmul.mubr.f32.gmra.mrb[0].mxu0 %v3373
        %v3748 = vpop.f32.mrb[0].mxu0
        %v3749 = vadd.f32 %v3193, %v3748
        %v3750 = vpop.f32.mrb[0].mxu0
        %3751 = vmatprep.mubr.f32.mxu0 0.0
        %3752 = vmatmul.mubr.f32.gmra.mrb[0].mxu0 %v3376
        %v3753 = vpop.f32.mrb[0].mxu0
        %v3754 = vadd.f32 %v3193, %v3753
        %v3755 = vpop.f32.mrb[0].mxu0
        %3756 = vmatprep.mubr.f32.mxu0 0.0
        %3757 = vmatmul.mubr.f32.gmra.mrb[0].mxu0 %v3379
        %v3758 = vpop.f32.mrb[0].mxu0
        %v3759 = vadd.f32 %v3193, %v3758
        %v3760 = vpop.f32.mrb[0].mxu0
        %3761 = vmatprep.mubr.f32.mxu0 0.0
        %3762 = vmatmul.mubr.f32.gmra.mrb[0].mxu0 %v3382
        %v3763 = vpop.f32.mrb[0].mxu0
        %v3764 = vadd.f32 %v3193, %v3763
        %v3765 = vpop.f32.mrb[0].mxu0
        %3766 = vmatprep.mubr.f32.mxu0 0.0
        %3767 = vmatmul.mubr.f32.gmra.mrb[0].mxu0 %v3385
        %v3768 = vpop.f32.mrb[0].mxu0
        %v3769 = vadd.f32 %v3193, %v3768
        %v3770 = vpop.f32.mrb[0].mxu0
        %3771 = vdwg.mxu0
        %vm3772 = vcmask 621568
        %3773 = vst.msk [vmem:[%s552] sm:$0xff] %vm3772, %v3454
        %3774 = vst.msk [vmem:[%s552 + $0x8] sm:$0xff] %vm3772, %v3459
        %3775 = vst.msk [vmem:[%s552 + $0x10] sm:$0xff] %vm3772, %v3464
        %3776 = vst.msk [vmem:[%s552 + $0x18] sm:$0xff] %vm3772, %v3469
        %3777 = vst.msk [vmem:[%s552 + $0x20] sm:$0xff] %vm3772, %v3474
        %3778 = vst.msk [vmem:[%s552 + $0x28] sm:$0xff] %vm3772, %v3479
        %3779 = vst.msk [vmem:[%s552 + $0x30] sm:$0xff] %vm3772, %v3484
        %3780 = vst.msk [vmem:[%s552 + $0x38] sm:$0xff] %vm3772, %v3489
        %3781 = vst.msk [vmem:[%s552 + $0x40] sm:$0xff] %vm3772, %v3494
        %3782 = vst.msk [vmem:[%s552 + $0x48] sm:$0xff] %vm3772, %v3499
        %3783 = vst.msk [vmem:[%s552 + $0x50] sm:$0xff] %vm3772, %v3504
        %3784 = vst.msk [vmem:[%s552 + $0x58] sm:$0xff] %vm3772, %v3509
        %3785 = vst.msk [vmem:[%s552 + $0x60] sm:$0xff] %vm3772, %v3514
        %3786 = vst.msk [vmem:[%s552 + $0x68] sm:$0xff] %vm3772, %v3519
        %3787 = vst.msk [vmem:[%s552 + $0x70] sm:$0xff] %vm3772, %v3524
        %3788 = vst.msk [vmem:[%s552 + $0x78] sm:$0xff] %vm3772, %v3529
        %3789 = vst.msk [vmem:[%s552 + $0x80] sm:$0xff] %vm3772, %v3534
        %3790 = vst.msk [vmem:[%s552 + $0x88] sm:$0xff] %vm3772, %v3539
        %3791 = vst.msk [vmem:[%s552 + $0x90] sm:$0xff] %vm3772, %v3544
        %3792 = vst.msk [vmem:[%s552 + $0x98] sm:$0xff] %vm3772, %v3549
        %3793 = vst.msk [vmem:[%s552 + $0xa0] sm:$0xff] %vm3772, %v3554
        %3794 = vst.msk [vmem:[%s552 + $0xa8] sm:$0xff] %vm3772, %v3559
        %3795 = vst.msk [vmem:[%s552 + $0xb0] sm:$0xff] %vm3772, %v3564
        %3796 = vst.msk [vmem:[%s552 + $0xb8] sm:$0xff] %vm3772, %v3569
        %3797 = vst.msk [vmem:[%s552 + $0xc0] sm:$0xff] %vm3772, %v3574
        %3798 = vst.msk [vmem:[%s552 + $0xc8] sm:$0xff] %vm3772, %v3579
        %3799 = vst.msk [vmem:[%s552 + $0xd0] sm:$0xff] %vm3772, %v3584
        %3800 = vst.msk [vmem:[%s552 + $0xd8] sm:$0xff] %vm3772, %v3589
        %3801 = vst.msk [vmem:[%s552 + $0xe0] sm:$0xff] %vm3772, %v3594
        %3802 = vst.msk [vmem:[%s552 + $0xe8] sm:$0xff] %vm3772, %v3599
        %3803 = vst.msk [vmem:[%s552 + $0xf0] sm:$0xff] %vm3772, %v3604
        %3804 = vst.msk [vmem:[%s552 + $0xf8] sm:$0xff] %vm3772, %v3609
        %3805 = vst.msk [vmem:[%s552 + $0x100] sm:$0xff] %vm3772, %v3614
        %3806 = vst.msk [vmem:[%s552 + $0x108] sm:$0xff] %vm3772, %v3619
        %3807 = vst.msk [vmem:[%s552 + $0x110] sm:$0xff] %vm3772, %v3624
        %3808 = vst.msk [vmem:[%s552 + $0x118] sm:$0xff] %vm3772, %v3629
        %3809 = vst.msk [vmem:[%s552 + $0x120] sm:$0xff] %vm3772, %v3634
        %3810 = vst.msk [vmem:[%s552 + $0x128] sm:$0xff] %vm3772, %v3639
        %3811 = vst.msk [vmem:[%s552 + $0x130] sm:$0xff] %vm3772, %v3644
        %3812 = vst.msk [vmem:[%s552 + $0x138] sm:$0xff] %vm3772, %v3649
        %3813 = vst.msk [vmem:[%s552 + $0x140] sm:$0xff] %vm3772, %v3654
        %3814 = vst.msk [vmem:[%s552 + $0x148] sm:$0xff] %vm3772, %v3659
        %3815 = vst.msk [vmem:[%s552 + $0x150] sm:$0xff] %vm3772, %v3664
        %3816 = vst.msk [vmem:[%s552 + $0x158] sm:$0xff] %vm3772, %v3669
        %3817 = vst.msk [vmem:[%s552 + $0x160] sm:$0xff] %vm3772, %v3674
        %3818 = vst.msk [vmem:[%s552 + $0x168] sm:$0xff] %vm3772, %v3679
        %3819 = vst.msk [vmem:[%s552 + $0x170] sm:$0xff] %vm3772, %v3684
        %3820 = vst.msk [vmem:[%s552 + $0x178] sm:$0xff] %vm3772, %v3689
        %3821 = vst.msk [vmem:[%s552 + $0x180] sm:$0xff] %vm3772, %v3694
        %3822 = vst.msk [vmem:[%s552 + $0x188] sm:$0xff] %vm3772, %v3699
        %3823 = vst.msk [vmem:[%s552 + $0x190] sm:$0xff] %vm3772, %v3704
        %3824 = vst.msk [vmem:[%s552 + $0x198] sm:$0xff] %vm3772, %v3709
        %3825 = vst.msk [vmem:[%s552 + $0x1a0] sm:$0xff] %vm3772, %v3714
        %3826 = vst.msk [vmem:[%s552 + $0x1a8] sm:$0xff] %vm3772, %v3719
        %3827 = vst.msk [vmem:[%s552 + $0x1b0] sm:$0xff] %vm3772, %v3724
        %3828 = vst.msk [vmem:[%s552 + $0x1b8] sm:$0xff] %vm3772, %v3729
        %3829 = vst.msk [vmem:[%s552 + $0x1c0] sm:$0xff] %vm3772, %v3734
        %3830 = vst.msk [vmem:[%s552 + $0x1c8] sm:$0xff] %vm3772, %v3739
        %3831 = vst.msk [vmem:[%s552 + $0x1d0] sm:$0xff] %vm3772, %v3744
        %3832 = vst.msk [vmem:[%s552 + $0x1d8] sm:$0xff] %vm3772, %v3749
        %3833 = vst.msk [vmem:[%s552 + $0x1e0] sm:$0xff] %vm3772, %v3754
        %3834 = vst.msk [vmem:[%s552 + $0x1e8] sm:$0xff] %vm3772, %v3759
        %3835 = vst.msk [vmem:[%s552 + $0x1f0] sm:$0xff] %vm3772, %v3764
        %3836 = vst.msk [vmem:[%s552 + $0x1f8] sm:$0xff] %vm3772, %v3769
        %s3837 = smul.u32 64, %s31
        %p3838 = scmp.lt.s32.totalorder %s30, 1
        %s3839 = scalar_select %p3838, %s30, 1
        %p3840 = scmp.lt.s32.totalorder %s3837, 127
        %s3841 = scalar_select %p3840, %s3837, 127
        %s3842 = smul.addr %s3839, 128
        %s3843 = sadd.s32 %s3841, %s3842
        %s3844 = smul.addr %s3843, 8
        %s3845 = scalar_lea.vmem %s11, %s3844
        %s3846 = smul.u32 64, %s31
        %p3847 = scmp.lt.s32.totalorder %s30, 1
        %s3848 = scalar_select %p3847, %s30, 1
        %p3849 = scmp.lt.s32.totalorder %s3846, 127
        %s3850 = scalar_select %p3849, %s3846, 127
        %s3851 = smul.addr %s3848, 128
        %s3852 = sadd.s32 %s3850, %s3851
        %s3853 = smul.addr %s3852, 8
        %s3854 = scalar_lea.vmem %s12, %s3853
        // Predicated region
        $region88: #{tpu_custom_call.1} parent=82 // pred_check
          %p3855 = pneg %p303
        $region89: #{tpu_custom_call.1} parent=82 // pred_check_branch
          %3857 = sbr.rel (%p3855) target = $region91
        $region90: #{tpu_custom_call.1} parent=82 // pred_region
          %s3858 = smul.u32 64, %s31
        $region91: #{tpu_custom_call.1} parent=82 // pred_fallthru
          _
        // Predicated region
        $region92: #{tpu_custom_call.1} parent=82 // pred_check
          %p3859 = pneg %p331
        $region93: #{tpu_custom_call.1} parent=82 // pred_check_branch
          %3861 = sbr.rel (%p3859) target = $region95
        $region94: #{tpu_custom_call.1} parent=82 // pred_region
          %s3862 = smul.u32 64, %s31
        $region95: #{tpu_custom_call.1} parent=82 // pred_fallthru
          _
      $region83: #{tpu_custom_call.1} parent=5 // pred_fallthru
        _
      %p3863 = scmp.le.s32.totalorder 2, %s21
      // Predicated region
      $region96: #{tpu_custom_call.1} parent=5 // pred_check
        %p3864 = pneg %p3863
      $region97: #{tpu_custom_call.1} parent=5 // pred_check_branch
        %3866 = sbr.rel (%p3864) target = $region99
      $region98: #{tpu_custom_call.1} parent=5 // pred_region
        %s3867 = ssub.s32 %s21, 2
        // Predicated region
        $region100: #{tpu_custom_call.1} parent=98 // pred_check
          %p3868 = pneg %p309
        $region101: #{tpu_custom_call.1} parent=98 // pred_check_branch
          %3870 = sbr.rel (%p3868) target = $region103
        $region102: #{tpu_custom_call.1} parent=98 // pred_region
          %s3871 = smul.u32 64, %s33
          %p3872 = scmp.lt.s32.totalorder %s32, 1
          %s3873 = scalar_select %p3872, %s32, 1
          %p3874 = scmp.lt.s32.totalorder %s3871, 127
          %s3875 = scalar_select %p3874, %s3871, 127
          %s3876 = smul.addr %s3873, 128
          %s3877 = sadd.s32 %s3875, %s3876
          %s3878 = smul.addr %s3877, 8
          %s3879 = scalar_lea.vmem %s11, %s3878
        $region103: #{tpu_custom_call.1} parent=98 // pred_fallthru
          _
        // Predicated region
        $region104: #{tpu_custom_call.1} parent=98 // pred_check
          %p3880 = pneg %p337
        $region105: #{tpu_custom_call.1} parent=98 // pred_check_branch
          %3882 = sbr.rel (%p3880) target = $region107
        $region106: #{tpu_custom_call.1} parent=98 // pred_region
          %s3883 = smul.u32 64, %s33
          %p3884 = scmp.lt.s32.totalorder %s32, 1
          %s3885 = scalar_select %p3884, %s32, 1
          %p3886 = scmp.lt.s32.totalorder %s3883, 127
          %s3887 = scalar_select %p3886, %s3883, 127
          %s3888 = smul.addr %s3885, 128
          %s3889 = sadd.s32 %s3887, %s3888
          %s3890 = smul.addr %s3889, 8
          %s3891 = scalar_lea.vmem %s12, %s3890
        $region107: #{tpu_custom_call.1} parent=98 // pred_fallthru
          _
      $region99: #{tpu_custom_call.1} parent=5 // pred_fallthru
        _
    $region6: #{tpu_custom_call.1} parent=1 // loop_footer
      %s25 = sadd.s32 1, %s21
    $region7: #{tpu_custom_call.1} parent=1 // loop_footer_branch
      %20 = sbr.rel target = $region3
    $region8: #{tpu_custom_call.1} parent=1 // loop_exit
      _

</llo_original>
